<compile_context>
chip_gen: v7x
topology: tpu7x:2x2x1
jax: 0.10.0
libtpu: 0.0.40
codegen_flags: <defaults>
</compile_context>

<pallas_src>
import functools

import jax
import jax.numpy as jnp
from jax.experimental import pallas as pl
from jax.experimental.pallas import tpu as pltpu

EPS = 1e-5
LANE = 128


def _round_up(v, m):
    return ((v + m - 1) // m) * m


# --------------------------------------------------------------------------
# Pass A: conv1 (im2col matmul) + shortcut 1x1 matmul, bf16 MXU, f32 acc.
# Emits pre-BN activations plus per-tile [sum, sum_sq] rows for both.
# --------------------------------------------------------------------------
def stage1_kernel(p1_ref, xs_ref, w1_ref, ws_ref,
                  z1_ref, zs_ref, s1_ref, ss_ref):
    z1 = jnp.dot(p1_ref[...], w1_ref[...], preferred_element_type=jnp.float32)
    zs = jnp.dot(xs_ref[...], ws_ref[...], preferred_element_type=jnp.float32)
    z1_ref[...] = z1
    zs_ref[...] = zs
    s1_ref[...] = jnp.concatenate(
        [jnp.sum(z1, axis=0, keepdims=True),
         jnp.sum(z1 * z1, axis=0, keepdims=True)], axis=0)[None]
    ss_ref[...] = jnp.concatenate(
        [jnp.sum(zs, axis=0, keepdims=True),
         jnp.sum(zs * zs, axis=0, keepdims=True)], axis=0)[None]


# --------------------------------------------------------------------------
# Pass B: BN1-apply + ReLU fused into conv2 (per-image block).
# y1 is materialized only in a VMEM scratch (no HBM round trip, no 9x im2col
# expansion); conv2 = 9 shifted matmuls accumulated in f32 on the MXU.
# Also emits per-image [sum, sum_sq] for BN2.
# --------------------------------------------------------------------------
def stage2_kernel(z1p_ref, sc1_ref, sh1_ref, w2_ref, z2_ref, s2_ref, y_ref):
    hp, wp, cp = y_ref.shape
    ho, wo = hp - 2, wp - 2
    zp = z1p_ref[0]                                    # (hp, wp, cp) f32
    # Folded BN1 + ReLU (f32).
    y = jnp.maximum(zp * sc1_ref[...] + sh1_ref[...], 0.0)
    # The spatial halo of z1 is zero-padded; BN shifts it away from zero, so
    # mask the 1-pixel border back to exact zeros (conv2 uses zero padding).
    row = jax.lax.broadcasted_iota(jnp.int32, (hp, wp, 1), 0)
    col = jax.lax.broadcasted_iota(jnp.int32, (hp, wp, 1), 1)
    interior = (row >= 1) & (row < hp - 1) & (col >= 1) & (col < wp - 1)
    y_ref[...] = jnp.where(interior, y, 0.0)

    acc = jnp.zeros((ho * wo, cp), jnp.float32)
    for t in range(9):                                 # static, fully unrolled
        dy, dx = t // 3, t % 3
        win = y_ref[dy:dy + ho, dx:dx + wo, :].reshape(ho * wo, cp)
        acc = acc + jnp.dot(win.astype(jnp.bfloat16), w2_ref[t],
                            preferred_element_type=jnp.float32)
    z2_ref[...] = acc[None]
    s2_ref[...] = jnp.concatenate(
        [jnp.sum(acc, axis=0, keepdims=True),
         jnp.sum(acc * acc, axis=0, keepdims=True)], axis=0)[None]


# --------------------------------------------------------------------------
# Pass C: folded BN2 + folded shortcut-BN + residual add + ReLU (tiled).
# --------------------------------------------------------------------------
def stage3_kernel(z2_ref, zs_ref, sc2_ref, sh2_ref, scs_ref, shs_ref, out_ref):
    y2 = z2_ref[...] * sc2_ref[...] + sh2_ref[...]
    ysc = zs_ref[...] * scs_ref[...] + shs_ref[...]
    out_ref[...] = jnp.maximum(y2 + ysc, 0.0)


def _fold_bn(stats, count, gamma, beta):
    """stats: (T, 2, Cp) per-tile [sum, sum_sq] -> (scale, shift) of (1, Cp)."""
    s = jnp.sum(stats[:, 0, :], axis=0)
    sq = jnp.sum(stats[:, 1, :], axis=0)
    mean = s / count
    var = jnp.maximum(sq / count - mean * mean, 0.0)
    scale = gamma * jax.lax.rsqrt(var + EPS)
    shift = beta - mean * scale
    return scale[None, :], shift[None, :]


def _im2col(x, ksize, stride, pad):
    # x: (N, H, W, C) NHWC -> (N*Ho*Wo, ksize*ksize*C)
    # TODO(synk): conv1 patch extraction is still JAX glue; move in-kernel with
    # halo'd row blocks (strided windows) to drop the remaining 9x read.
    n, h, w, c = x.shape
    if pad:
        x = jnp.pad(x, ((0, 0), (pad, pad), (pad, pad), (0, 0)))
    hp, wp = h + 2 * pad, w + 2 * pad
    ho = (hp - ksize) // stride + 1
    wo = (wp - ksize) // stride + 1
    cols = []
    for dy in range(ksize):
        for dx in range(ksize):
            cols.append(x[:, dy:dy + (ho - 1) * stride + 1:stride,
                            dx:dx + (wo - 1) * stride + 1:stride, :])
    patches = jnp.concatenate(cols, axis=-1)
    return patches.reshape(n * ho * wo, ksize * ksize * c), ho, wo


@functools.partial(jax.jit, static_argnames=("stride", "tm"))
def basic_block_forward(x_nchw, params, stride, tm=64):
    n, cin, h, w = x_nchw.shape
    cout = params["w1"].shape[-1]
    cp = _round_up(cout, LANE)                          # lane-dense channels
    k1 = 9 * cin

    x = jnp.transpose(x_nchw, (0, 2, 3, 1)).astype(jnp.float32)   # NHWC
    xb = x.astype(jnp.bfloat16)

    # ---- JAX glue: im2col for conv1, strided 1x1 input for the shortcut ----
    p1, ho, wo = _im2col(xb, 3, stride, 1)                         # (M, 9*Cin) bf16
    xs = xb[:, 0:(ho - 1) * stride + 1:stride,
               0:(wo - 1) * stride + 1:stride, :].reshape(-1, cin)  # (M, Cin) bf16
    m = n * ho * wo
    m_pad = _round_up(m, tm)
    mt = m_pad // tm
    if m_pad != m:
        p1 = jnp.pad(p1, ((0, m_pad - m), (0, 0)))
        xs = jnp.pad(xs, ((0, m_pad - m), (0, 0)))

    # Weights / BN params, zero-padded to Cp lanes (padded gamma = 0 so padded
    # channels stay exactly zero end-to-end).
    w1 = jnp.pad(params["w1"].reshape(k1, cout),
                 ((0, 0), (0, cp - cout))).astype(jnp.bfloat16)
    ws = jnp.pad(params["ws"], ((0, 0), (0, cp - cout))).astype(jnp.bfloat16)
    w2 = jnp.pad(params["w2"],
                 ((0, 0), (0, 0), (0, cp - cout), (0, cp - cout))
                 ).reshape(9, cp, cp).astype(jnp.bfloat16)

    def padc(v):
        return jnp.pad(v.astype(jnp.float32), (0, cp - cout))

    g1, b1 = padc(params["g1"]), padc(params["b1"])
    g2, b2 = padc(params["g2"]), padc(params["b2"])
    gs, bs = padc(params["gs"]), padc(params["bs"])

    cparams = pltpu.CompilerParams(dimension_semantics=("parallel",),
                                   vmem_limit_bytes=32 * 1024 * 1024)

    # ---- Pass A: conv1 + shortcut matmuls + per-tile BN stats ----
    z1, zs_pre, st1, sts = pl.pallas_call(
        stage1_kernel,
        grid=(mt,),
        in_specs=[pl.BlockSpec((tm, k1), lambda i: (i, 0)),
                  pl.BlockSpec((tm, cin), lambda i: (i, 0)),
                  pl.BlockSpec((k1, cp), lambda i: (0, 0)),
                  pl.BlockSpec((cin, cp), lambda i: (0, 0))],
        out_specs=(pl.BlockSpec((tm, cp), lambda i: (i, 0)),
                   pl.BlockSpec((tm, cp), lambda i: (i, 0)),
                   pl.BlockSpec((1, 2, cp), lambda i: (i, 0, 0)),
                   pl.BlockSpec((1, 2, cp), lambda i: (i, 0, 0))),
        out_shape=(jax.ShapeDtypeStruct((m_pad, cp), jnp.float32),
                   jax.ShapeDtypeStruct((m_pad, cp), jnp.float32),
                   jax.ShapeDtypeStruct((mt, 2, cp), jnp.float32),
                   jax.ShapeDtypeStruct((mt, 2, cp), jnp.float32)),
        compiler_params=cparams,
        cost_estimate=pl.CostEstimate(
            flops=2 * m_pad * (k1 + cin) * cp,
            transcendentals=0,
            bytes_accessed=(m_pad * (k1 + cin) * 2 + (k1 + cin) * cp * 2
                            + 2 * m_pad * cp * 4 + 4 * mt * cp * 4)),
    )(p1, xs, w1, ws)

    # Tiny JAX reduction over the per-tile stats -> folded BN scale/shift.
    sc1, sh1 = _fold_bn(st1, m, g1, b1)
    scs, shs = _fold_bn(sts, m, gs, bs)

    # Spatially pad the pre-BN conv1 output (the kernel zeroes the halo after
    # the BN shift).  y1 itself never touches HBM.
    z1_img = z1[:m].reshape(n, ho, wo, cp)
    z1p = jnp.pad(z1_img, ((0, 0), (1, 1), (1, 1), (0, 0)))
    hp, wp = ho + 2, wo + 2

    # ---- Pass B: fused BN1+ReLU and conv2 (9 shifted matmuls) + BN2 stats ----
    # TODO(synk): for large feature maps, tile Ho into halo'd row blocks
    # instead of one block per image.
    z2, st2 = pl.pallas_call(
        stage2_kernel,
        grid=(n,),
        in_specs=[pl.BlockSpec((1, hp, wp, cp), lambda i: (i, 0, 0, 0)),
                  pl.BlockSpec((1, cp), lambda i: (0, 0)),
                  pl.BlockSpec((1, cp), lambda i: (0, 0)),
                  pl.BlockSpec((9, cp, cp), lambda i: (0, 0, 0))],
        out_specs=(pl.BlockSpec((1, ho * wo, cp), lambda i: (i, 0, 0)),
                   pl.BlockSpec((1, 2, cp), lambda i: (i, 0, 0))),
        out_shape=(jax.ShapeDtypeStruct((n, ho * wo, cp), jnp.float32),
                   jax.ShapeDtypeStruct((n, 2, cp), jnp.float32)),
        scratch_shapes=[pltpu.VMEM((hp, wp, cp), jnp.float32)],
        compiler_params=cparams,
        cost_estimate=pl.CostEstimate(
            flops=2 * m * 9 * cp * cp,
            transcendentals=0,
            bytes_accessed=(n * hp * wp * cp * 4 + 9 * cp * cp * 2
                            + m * cp * 4 + n * 2 * cp * 4)),
    )(z1p, sc1, sh1, w2)

    sc2, sh2 = _fold_bn(st2, m, g2, b2)

    z2_flat = z2.reshape(m, cp)
    if m_pad != m:
        z2_flat = jnp.pad(z2_flat, ((0, m_pad - m), (0, 0)))

    # ---- Pass C: BN2 + shortcut BN + residual add + ReLU (tiled, lane-dense) ----
    out = pl.pallas_call(
        stage3_kernel,
        grid=(mt,),
        in_specs=[pl.BlockSpec((tm, cp), lambda i: (i, 0)),
                  pl.BlockSpec((tm, cp), lambda i: (i, 0)),
                  pl.BlockSpec((1, cp), lambda i: (0, 0)),
                  pl.BlockSpec((1, cp), lambda i: (0, 0)),
                  pl.BlockSpec((1, cp), lambda i: (0, 0)),
                  pl.BlockSpec((1, cp), lambda i: (0, 0))],
        out_specs=pl.BlockSpec((tm, cp), lambda i: (i, 0)),
        out_shape=jax.ShapeDtypeStruct((m_pad, cp), jnp.float32),
        compiler_params=cparams,
        cost_estimate=pl.CostEstimate(
            flops=6 * m_pad * cp,
            transcendentals=0,
            bytes_accessed=3 * m_pad * cp * 4),
    )(z2_flat, zs_pre, sc2, sh2, scs, shs)

    out = out[:m, :cout].reshape(n, ho, wo, cout)
    return jnp.transpose(out, (0, 3, 1, 2))                     # back to NCHW


def ref_forward(x_nchw, params, stride):
    # Pure-JAX f32 reference (lax conv + batch-stat BN) for verification.
    x = jnp.transpose(x_nchw, (0, 2, 3, 1)).astype(jnp.float32)

    def conv(v, wgt, s, p):
        return jax.lax.conv_general_dilated(
            v, wgt, (s, s), [(p, p), (p, p)],
            dimension_numbers=("NHWC", "HWIO", "NHWC"))

    def bn(v, g, b):
        mean = jnp.mean(v, axis=(0, 1, 2), keepdims=True)
        var = jnp.mean((v - mean) ** 2, axis=(0, 1, 2), keepdims=True)
        return g * (v - mean) * jax.lax.rsqrt(var + EPS) + b

    y = jax.nn.relu(bn(conv(x, params["w1"], stride, 1), params["g1"], params["b1"]))
    y = bn(conv(y, params["w2"], 1, 1), params["g2"], params["b2"])
    sc = bn(conv(x, params["ws"][None, None], stride, 0), params["gs"], params["bs"])
    out = jax.nn.relu(y + sc)
    return jnp.transpose(out, (0, 3, 1, 2))


if __name__ == "__main__":
    N, CIN, H, W = 2, 4, 16, 16
    COUT, STRIDE = 8, 2   # projection-shortcut path (the one that runs in torch)

    key = jax.random.PRNGKey(0)
    ks = jax.random.split(key, 8)
    x = jax.random.normal(ks[0], (N, CIN, H, W), jnp.float32)
    params = {
        # conv weights stored HWIO (3,3,Cin,Cout); torch stores OIHW — same math.
        "w1": 0.1 * jax.random.normal(ks[1], (3, 3, CIN, COUT), jnp.float32),
        "w2": 0.1 * jax.random.normal(ks[2], (3, 3, COUT, COUT), jnp.float32),
        "ws": 0.1 * jax.random.normal(ks[3], (CIN, COUT), jnp.float32),
        "g1": 1.0 + 0.1 * jax.random.normal(ks[4], (COUT,), jnp.float32),
        "b1": 0.1 * jax.random.normal(ks[5], (COUT,), jnp.float32),
        "g2": 1.0 + 0.1 * jax.random.normal(ks[6], (COUT,), jnp.float32),
        "b2": jnp.zeros((COUT,), jnp.float32),
        "gs": jnp.ones((COUT,), jnp.float32),
        "bs": 0.1 * jax.random.normal(ks[7], (COUT,), jnp.float32),
    }

    out = jax.block_until_ready(basic_block_forward(x, params, STRIDE))
    ref = jax.block_until_ready(ref_forward(x, params, STRIDE))

    assert out.shape == (N, COUT, H // STRIDE, W // STRIDE), out.shape
    # bf16 MXU inputs vs a pure-f32 reference: loosen the tolerance accordingly
    # (BN statistics, accumulation and elementwise math stay in f32).
    max_err = float(jnp.max(jnp.abs(out - ref)))
    mean_err = float(jnp.mean(jnp.abs(out - ref)))
    if max_err > 1.5e-1 or mean_err > 2e-2:
        raise AssertionError(
            f"Pallas vs reference mismatch: max|err|={max_err} mean|err|={mean_err}")
    print("KERNEL_OK")
</pallas_src>

<mosaic_0001>
module attributes {stable_mosaic.version = 11 : i64} {
  func.func @stage1_kernel(%arg0: i32, %arg1: memref<64x36xbf16, #tpu.memory_space<vmem>>, %arg2: memref<64x4xbf16, #tpu.memory_space<vmem>>, %arg3: memref<36x128xbf16, #tpu.memory_space<vmem>>, %arg4: memref<4x128xbf16, #tpu.memory_space<vmem>>, %arg5: memref<64x128xf32, #tpu.memory_space<vmem>>, %arg6: memref<64x128xf32, #tpu.memory_space<vmem>>, %arg7: memref<1x2x128xf32, #tpu.memory_space<vmem>>, %arg8: memref<1x2x128xf32, #tpu.memory_space<vmem>>) attributes {dimension_semantics = [#tpu.dimension_semantics<parallel>], iteration_bounds = array<i64: 2>, scalar_prefetch = 0 : i64, scratch_operands = 0 : i64, tpu.core_type = #tpu.core_type<tc>, window_params = [{transform_indices = @transform_0, window_bounds = array<i64: 64, 36>}, {transform_indices = @transform_1, window_bounds = array<i64: 64, 4>}, {pipeline_mode = #tpu.pipeline_mode<synchronous>, transform_indices = @transform_2, window_bounds = array<i64: 36, 128>}, {pipeline_mode = #tpu.pipeline_mode<synchronous>, transform_indices = @transform_3, window_bounds = array<i64: 4, 128>}, {transform_indices = @transform_4, window_bounds = array<i64: 64, 128>}, {transform_indices = @transform_5, window_bounds = array<i64: 64, 128>}, {transform_indices = @transform_6, window_bounds = array<i64: 1, 2, 128>}, {transform_indices = @transform_7, window_bounds = array<i64: 1, 2, 128>}]} {
    %c0 = arith.constant 0 : index
    %c0_0 = arith.constant 0 : index
    %0 = vector.load %arg1[%c0, %c0_0] : memref<64x36xbf16, #tpu.memory_space<vmem>>, vector<64x36xbf16>
    %c0_1 = arith.constant 0 : index
    %c0_2 = arith.constant 0 : index
    %1 = vector.load %arg3[%c0_1, %c0_2] : memref<36x128xbf16, #tpu.memory_space<vmem>>, vector<36x128xbf16>
    %cst = arith.constant dense<0.000000e+00> : vector<64x128xf32>
    %2 = tpu.matmul %0, %1, %cst {dimension_numbers = #tpu.dot_dimension_numbers<[1], [0], [0], [1], [0, 0, 1, 1], [], []>} : vector<64x36xbf16>, vector<36x128xbf16>, vector<64x128xf32> -> vector<64x128xf32>
    %c0_3 = arith.constant 0 : index
    %c0_4 = arith.constant 0 : index
    %3 = vector.load %arg2[%c0_3, %c0_4] : memref<64x4xbf16, #tpu.memory_space<vmem>>, vector<64x4xbf16>
    %c0_5 = arith.constant 0 : index
    %c0_6 = arith.constant 0 : index
    %4 = vector.load %arg4[%c0_5, %c0_6] : memref<4x128xbf16, #tpu.memory_space<vmem>>, vector<4x128xbf16>
    %cst_7 = arith.constant dense<0.000000e+00> : vector<64x128xf32>
    %5 = tpu.matmul %3, %4, %cst_7 {dimension_numbers = #tpu.dot_dimension_numbers<[1], [0], [0], [1], [0, 0, 1, 1], [], []>} : vector<64x4xbf16>, vector<4x128xbf16>, vector<64x128xf32> -> vector<64x128xf32>
    %c0_8 = arith.constant 0 : index
    %c0_9 = arith.constant 0 : index
    %6 = vector.load %arg5[%c0_8, %c0_9] : memref<64x128xf32, #tpu.memory_space<vmem>>, vector<64x128xf32>
    tpu.vector_store %arg5[%c0_8, %c0_9], %2 {strides = array<i32>} : memref<64x128xf32, #tpu.memory_space<vmem>>, vector<64x128xf32>,
    %c0_10 = arith.constant 0 : index
    %c0_11 = arith.constant 0 : index
    %7 = vector.load %arg6[%c0_10, %c0_11] : memref<64x128xf32, #tpu.memory_space<vmem>>, vector<64x128xf32>
    tpu.vector_store %arg6[%c0_10, %c0_11], %5 {strides = array<i32>} : memref<64x128xf32, #tpu.memory_space<vmem>>, vector<64x128xf32>,
    %cst_12 = arith.constant dense<0.000000e+00> : vector<128xf32>
    %8 = vector.multi_reduction <add>, %2, %cst_12 [0] : vector<64x128xf32> to vector<128xf32>
    %9 = vector.shape_cast %8 : vector<128xf32> to vector<1x128xf32>
    %10 = arith.mulf %2, %2 : vector<64x128xf32>
    %cst_13 = arith.constant dense<0.000000e+00> : vector<128xf32>
    %11 = vector.multi_reduction <add>, %10, %cst_13 [0] : vector<64x128xf32> to vector<128xf32>
    %12 = vector.shape_cast %11 : vector<128xf32> to vector<1x128xf32>
    %13 = tpu.concatenate %9, %12 in 0 : vector<1x128xf32>, vector<1x128xf32> -> vector<2x128xf32>
    %14 = vector.shape_cast %13 : vector<2x128xf32> to vector<1x2x128xf32>
    %c0_14 = arith.constant 0 : index
    %c0_15 = arith.constant 0 : index
    %c0_16 = arith.constant 0 : index
    %15 = vector.load %arg7[%c0_14, %c0_15, %c0_16] : memref<1x2x128xf32, #tpu.memory_space<vmem>>, vector<1x2x128xf32>
    tpu.vector_store %arg7[%c0_14, %c0_15, %c0_16], %14 {strides = array<i32>} : memref<1x2x128xf32, #tpu.memory_space<vmem>>, vector<1x2x128xf32>,
    %cst_17 = arith.constant dense<0.000000e+00> : vector<128xf32>
    %16 = vector.multi_reduction <add>, %5, %cst_17 [0] : vector<64x128xf32> to vector<128xf32>
    %17 = vector.shape_cast %16 : vector<128xf32> to vector<1x128xf32>
    %18 = arith.mulf %5, %5 : vector<64x128xf32>
    %cst_18 = arith.constant dense<0.000000e+00> : vector<128xf32>
    %19 = vector.multi_reduction <add>, %18, %cst_18 [0] : vector<64x128xf32> to vector<128xf32>
    %20 = vector.shape_cast %19 : vector<128xf32> to vector<1x128xf32>
    %21 = tpu.concatenate %17, %20 in 0 : vector<1x128xf32>, vector<1x128xf32> -> vector<2x128xf32>
    %22 = vector.shape_cast %21 : vector<2x128xf32> to vector<1x2x128xf32>
    %c0_19 = arith.constant 0 : index
    %c0_20 = arith.constant 0 : index
    %c0_21 = arith.constant 0 : index
    %23 = vector.load %arg8[%c0_19, %c0_20, %c0_21] : memref<1x2x128xf32, #tpu.memory_space<vmem>>, vector<1x2x128xf32>
    tpu.vector_store %arg8[%c0_19, %c0_20, %c0_21], %22 {strides = array<i32>} : memref<1x2x128xf32, #tpu.memory_space<vmem>>, vector<1x2x128xf32>,
    return
  }
  func.func @transform_0(%arg0: i32) -> (i32, i32) {
    %c0_i32 = arith.constant 0 : i32
    %c0_i32_0 = arith.constant 0 : i32
    return %arg0, %c0_i32 : i32, i32
  }
  func.func @transform_1(%arg0: i32) -> (i32, i32) {
    %c0_i32 = arith.constant 0 : i32
    %c0_i32_0 = arith.constant 0 : i32
    return %arg0, %c0_i32 : i32, i32
  }
  func.func @transform_2(%arg0: i32) -> (i32, i32) {
    %c0_i32 = arith.constant 0 : i32
    %c0_i32_0 = arith.constant 0 : i32
    %c0_i32_1 = arith.constant 0 : i32
    return %c0_i32, %c0_i32_0 : i32, i32
  }
  func.func @transform_3(%arg0: i32) -> (i32, i32) {
    %c0_i32 = arith.constant 0 : i32
    %c0_i32_0 = arith.constant 0 : i32
    %c0_i32_1 = arith.constant 0 : i32
    return %c0_i32, %c0_i32_0 : i32, i32
  }
  func.func @transform_4(%arg0: i32) -> (i32, i32) {
    %c0_i32 = arith.constant 0 : i32
    %c0_i32_0 = arith.constant 0 : i32
    return %arg0, %c0_i32 : i32, i32
  }
  func.func @transform_5(%arg0: i32) -> (i32, i32) {
    %c0_i32 = arith.constant 0 : i32
    %c0_i32_0 = arith.constant 0 : i32
    return %arg0, %c0_i32 : i32, i32
  }
  func.func @transform_6(%arg0: i32) -> (i32, i32, i32) {
    %c0_i32 = arith.constant 0 : i32
    %c0_i32_0 = arith.constant 0 : i32
    %c0_i32_1 = arith.constant 0 : i32
    return %arg0, %c0_i32, %c0_i32_0 : i32, i32, i32
  }
  func.func @transform_7(%arg0: i32) -> (i32, i32, i32) {
    %c0_i32 = arith.constant 0 : i32
    %c0_i32_0 = arith.constant 0 : i32
    %c0_i32_1 = arith.constant 0 : i32
    return %arg0, %c0_i32, %c0_i32_0 : i32, i32, i32
  }
}

module attributes {stable_mosaic.version = 11 : i64} {
  func.func @stage2_kernel(%arg0: i32, %arg1: memref<1x10x10x128xf32, #tpu.memory_space<vmem>>, %arg2: memref<1x128xf32, #tpu.memory_space<vmem>>, %arg3: memref<1x128xf32, #tpu.memory_space<vmem>>, %arg4: memref<9x128x128xbf16, #tpu.memory_space<vmem>>, %arg5: memref<1x64x128xf32, #tpu.memory_space<vmem>>, %arg6: memref<1x2x128xf32, #tpu.memory_space<vmem>>, %arg7: memref<10x10x128xf32, #tpu.memory_space<vmem>>) attributes {dimension_semantics = [#tpu.dimension_semantics<parallel>], iteration_bounds = array<i64: 2>, scalar_prefetch = 0 : i64, scratch_operands = 1 : i64, tpu.core_type = #tpu.core_type<tc>, window_params = [{transform_indices = @transform_0, window_bounds = array<i64: 1, 10, 10, 128>}, {pipeline_mode = #tpu.pipeline_mode<synchronous>, transform_indices = @transform_1, window_bounds = array<i64: 1, 128>}, {pipeline_mode = #tpu.pipeline_mode<synchronous>, transform_indices = @transform_2, window_bounds = array<i64: 1, 128>}, {pipeline_mode = #tpu.pipeline_mode<synchronous>, transform_indices = @transform_3, window_bounds = array<i64: 9, 128, 128>}, {transform_indices = @transform_4, window_bounds = array<i64: 1, 64, 128>}, {transform_indices = @transform_5, window_bounds = array<i64: 1, 2, 128>}]} {
    %c0 = arith.constant 0 : index
    %c0_0 = arith.constant 0 : index
    %c0_1 = arith.constant 0 : index
    %c0_2 = arith.constant 0 : index
    %0 = vector.load %arg1[%c0, %c0_0, %c0_1, %c0_2] : memref<1x10x10x128xf32, #tpu.memory_space<vmem>>, vector<1x10x10x128xf32>
    %1 = vector.shape_cast %0 : vector<1x10x10x128xf32> to vector<10x10x128xf32>
    %c0_3 = arith.constant 0 : index
    %c0_4 = arith.constant 0 : index
    %2 = vector.load %arg2[%c0_3, %c0_4] : memref<1x128xf32, #tpu.memory_space<vmem>>, vector<1x128xf32>
    %3 = vector.shape_cast %2 : vector<1x128xf32> to vector<1x1x128xf32>
    %4 = vector.broadcast %3 : vector<1x1x128xf32> to vector<10x10x128xf32>
    %5 = arith.mulf %1, %4 : vector<10x10x128xf32>
    %c0_5 = arith.constant 0 : index
    %c0_6 = arith.constant 0 : index
    %6 = vector.load %arg3[%c0_5, %c0_6] : memref<1x128xf32, #tpu.memory_space<vmem>>, vector<1x128xf32>
    %7 = vector.shape_cast %6 : vector<1x128xf32> to vector<1x1x128xf32>
    %8 = vector.broadcast %7 : vector<1x1x128xf32> to vector<10x10x128xf32>
    %9 = arith.addf %5, %8 : vector<10x10x128xf32>
    %cst = arith.constant 0.000000e+00 : f32
    %10 = vector.broadcast %cst : f32 to vector<10x10x128xf32>
    %11 = arith.maximumf %9, %10 : vector<10x10x128xf32>
    %12 = tpu.iota {dimensions = array<i32: 0>} : vector<10x10x1xi32>
    %13 = tpu.iota {dimensions = array<i32: 1>} : vector<10x10x1xi32>
    %c1_i32 = arith.constant 1 : i32
    %14 = vector.broadcast %c1_i32 : i32 to vector<10x10x1xi32>
    %15 = arith.cmpi sge, %12, %14 : vector<10x10x1xi32>
    %c9_i32 = arith.constant 9 : i32
    %16 = vector.broadcast %c9_i32 : i32 to vector<10x10x1xi32>
    %17 = arith.cmpi slt, %12, %16 : vector<10x10x1xi32>
    %18 = arith.andi %15, %17 : vector<10x10x1xi1>
    %c1_i32_7 = arith.constant 1 : i32
    %19 = vector.broadcast %c1_i32_7 : i32 to vector<10x10x1xi32>
    %20 = arith.cmpi sge, %13, %19 : vector<10x10x1xi32>
    %21 = arith.andi %18, %20 : vector<10x10x1xi1>
    %c9_i32_8 = arith.constant 9 : i32
    %22 = vector.broadcast %c9_i32_8 : i32 to vector<10x10x1xi32>
    %23 = arith.cmpi slt, %13, %22 : vector<10x10x1xi32>
    %24 = arith.andi %21, %23 : vector<10x10x1xi1>
    %cst_9 = arith.constant 0.000000e+00 : f32
    %25 = vector.shape_cast %24 : vector<10x10x1xi1> to vector<10x10x1xi1>
    %26 = vector.broadcast %25 : vector<10x10x1xi1> to vector<10x10x128xi1>
    %27 = vector.broadcast %cst_9 : f32 to vector<10x10x128xf32>
    %28 = arith.select %26, %11, %27 : vector<10x10x128xi1>, vector<10x10x128xf32>
    %c0_10 = arith.constant 0 : index
    %c0_11 = arith.constant 0 : index
    %c0_12 = arith.constant 0 : index
    %29 = vector.load %arg7[%c0_10, %c0_11, %c0_12] : memref<10x10x128xf32, #tpu.memory_space<vmem>>, vector<10x10x128xf32>
    tpu.vector_store %arg7[%c0_10, %c0_11, %c0_12], %28 {strides = array<i32>} : memref<10x10x128xf32, #tpu.memory_space<vmem>>, vector<10x10x128xf32>,
    %cst_13 = arith.constant 0.000000e+00 : f32
    %30 = vector.broadcast %cst_13 : f32 to vector<64x128xf32>
    %c0_14 = arith.constant 0 : index
    %c0_15 = arith.constant 0 : index
    %c0_16 = arith.constant 0 : index
    %31 = vector.load %arg7[%c0_14, %c0_15, %c0_16] : memref<10x10x128xf32, #tpu.memory_space<vmem>>, vector<8x8x128xf32>
    %32 = vector.shape_cast %31 : vector<8x8x128xf32> to vector<64x128xf32>
    %33 = arith.truncf %32 : vector<64x128xf32> to vector<64x128xbf16>
    %c0_17 = arith.constant 0 : index
    %c0_18 = arith.constant 0 : index
    %c0_19 = arith.constant 0 : index
    %34 = vector.load %arg4[%c0_17, %c0_18, %c0_19] : memref<9x128x128xbf16, #tpu.memory_space<vmem>>, vector<1x128x128xbf16>
    %35 = vector.shape_cast %34 : vector<1x128x128xbf16> to vector<128x128xbf16>
    %cst_20 = arith.constant dense<0.000000e+00> : vector<64x128xf32>
    %36 = tpu.matmul %33, %35, %cst_20 {dimension_numbers = #tpu.dot_dimension_numbers<[1], [0], [0], [1], [0, 0, 1, 1], [], []>} : vector<64x128xbf16>, vector<128x128xbf16>, vector<64x128xf32> -> vector<64x128xf32>
    %37 = arith.addf %30, %36 : vector<64x128xf32>
    %c0_21 = arith.constant 0 : index
    %c1 = arith.constant 1 : index
    %c0_22 = arith.constant 0 : index
    %38 = vector.load %arg7[%c0_21, %c1, %c0_22] : memref<10x10x128xf32, #tpu.memory_space<vmem>>, vector<8x8x128xf32>
    %39 = vector.shape_cast %38 : vector<8x8x128xf32> to vector<64x128xf32>
    %40 = arith.truncf %39 : vector<64x128xf32> to vector<64x128xbf16>
    %c1_23 = arith.constant 1 : index
    %c0_24 = arith.constant 0 : index
    %c0_25 = arith.constant 0 : index
    %41 = vector.load %arg4[%c1_23, %c0_24, %c0_25] : memref<9x128x128xbf16, #tpu.memory_space<vmem>>, vector<1x128x128xbf16>
    %42 = vector.shape_cast %41 : vector<1x128x128xbf16> to vector<128x128xbf16>
    %cst_26 = arith.constant dense<0.000000e+00> : vector<64x128xf32>
    %43 = tpu.matmul %40, %42, %cst_26 {dimension_numbers = #tpu.dot_dimension_numbers<[1], [0], [0], [1], [0, 0, 1, 1], [], []>} : vector<64x128xbf16>, vector<128x128xbf16>, vector<64x128xf32> -> vector<64x128xf32>
    %44 = arith.addf %37, %43 : vector<64x128xf32>
    %c0_27 = arith.constant 0 : index
    %c2 = arith.constant 2 : index
    %c0_28 = arith.constant 0 : index
    %45 = vector.load %arg7[%c0_27, %c2, %c0_28] : memref<10x10x128xf32, #tpu.memory_space<vmem>>, vector<8x8x128xf32>
    %46 = vector.shape_cast %45 : vector<8x8x128xf32> to vector<64x128xf32>
    %47 = arith.truncf %46 : vector<64x128xf32> to vector<64x128xbf16>
    %c2_29 = arith.constant 2 : index
    %c0_30 = arith.constant 0 : index
    %c0_31 = arith.constant 0 : index
    %48 = vector.load %arg4[%c2_29, %c0_30, %c0_31] : memref<9x128x128xbf16, #tpu.memory_space<vmem>>, vector<1x128x128xbf16>
    %49 = vector.shape_cast %48 : vector<1x128x128xbf16> to vector<128x128xbf16>
    %cst_32 = arith.constant dense<0.000000e+00> : vector<64x128xf32>
    %50 = tpu.matmul %47, %49, %cst_32 {dimension_numbers = #tpu.dot_dimension_numbers<[1], [0], [0], [1], [0, 0, 1, 1], [], []>} : vector<64x128xbf16>, vector<128x128xbf16>, vector<64x128xf32> -> vector<64x128xf32>
    %51 = arith.addf %44, %50 : vector<64x128xf32>
    %c1_33 = arith.constant 1 : index
    %c0_34 = arith.constant 0 : index
    %c0_35 = arith.constant 0 : index
    %52 = vector.load %arg7[%c1_33, %c0_34, %c0_35] : memref<10x10x128xf32, #tpu.memory_space<vmem>>, vector<8x8x128xf32>
    %53 = vector.shape_cast %52 : vector<8x8x128xf32> to vector<64x128xf32>
    %54 = arith.truncf %53 : vector<64x128xf32> to vector<64x128xbf16>
    %c3 = arith.constant 3 : index
    %c0_36 = arith.constant 0 : index
    %c0_37 = arith.constant 0 : index
    %55 = vector.load %arg4[%c3, %c0_36, %c0_37] : memref<9x128x128xbf16, #tpu.memory_space<vmem>>, vector<1x128x128xbf16>
    %56 = vector.shape_cast %55 : vector<1x128x128xbf16> to vector<128x128xbf16>
    %cst_38 = arith.constant dense<0.000000e+00> : vector<64x128xf32>
    %57 = tpu.matmul %54, %56, %cst_38 {dimension_numbers = #tpu.dot_dimension_numbers<[1], [0], [0], [1], [0, 0, 1, 1], [], []>} : vector<64x128xbf16>, vector<128x128xbf16>, vector<64x128xf32> -> vector<64x128xf32>
    %58 = arith.addf %51, %57 : vector<64x128xf32>
    %c1_39 = arith.constant 1 : index
    %c1_40 = arith.constant 1 : index
    %c0_41 = arith.constant 0 : index
    %59 = vector.load %arg7[%c1_39, %c1_40, %c0_41] : memref<10x10x128xf32, #tpu.memory_space<vmem>>, vector<8x8x128xf32>
    %60 = vector.shape_cast %59 : vector<8x8x128xf32> to vector<64x128xf32>
    %61 = arith.truncf %60 : vector<64x128xf32> to vector<64x128xbf16>
    %c4 = arith.constant 4 : index
    %c0_42 = arith.constant 0 : index
    %c0_43 = arith.constant 0 : index
    %62 = vector.load %arg4[%c4, %c0_42, %c0_43] : memref<9x128x128xbf16, #tpu.memory_space<vmem>>, vector<1x128x128xbf16>
    %63 = vector.shape_cast %62 : vector<1x128x128xbf16> to vector<128x128xbf16>
    %cst_44 = arith.constant dense<0.000000e+00> : vector<64x128xf32>
    %64 = tpu.matmul %61, %63, %cst_44 {dimension_numbers = #tpu.dot_dimension_numbers<[1], [0], [0], [1], [0, 0, 1, 1], [], []>} : vector<64x128xbf16>, vector<128x128xbf16>, vector<64x128xf32> -> vector<64x128xf32>
    %65 = arith.addf %58, %64 : vector<64x128xf32>
    %c1_45 = arith.constant 1 : index
    %c2_46 = arith.constant 2 : index
    %c0_47 = arith.constant 0 : index
    %66 = vector.load %arg7[%c1_45, %c2_46, %c0_47] : memref<10x10x128xf32, #tpu.memory_space<vmem>>, vector<8x8x128xf32>
    %67 = vector.shape_cast %66 : vector<8x8x128xf32> to vector<64x128xf32>
    %68 = arith.truncf %67 : vector<64x128xf32> to vector<64x128xbf16>
    %c5 = arith.constant 5 : index
    %c0_48 = arith.constant 0 : index
    %c0_49 = arith.constant 0 : index
    %69 = vector.load %arg4[%c5, %c0_48, %c0_49] : memref<9x128x128xbf16, #tpu.memory_space<vmem>>, vector<1x128x128xbf16>
    %70 = vector.shape_cast %69 : vector<1x128x128xbf16> to vector<128x128xbf16>
    %cst_50 = arith.constant dense<0.000000e+00> : vector<64x128xf32>
    %71 = tpu.matmul %68, %70, %cst_50 {dimension_numbers = #tpu.dot_dimension_numbers<[1], [0], [0], [1], [0, 0, 1, 1], [], []>} : vector<64x128xbf16>, vector<128x128xbf16>, vector<64x128xf32> -> vector<64x128xf32>
    %72 = arith.addf %65, %71 : vector<64x128xf32>
    %c2_51 = arith.constant 2 : index
    %c0_52 = arith.constant 0 : index
    %c0_53 = arith.constant 0 : index
    %73 = vector.load %arg7[%c2_51, %c0_52, %c0_53] : memref<10x10x128xf32, #tpu.memory_space<vmem>>, vector<8x8x128xf32>
    %74 = vector.shape_cast %73 : vector<8x8x128xf32> to vector<64x128xf32>
    %75 = arith.truncf %74 : vector<64x128xf32> to vector<64x128xbf16>
    %c6 = arith.constant 6 : index
    %c0_54 = arith.constant 0 : index
    %c0_55 = arith.constant 0 : index
    %76 = vector.load %arg4[%c6, %c0_54, %c0_55] : memref<9x128x128xbf16, #tpu.memory_space<vmem>>, vector<1x128x128xbf16>
    %77 = vector.shape_cast %76 : vector<1x128x128xbf16> to vector<128x128xbf16>
    %cst_56 = arith.constant dense<0.000000e+00> : vector<64x128xf32>
    %78 = tpu.matmul %75, %77, %cst_56 {dimension_numbers = #tpu.dot_dimension_numbers<[1], [0], [0], [1], [0, 0, 1, 1], [], []>} : vector<64x128xbf16>, vector<128x128xbf16>, vector<64x128xf32> -> vector<64x128xf32>
    %79 = arith.addf %72, %78 : vector<64x128xf32>
    %c2_57 = arith.constant 2 : index
    %c1_58 = arith.constant 1 : index
    %c0_59 = arith.constant 0 : index
    %80 = vector.load %arg7[%c2_57, %c1_58, %c0_59] : memref<10x10x128xf32, #tpu.memory_space<vmem>>, vector<8x8x128xf32>
    %81 = vector.shape_cast %80 : vector<8x8x128xf32> to vector<64x128xf32>
    %82 = arith.truncf %81 : vector<64x128xf32> to vector<64x128xbf16>
    %c7 = arith.constant 7 : index
    %c0_60 = arith.constant 0 : index
    %c0_61 = arith.constant 0 : index
    %83 = vector.load %arg4[%c7, %c0_60, %c0_61] : memref<9x128x128xbf16, #tpu.memory_space<vmem>>, vector<1x128x128xbf16>
    %84 = vector.shape_cast %83 : vector<1x128x128xbf16> to vector<128x128xbf16>
    %cst_62 = arith.constant dense<0.000000e+00> : vector<64x128xf32>
    %85 = tpu.matmul %82, %84, %cst_62 {dimension_numbers = #tpu.dot_dimension_numbers<[1], [0], [0], [1], [0, 0, 1, 1], [], []>} : vector<64x128xbf16>, vector<128x128xbf16>, vector<64x128xf32> -> vector<64x128xf32>
    %86 = arith.addf %79, %85 : vector<64x128xf32>
    %c2_63 = arith.constant 2 : index
    %c2_64 = arith.constant 2 : index
    %c0_65 = arith.constant 0 : index
    %87 = vector.load %arg7[%c2_63, %c2_64, %c0_65] : memref<10x10x128xf32, #tpu.memory_space<vmem>>, vector<8x8x128xf32>
    %88 = vector.shape_cast %87 : vector<8x8x128xf32> to vector<64x128xf32>
    %89 = arith.truncf %88 : vector<64x128xf32> to vector<64x128xbf16>
    %c8 = arith.constant 8 : index
    %c0_66 = arith.constant 0 : index
    %c0_67 = arith.constant 0 : index
    %90 = vector.load %arg4[%c8, %c0_66, %c0_67] : memref<9x128x128xbf16, #tpu.memory_space<vmem>>, vector<1x128x128xbf16>
    %91 = vector.shape_cast %90 : vector<1x128x128xbf16> to vector<128x128xbf16>
    %cst_68 = arith.constant dense<0.000000e+00> : vector<64x128xf32>
    %92 = tpu.matmul %89, %91, %cst_68 {dimension_numbers = #tpu.dot_dimension_numbers<[1], [0], [0], [1], [0, 0, 1, 1], [], []>} : vector<64x128xbf16>, vector<128x128xbf16>, vector<64x128xf32> -> vector<64x128xf32>
    %93 = arith.addf %86, %92 : vector<64x128xf32>
    %94 = vector.shape_cast %93 : vector<64x128xf32> to vector<1x64x128xf32>
    %c0_69 = arith.constant 0 : index
    %c0_70 = arith.constant 0 : index
    %c0_71 = arith.constant 0 : index
    %95 = vector.load %arg5[%c0_69, %c0_70, %c0_71] : memref<1x64x128xf32, #tpu.memory_space<vmem>>, vector<1x64x128xf32>
    tpu.vector_store %arg5[%c0_69, %c0_70, %c0_71], %94 {strides = array<i32>} : memref<1x64x128xf32, #tpu.memory_space<vmem>>, vector<1x64x128xf32>,
    %cst_72 = arith.constant dense<0.000000e+00> : vector<128xf32>
    %96 = vector.multi_reduction <add>, %93, %cst_72 [0] : vector<64x128xf32> to vector<128xf32>
    %97 = vector.shape_cast %96 : vector<128xf32> to vector<1x128xf32>
    %98 = arith.mulf %93, %93 : vector<64x128xf32>
    %cst_73 = arith.constant dense<0.000000e+00> : vector<128xf32>
    %99 = vector.multi_reduction <add>, %98, %cst_73 [0] : vector<64x128xf32> to vector<128xf32>
    %100 = vector.shape_cast %99 : vector<128xf32> to vector<1x128xf32>
    %101 = tpu.concatenate %97, %100 in 0 : vector<1x128xf32>, vector<1x128xf32> -> vector<2x128xf32>
    %102 = vector.shape_cast %101 : vector<2x128xf32> to vector<1x2x128xf32>
    %c0_74 = arith.constant 0 : index
    %c0_75 = arith.constant 0 : index
    %c0_76 = arith.constant 0 : index
    %103 = vector.load %arg6[%c0_74, %c0_75, %c0_76] : memref<1x2x128xf32, #tpu.memory_space<vmem>>, vector<1x2x128xf32>
    tpu.vector_store %arg6[%c0_74, %c0_75, %c0_76], %102 {strides = array<i32>} : memref<1x2x128xf32, #tpu.memory_space<vmem>>, vector<1x2x128xf32>,
    return
  }
  func.func @transform_0(%arg0: i32) -> (i32, i32, i32, i32) {
    %c0_i32 = arith.constant 0 : i32
    %c0_i32_0 = arith.constant 0 : i32
    %c0_i32_1 = arith.constant 0 : i32
    %c0_i32_2 = arith.constant 0 : i32
    return %arg0, %c0_i32, %c0_i32_0, %c0_i32_1 : i32, i32, i32, i32
  }
  func.func @transform_1(%arg0: i32) -> (i32, i32) {
    %c0_i32 = arith.constant 0 : i32
    %c0_i32_0 = arith.constant 0 : i32
    %c0_i32_1 = arith.constant 0 : i32
    return %c0_i32, %c0_i32_0 : i32, i32
  }
  func.func @transform_2(%arg0: i32) -> (i32, i32) {
    %c0_i32 = arith.constant 0 : i32
    %c0_i32_0 = arith.constant 0 : i32
    %c0_i32_1 = arith.constant 0 : i32
    return %c0_i32, %c0_i32_0 : i32, i32
  }
  func.func @transform_3(%arg0: i32) -> (i32, i32, i32) {
    %c0_i32 = arith.constant 0 : i32
    %c0_i32_0 = arith.constant 0 : i32
    %c0_i32_1 = arith.constant 0 : i32
    %c0_i32_2 = arith.constant 0 : i32
    return %c0_i32, %c0_i32_0, %c0_i32_1 : i32, i32, i32
  }
  func.func @transform_4(%arg0: i32) -> (i32, i32, i32) {
    %c0_i32 = arith.constant 0 : i32
    %c0_i32_0 = arith.constant 0 : i32
    %c0_i32_1 = arith.constant 0 : i32
    return %arg0, %c0_i32, %c0_i32_0 : i32, i32, i32
  }
  func.func @transform_5(%arg0: i32) -> (i32, i32, i32) {
    %c0_i32 = arith.constant 0 : i32
    %c0_i32_0 = arith.constant 0 : i32
    %c0_i32_1 = arith.constant 0 : i32
    return %arg0, %c0_i32, %c0_i32_0 : i32, i32, i32
  }
}

module attributes {stable_mosaic.version = 11 : i64} {
  func.func @stage3_kernel(%arg0: i32, %arg1: memref<64x128xf32, #tpu.memory_space<vmem>>, %arg2: memref<64x128xf32, #tpu.memory_space<vmem>>, %arg3: memref<1x128xf32, #tpu.memory_space<vmem>>, %arg4: memref<1x128xf32, #tpu.memory_space<vmem>>, %arg5: memref<1x128xf32, #tpu.memory_space<vmem>>, %arg6: memref<1x128xf32, #tpu.memory_space<vmem>>, %arg7: memref<64x128xf32, #tpu.memory_space<vmem>>) attributes {dimension_semantics = [#tpu.dimension_semantics<parallel>], iteration_bounds = array<i64: 2>, scalar_prefetch = 0 : i64, scratch_operands = 0 : i64, tpu.core_type = #tpu.core_type<tc>, window_params = [{transform_indices = @transform_0, window_bounds = array<i64: 64, 128>}, {transform_indices = @transform_1, window_bounds = array<i64: 64, 128>}, {pipeline_mode = #tpu.pipeline_mode<synchronous>, transform_indices = @transform_2, window_bounds = array<i64: 1, 128>}, {pipeline_mode = #tpu.pipeline_mode<synchronous>, transform_indices = @transform_3, window_bounds = array<i64: 1, 128>}, {pipeline_mode = #tpu.pipeline_mode<synchronous>, transform_indices = @transform_4, window_bounds = array<i64: 1, 128>}, {pipeline_mode = #tpu.pipeline_mode<synchronous>, transform_indices = @transform_5, window_bounds = array<i64: 1, 128>}, {transform_indices = @transform_6, window_bounds = array<i64: 64, 128>}]} {
    %c0 = arith.constant 0 : index
    %c0_0 = arith.constant 0 : index
    %0 = vector.load %arg1[%c0, %c0_0] : memref<64x128xf32, #tpu.memory_space<vmem>>, vector<64x128xf32>
    %c0_1 = arith.constant 0 : index
    %c0_2 = arith.constant 0 : index
    %1 = vector.load %arg3[%c0_1, %c0_2] : memref<1x128xf32, #tpu.memory_space<vmem>>, vector<1x128xf32>
    %2 = vector.broadcast %1 : vector<1x128xf32> to vector<64x128xf32>
    %3 = arith.mulf %0, %2 : vector<64x128xf32>
    %c0_3 = arith.constant 0 : index
    %c0_4 = arith.constant 0 : index
    %4 = vector.load %arg4[%c0_3, %c0_4] : memref<1x128xf32, #tpu.memory_space<vmem>>, vector<1x128xf32>
    %5 = vector.broadcast %4 : vector<1x128xf32> to vector<64x128xf32>
    %6 = arith.addf %3, %5 : vector<64x128xf32>
    %c0_5 = arith.constant 0 : index
    %c0_6 = arith.constant 0 : index
    %7 = vector.load %arg2[%c0_5, %c0_6] : memref<64x128xf32, #tpu.memory_space<vmem>>, vector<64x128xf32>
    %c0_7 = arith.constant 0 : index
    %c0_8 = arith.constant 0 : index
    %8 = vector.load %arg5[%c0_7, %c0_8] : memref<1x128xf32, #tpu.memory_space<vmem>>, vector<1x128xf32>
    %9 = vector.broadcast %8 : vector<1x128xf32> to vector<64x128xf32>
    %10 = arith.mulf %7, %9 : vector<64x128xf32>
    %c0_9 = arith.constant 0 : index
    %c0_10 = arith.constant 0 : index
    %11 = vector.load %arg6[%c0_9, %c0_10] : memref<1x128xf32, #tpu.memory_space<vmem>>, vector<1x128xf32>
    %12 = vector.broadcast %11 : vector<1x128xf32> to vector<64x128xf32>
    %13 = arith.addf %10, %12 : vector<64x128xf32>
    %14 = arith.addf %6, %13 : vector<64x128xf32>
    %cst = arith.constant 0.000000e+00 : f32
    %15 = vector.broadcast %cst : f32 to vector<64x128xf32>
    %16 = arith.maximumf %14, %15 : vector<64x128xf32>
    %c0_11 = arith.constant 0 : index
    %c0_12 = arith.constant 0 : index
    %17 = vector.load %arg7[%c0_11, %c0_12] : memref<64x128xf32, #tpu.memory_space<vmem>>, vector<64x128xf32>
    tpu.vector_store %arg7[%c0_11, %c0_12], %16 {strides = array<i32>} : memref<64x128xf32, #tpu.memory_space<vmem>>, vector<64x128xf32>,
    return
  }
  func.func @transform_0(%arg0: i32) -> (i32, i32) {
    %c0_i32 = arith.constant 0 : i32
    %c0_i32_0 = arith.constant 0 : i32
    return %arg0, %c0_i32 : i32, i32
  }
  func.func @transform_1(%arg0: i32) -> (i32, i32) {
    %c0_i32 = arith.constant 0 : i32
    %c0_i32_0 = arith.constant 0 : i32
    return %arg0, %c0_i32 : i32, i32
  }
  func.func @transform_2(%arg0: i32) -> (i32, i32) {
    %c0_i32 = arith.constant 0 : i32
    %c0_i32_0 = arith.constant 0 : i32
    %c0_i32_1 = arith.constant 0 : i32
    return %c0_i32, %c0_i32_0 : i32, i32
  }
  func.func @transform_3(%arg0: i32) -> (i32, i32) {
    %c0_i32 = arith.constant 0 : i32
    %c0_i32_0 = arith.constant 0 : i32
    %c0_i32_1 = arith.constant 0 : i32
    return %c0_i32, %c0_i32_0 : i32, i32
  }
  func.func @transform_4(%arg0: i32) -> (i32, i32) {
    %c0_i32 = arith.constant 0 : i32
    %c0_i32_0 = arith.constant 0 : i32
    %c0_i32_1 = arith.constant 0 : i32
    return %c0_i32, %c0_i32_0 : i32, i32
  }
  func.func @transform_5(%arg0: i32) -> (i32, i32) {
    %c0_i32 = arith.constant 0 : i32
    %c0_i32_0 = arith.constant 0 : i32
    %c0_i32_1 = arith.constant 0 : i32
    return %c0_i32, %c0_i32_0 : i32, i32
  }
  func.func @transform_6(%arg0: i32) -> (i32, i32) {
    %c0_i32 = arith.constant 0 : i32
    %c0_i32_0 = arith.constant 0 : i32
    return %arg0, %c0_i32 : i32, i32
  }
}

</mosaic_0001>

<llo_original>
// kernel: basic_block_forward.5
$region0: #{basic_block_forward.5}
  #allocation0 [shape = 'u32[]', space=smem, size = 0x4, offset = 0x4, fixed_abs, tag = 'smem constant byte address 0x4 - core index']
  #allocation1 [shape = 'u32[144,128]{1,0:T(1,128)}', space=vmem, size = 0x12000, scoped, tag = 'internal scratch']
  %s0 = inlined_call_operand.vmem [shape: f32[128,128], index: 0, kind: input, shape index: {}]
  %s1 = inlined_call_operand.vmem [shape: f32[128,128], index: 1, kind: input, shape index: {}]
  %s2 = inlined_call_operand.vmem [shape: f32[1,128], index: 2, kind: input, shape index: {}]
  %s3 = inlined_call_operand.vmem [shape: f32[1,128], index: 3, kind: input, shape index: {}]
  %s4 = inlined_call_operand.vmem [shape: f32[1,128], index: 4, kind: input, shape index: {}]
  %s5 = inlined_call_operand.vmem [shape: f32[1,128], index: 5, kind: input, shape index: {}]
  %s6 = inlined_call_operand.vmem [shape: f32[128,128], index: 6, kind: output, shape index: {}]
  %s7 = sld [smem:[#allocation0]]
  $region57: #{basic_block_forward.5} parent=0
    _
  %s9 = ssub.s32 1, %s7
  %s10 = scalar_select 0, %s9, %s7
  loop: start=0, step=1, limit=4
  $region2: #{basic_block_forward.5} parent=0 // loop_pre_header
    _
  $region3: #{basic_block_forward.5} parent=0 // loop_header
    %s12 = sphi 0, %s16
    %p13 = scmp.ge.s32.totalorder %s12, 4
    %s22 = sphi 0, %s24
    %s25 = sphi 0, %s22
    %s26 = sphi 0, %s25
    %s42 = sphi 0, %s26
    %s48 = sphi 0, %s50
    %s51 = sphi 0, %s48
    %s52 = sphi 0, %s51
    %s68 = sphi 0, %s52
    %s72 = sphi 0, %s72
    %s74 = sphi 0, %s72
    %s75 = sphi 0, %s74
    %s89 = sphi 0, %s75
    %s93 = sphi 0, %s93
    %s95 = sphi 0, %s93
    %s96 = sphi 0, %s95
    %s110 = sphi 0, %s96
    %s114 = sphi 0, %s114
    %s116 = sphi 0, %s114
    %s117 = sphi 0, %s116
    %s131 = sphi 0, %s117
    %s135 = sphi 0, %s135
    %s137 = sphi 0, %s135
    %s138 = sphi 0, %s137
    %s152 = sphi 0, %s138
    %s158 = sphi 0, %s160
    %s161 = sphi 0, %s158
    %s162 = sphi 0, %s161
    %s178 = sphi 0, %s162
  $region4: #{basic_block_forward.5} parent=0 // loop_header_branch
    %15 = sbr.rel (%p13) target = $region8
  $region5: #{basic_block_forward.5} parent=0 // loop_body
    %s17 = ssub.s32 %s12, 1
    %s18 = ssub.s32 %s12, 2
    %s19 = sadd.s32 %s12, 1
    %s20 = ssub.s32 %s12, %s19
    %p21 = scmp.eq.s32.totalorder %s20, 0
    %s23 = sadd.s32 %s22, 1
    %s24 = scalar_select %p21, %s22, %s23
    %p27 = pneg %p21
    %p28 = scmp.eq.s32.totalorder %s12, 1
    %p29 = por %p27, %p28
    %p30 = scmp.ne.s32.totalorder %s22, %s25
    %p31 = scmp.eq.s32.totalorder %s12, 0
    %p32 = por %p30, %p31
    %p33 = scmp.ne.s32.totalorder %s22, %s25
    %p34 = scmp.eq.s32.totalorder %s17, 1
    %p35 = por %p33, %p34
    %p36 = scmp.ne.s32.totalorder %s25, %s26
    %p37 = scmp.eq.s32.totalorder %s17, 0
    %p38 = por %p36, %p37
    %p39 = scmp.ne.s32.totalorder %s25, %s26
    %p40 = scmp.eq.s32.totalorder %s18, 1
    %p41 = por %p39, %p40
    %p43 = scmp.ne.s32.totalorder %s26, %s42
    %p44 = scmp.eq.s32.totalorder %s18, 0
    %p45 = por %p43, %p44
    %s46 = ssub.s32 %s12, %s19
    %p47 = scmp.eq.s32.totalorder %s46, 0
    %s49 = sadd.s32 %s48, 1
    %s50 = scalar_select %p47, %s48, %s49
    %p53 = pneg %p47
    %p54 = scmp.eq.s32.totalorder %s12, 1
    %p55 = por %p53, %p54
    %p56 = scmp.ne.s32.totalorder %s48, %s51
    %p57 = scmp.eq.s32.totalorder %s12, 0
    %p58 = por %p56, %p57
    %p59 = scmp.ne.s32.totalorder %s48, %s51
    %p60 = scmp.eq.s32.totalorder %s17, 1
    %p61 = por %p59, %p60
    %p62 = scmp.ne.s32.totalorder %s51, %s52
    %p63 = scmp.eq.s32.totalorder %s17, 0
    %p64 = por %p62, %p63
    %p65 = scmp.ne.s32.totalorder %s51, %s52
    %p66 = scmp.eq.s32.totalorder %s18, 1
    %p67 = por %p65, %p66
    %p69 = scmp.ne.s32.totalorder %s52, %s68
    %p70 = scmp.eq.s32.totalorder %s18, 0
    %p71 = por %p69, %p70
    %s73 = sadd.s32 %s72, 1
    %p76 = scmp.eq.s32.totalorder %s12, 1
    %p77 = scmp.ne.s32.totalorder %s72, %s74
    %p78 = scmp.eq.s32.totalorder %s12, 0
    %p79 = por %p77, %p78
    %p80 = scmp.ne.s32.totalorder %s72, %s74
    %p81 = scmp.eq.s32.totalorder %s17, 1
    %p82 = por %p80, %p81
    %p83 = scmp.ne.s32.totalorder %s74, %s75
    %p84 = scmp.eq.s32.totalorder %s17, 0
    %p85 = por %p83, %p84
    %p86 = scmp.ne.s32.totalorder %s74, %s75
    %p87 = scmp.eq.s32.totalorder %s18, 1
    %p88 = por %p86, %p87
    %p90 = scmp.ne.s32.totalorder %s75, %s89
    %p91 = scmp.eq.s32.totalorder %s18, 0
    %p92 = por %p90, %p91
    %s94 = sadd.s32 %s93, 1
    %p97 = scmp.eq.s32.totalorder %s12, 1
    %p98 = scmp.ne.s32.totalorder %s93, %s95
    %p99 = scmp.eq.s32.totalorder %s12, 0
    %p100 = por %p98, %p99
    %p101 = scmp.ne.s32.totalorder %s93, %s95
    %p102 = scmp.eq.s32.totalorder %s17, 1
    %p103 = por %p101, %p102
    %p104 = scmp.ne.s32.totalorder %s95, %s96
    %p105 = scmp.eq.s32.totalorder %s17, 0
    %p106 = por %p104, %p105
    %p107 = scmp.ne.s32.totalorder %s95, %s96
    %p108 = scmp.eq.s32.totalorder %s18, 1
    %p109 = por %p107, %p108
    %p111 = scmp.ne.s32.totalorder %s96, %s110
    %p112 = scmp.eq.s32.totalorder %s18, 0
    %p113 = por %p111, %p112
    %s115 = sadd.s32 %s114, 1
    %p118 = scmp.eq.s32.totalorder %s12, 1
    %p119 = scmp.ne.s32.totalorder %s114, %s116
    %p120 = scmp.eq.s32.totalorder %s12, 0
    %p121 = por %p119, %p120
    %p122 = scmp.ne.s32.totalorder %s114, %s116
    %p123 = scmp.eq.s32.totalorder %s17, 1
    %p124 = por %p122, %p123
    %p125 = scmp.ne.s32.totalorder %s116, %s117
    %p126 = scmp.eq.s32.totalorder %s17, 0
    %p127 = por %p125, %p126
    %p128 = scmp.ne.s32.totalorder %s116, %s117
    %p129 = scmp.eq.s32.totalorder %s18, 1
    %p130 = por %p128, %p129
    %p132 = scmp.ne.s32.totalorder %s117, %s131
    %p133 = scmp.eq.s32.totalorder %s18, 0
    %p134 = por %p132, %p133
    %s136 = sadd.s32 %s135, 1
    %p139 = scmp.eq.s32.totalorder %s12, 1
    %p140 = scmp.ne.s32.totalorder %s135, %s137
    %p141 = scmp.eq.s32.totalorder %s12, 0
    %p142 = por %p140, %p141
    %p143 = scmp.ne.s32.totalorder %s135, %s137
    %p144 = scmp.eq.s32.totalorder %s17, 1
    %p145 = por %p143, %p144
    %p146 = scmp.ne.s32.totalorder %s137, %s138
    %p147 = scmp.eq.s32.totalorder %s17, 0
    %p148 = por %p146, %p147
    %p149 = scmp.ne.s32.totalorder %s137, %s138
    %p150 = scmp.eq.s32.totalorder %s18, 1
    %p151 = por %p149, %p150
    %p153 = scmp.ne.s32.totalorder %s138, %s152
    %p154 = scmp.eq.s32.totalorder %s18, 0
    %p155 = por %p153, %p154
    %s156 = ssub.s32 %s12, %s19
    %p157 = scmp.eq.s32.totalorder %s156, 0
    %s159 = sadd.s32 %s158, 1
    %s160 = scalar_select %p157, %s158, %s159
    %p163 = pneg %p157
    %p164 = scmp.eq.s32.totalorder %s12, 1
    %p165 = por %p163, %p164
    %p166 = scmp.ne.s32.totalorder %s158, %s161
    %p167 = scmp.eq.s32.totalorder %s12, 0
    %p168 = por %p166, %p167
    %p169 = scmp.ne.s32.totalorder %s158, %s161
    %p170 = scmp.eq.s32.totalorder %s17, 1
    %p171 = por %p169, %p170
    %p172 = scmp.ne.s32.totalorder %s161, %s162
    %p173 = scmp.eq.s32.totalorder %s17, 0
    %p174 = por %p172, %p173
    %p175 = scmp.ne.s32.totalorder %s161, %s162
    %p176 = scmp.eq.s32.totalorder %s18, 1
    %p177 = por %p175, %p176
    %p179 = scmp.ne.s32.totalorder %s162, %s178
    %p180 = scmp.eq.s32.totalorder %s18, 0
    %p181 = por %p179, %p180
    %p182 = scmp.le.s32.totalorder 1, %s12
    %p183 = scmp.lt.s32.totalorder %s12, 3
    %p184 = pnand %p182, %p183
    %p185 = pneg %p184
    // Predicated region
    $region9: #{basic_block_forward.5} parent=5 // pred_check
      _
    $region10: #{basic_block_forward.5} parent=5 // pred_check_branch
      %187 = sbr.rel (%p184) target = $region12
    $region11: #{basic_block_forward.5} parent=5 // pred_region
      %s188 = ssub.s32 %s12, 1
      // Predicated region
      $region13: #{basic_block_forward.5} parent=11 // pred_check
        %p189 = pneg %p85
      $region14: #{basic_block_forward.5} parent=11 // pred_check_branch
        %191 = sbr.rel (%p189) target = $region16
      $region15: #{basic_block_forward.5} parent=11 // pred_region
        _
      $region16: #{basic_block_forward.5} parent=11 // pred_fallthru
        _
      // Predicated region
      $region17: #{basic_block_forward.5} parent=11 // pred_check
        %p192 = pneg %p106
      $region18: #{basic_block_forward.5} parent=11 // pred_check_branch
        %194 = sbr.rel (%p192) target = $region20
      $region19: #{basic_block_forward.5} parent=11 // pred_region
        _
      $region20: #{basic_block_forward.5} parent=11 // pred_fallthru
        _
      // Predicated region
      $region21: #{basic_block_forward.5} parent=11 // pred_check
        %p195 = pneg %p127
      $region22: #{basic_block_forward.5} parent=11 // pred_check_branch
        %197 = sbr.rel (%p195) target = $region24
      $region23: #{basic_block_forward.5} parent=11 // pred_region
        _
      $region24: #{basic_block_forward.5} parent=11 // pred_fallthru
        _
      // Predicated region
      $region25: #{basic_block_forward.5} parent=11 // pred_check
        %p198 = pneg %p148
      $region26: #{basic_block_forward.5} parent=11 // pred_check_branch
        %200 = sbr.rel (%p198) target = $region28
      $region27: #{basic_block_forward.5} parent=11 // pred_region
        _
      $region28: #{basic_block_forward.5} parent=11 // pred_fallthru
        _
    $region12: #{basic_block_forward.5} parent=5 // pred_fallthru
      _
    %p201 = scmp.lt.s32.totalorder %s12, 2
    // Predicated region
    $region29: #{basic_block_forward.5} parent=5 // pred_check
      %p202 = pneg %p201
    $region30: #{basic_block_forward.5} parent=5 // pred_check_branch
      %204 = sbr.rel (%p202) target = $region32
    $region31: #{basic_block_forward.5} parent=5 // pred_region
      // Predicated region
      $region33: #{basic_block_forward.5} parent=31 // pred_check
        %p205 = pneg %p32
      $region34: #{basic_block_forward.5} parent=31 // pred_check_branch
        %207 = sbr.rel (%p205) target = $region36
      $region35: #{basic_block_forward.5} parent=31 // pred_region
        %s208 = smul.u32 8, %s12
        %p209 = scmp.lt.s32.totalorder %s208, 15
        %s210 = scalar_select %p209, %s208, 15
        %s211 = smul.addr %s210, 8
        %s212 = scalar_lea.vmem %s0, %s211
        %s213 = smul.u32 8, %s12
      $region36: #{basic_block_forward.5} parent=31 // pred_fallthru
        _
      // Predicated region
      $region37: #{basic_block_forward.5} parent=31 // pred_check
        %p214 = pneg %p58
      $region38: #{basic_block_forward.5} parent=31 // pred_check_branch
        %216 = sbr.rel (%p214) target = $region40
      $region39: #{basic_block_forward.5} parent=31 // pred_region
        %s217 = smul.u32 8, %s12
        %p218 = scmp.lt.s32.totalorder %s217, 15
        %s219 = scalar_select %p218, %s217, 15
        %s220 = smul.addr %s219, 8
        %s221 = scalar_lea.vmem %s1, %s220
        %s222 = smul.u32 8, %s12
      $region40: #{basic_block_forward.5} parent=31 // pred_fallthru
        _
    $region32: #{basic_block_forward.5} parent=5 // pred_fallthru
      _
    %p223 = scmp.le.s32.totalorder 1, %s12
    %p224 = scmp.lt.s32.totalorder %s12, 3
    %p225 = pnand %p223, %p224
    %p226 = pneg %p225
    // Predicated region
    $region41: #{basic_block_forward.5} parent=5 // pred_check
      _
    $region42: #{basic_block_forward.5} parent=5 // pred_check_branch
      %228 = sbr.rel (%p225) target = $region44
    $region43: #{basic_block_forward.5} parent=5 // pred_region
      %s229 = ssub.s32 %s12, 1
      %s230 = smul.u32 8, %s17
      %p231 = scmp.lt.s32.totalorder %s230, 15
      %s232 = scalar_select %p231, %s230, 15
      %s233 = smul.addr %s232, 8
      %s234 = scalar_lea.vmem %s0, %s233
      %p235 = pneg %p38
      %p236 = pneg %p35
      %s237 = smul.u32 8, %s17
      %p238 = scmp.lt.s32.totalorder %s237, 15
      %s239 = scalar_select %p238, %s237, 15
      %s240 = smul.addr %s239, 8
      %s241 = scalar_lea.vmem %s1, %s240
      %p242 = pneg %p64
      %p243 = pneg %p61
      %p244 = pneg %p85
      %p245 = pneg %p82
      %p246 = pneg %p106
      %p247 = pneg %p103
      %p248 = pneg %p127
      %p249 = pneg %p124
      %p250 = pneg %p148
      %p251 = pneg %p145
      %p252 = pneg %p174
      %p253 = pneg %p171
      %s254 = smul.u32 8, %s17
      %p255 = scmp.lt.s32.totalorder %s254, 15
      %s256 = scalar_select %p255, %s254, 15
      %s257 = smul.addr %s256, 8
      %s258 = scalar_lea.vmem %s6, %s257
      %s259 = smul.u32 8, %s17
      %p260 = scmp.lt.s32.totalorder %s259, 15
      %s261 = scalar_select %p260, %s259, 15
      %s262 = smul.addr %s261, 8
      %s263 = scalar_lea.vmem %s0, %s262
      %s264 = smul.u32 8, %s17
      %s265 = smul.u32 8, %s17
      %p266 = scmp.lt.s32.totalorder %s265, 15
      %s267 = scalar_select %p266, %s265, 15
      %s268 = smul.addr %s267, 8
      %s269 = scalar_lea.vmem %s1, %s268
      %s270 = smul.u32 8, %s17
      %s271 = smul.u32 8, %s17
      %p272 = scmp.lt.s32.totalorder %s271, 15
      %s273 = scalar_select %p272, %s271, 15
      %s274 = smul.addr %s273, 8
      %s275 = scalar_lea.vmem %s6, %s274
      %s276 = smul.u32 8, %s17
      %v277 = vld [vmem:[%s263] sm:$0xff]
      %v278 = vld [vmem:[%s263 + $0x8] sm:$0xff]
      %v279 = vld [vmem:[%s263 + $0x10] sm:$0xff]
      %v280 = vld [vmem:[%s263 + $0x18] sm:$0xff]
      %v281 = vld [vmem:[%s263 + $0x20] sm:$0xff]
      %v282 = vld [vmem:[%s263 + $0x28] sm:$0xff]
      %v283 = vld [vmem:[%s263 + $0x30] sm:$0xff]
      %v284 = vld [vmem:[%s263 + $0x38] sm:$0xff]
      %v285 = vld [vmem:[%s2] sm:$0x1]
      %v287 = vlaneseq
      %v288 = vshrl.u32 %v287, 7
      %v289 = vsub.s32 0, %v288
      %v290 = vrot.slane %v285, %v289
      %v292 = vmul.f32 %v277, %v290
      %v293 = vmul.f32 %v278, %v290
      %v294 = vmul.f32 %v279, %v290
      %v295 = vmul.f32 %v280, %v290
      %v296 = vmul.f32 %v281, %v290
      %v297 = vmul.f32 %v282, %v290
      %v298 = vmul.f32 %v283, %v290
      %v299 = vmul.f32 %v284, %v290
      %v300 = vld [vmem:[%s3] sm:$0x1]
      %v302 = vlaneseq
      %v303 = vshrl.u32 %v302, 7
      %v304 = vsub.s32 0, %v303
      %v305 = vrot.slane %v300, %v304
      %v307 = vadd.f32 %v292, %v305
      %v308 = vadd.f32 %v293, %v305
      %v309 = vadd.f32 %v294, %v305
      %v310 = vadd.f32 %v295, %v305
      %v311 = vadd.f32 %v296, %v305
      %v312 = vadd.f32 %v297, %v305
      %v313 = vadd.f32 %v298, %v305
      %v314 = vadd.f32 %v299, %v305
      %v315 = vld [vmem:[%s269] sm:$0xff]
      %v316 = vld [vmem:[%s269 + $0x8] sm:$0xff]
      %v317 = vld [vmem:[%s269 + $0x10] sm:$0xff]
      %v318 = vld [vmem:[%s269 + $0x18] sm:$0xff]
      %v319 = vld [vmem:[%s269 + $0x20] sm:$0xff]
      %v320 = vld [vmem:[%s269 + $0x28] sm:$0xff]
      %v321 = vld [vmem:[%s269 + $0x30] sm:$0xff]
      %v322 = vld [vmem:[%s269 + $0x38] sm:$0xff]
      %v323 = vld [vmem:[%s4] sm:$0x1]
      %v325 = vlaneseq
      %v326 = vshrl.u32 %v325, 7
      %v327 = vsub.s32 0, %v326
      %v328 = vrot.slane %v323, %v327
      %v330 = vmul.f32 %v315, %v328
      %v331 = vmul.f32 %v316, %v328
      %v332 = vmul.f32 %v317, %v328
      %v333 = vmul.f32 %v318, %v328
      %v334 = vmul.f32 %v319, %v328
      %v335 = vmul.f32 %v320, %v328
      %v336 = vmul.f32 %v321, %v328
      %v337 = vmul.f32 %v322, %v328
      %v338 = vld [vmem:[%s5] sm:$0x1]
      %v340 = vlaneseq
      %v341 = vshrl.u32 %v340, 7
      %v342 = vsub.s32 0, %v341
      %v343 = vrot.slane %v338, %v342
      %v345 = vadd.f32 %v330, %v343
      %v346 = vadd.f32 %v331, %v343
      %v347 = vadd.f32 %v332, %v343
      %v348 = vadd.f32 %v333, %v343
      %v349 = vadd.f32 %v334, %v343
      %v350 = vadd.f32 %v335, %v343
      %v351 = vadd.f32 %v336, %v343
      %v352 = vadd.f32 %v337, %v343
      %v353 = vadd.f32 %v307, %v345
      %v354 = vadd.f32 %v308, %v346
      %v355 = vadd.f32 %v309, %v347
      %v356 = vadd.f32 %v310, %v348
      %v357 = vadd.f32 %v311, %v349
      %v358 = vadd.f32 %v312, %v350
      %v359 = vadd.f32 %v313, %v351
      %v360 = vadd.f32 %v314, %v352
      %v361 = vmax.f32 %v353, 0.0
      %v362 = vmax.f32 %v354, 0.0
      %v363 = vmax.f32 %v355, 0.0
      %v364 = vmax.f32 %v356, 0.0
      %v365 = vmax.f32 %v357, 0.0
      %v366 = vmax.f32 %v358, 0.0
      %v367 = vmax.f32 %v359, 0.0
      %v368 = vmax.f32 %v360, 0.0
      %369 = vst [vmem:[%s275] sm:$0xff] %v361
      %370 = vst [vmem:[%s275 + $0x8] sm:$0xff] %v362
      %371 = vst [vmem:[%s275 + $0x10] sm:$0xff] %v363
      %372 = vst [vmem:[%s275 + $0x18] sm:$0xff] %v364
      %373 = vst [vmem:[%s275 + $0x20] sm:$0xff] %v365
      %374 = vst [vmem:[%s275 + $0x28] sm:$0xff] %v366
      %375 = vst [vmem:[%s275 + $0x30] sm:$0xff] %v367
      %376 = vst [vmem:[%s275 + $0x38] sm:$0xff] %v368
      %s377 = smul.u32 8, %s17
      %p378 = scmp.lt.s32.totalorder %s377, 15
      %s379 = scalar_select %p378, %s377, 15
      %s380 = smul.addr %s379, 8
      %s381 = scalar_lea.vmem %s6, %s380
      // Predicated region
      $region45: #{basic_block_forward.5} parent=43 // pred_check
        %p382 = pneg %p171
      $region46: #{basic_block_forward.5} parent=43 // pred_check_branch
        %384 = sbr.rel (%p382) target = $region48
      $region47: #{basic_block_forward.5} parent=43 // pred_region
        %s385 = smul.u32 8, %s17
      $region48: #{basic_block_forward.5} parent=43 // pred_fallthru
        _
    $region44: #{basic_block_forward.5} parent=5 // pred_fallthru
      _
    %p386 = scmp.le.s32.totalorder 2, %s12
    // Predicated region
    $region49: #{basic_block_forward.5} parent=5 // pred_check
      %p387 = pneg %p386
    $region50: #{basic_block_forward.5} parent=5 // pred_check_branch
      %389 = sbr.rel (%p387) target = $region52
    $region51: #{basic_block_forward.5} parent=5 // pred_region
      %s390 = ssub.s32 %s12, 2
      // Predicated region
      $region53: #{basic_block_forward.5} parent=51 // pred_check
        %p391 = pneg %p177
      $region54: #{basic_block_forward.5} parent=51 // pred_check_branch
        %393 = sbr.rel (%p391) target = $region56
      $region55: #{basic_block_forward.5} parent=51 // pred_region
        %s394 = smul.u32 8, %s18
        %p395 = scmp.lt.s32.totalorder %s394, 15
        %s396 = scalar_select %p395, %s394, 15
        %s397 = smul.addr %s396, 8
        %s398 = scalar_lea.vmem %s6, %s397
      $region56: #{basic_block_forward.5} parent=51 // pred_fallthru
        _
    $region52: #{basic_block_forward.5} parent=5 // pred_fallthru
      _
  $region6: #{basic_block_forward.5} parent=0 // loop_footer
    %s16 = sadd.s32 1, %s12
  $region7: #{basic_block_forward.5} parent=0 // loop_footer_branch
    %11 = sbr.rel target = $region3
  $region8: #{basic_block_forward.5} parent=0 // loop_exit
    _

// kernel: basic_block_forward.3
$region0: #{basic_block_forward.3}
  #allocation0 [shape = 'u32[]', space=smem, size = 0x4, offset = 0x4, fixed_abs, tag = 'smem constant byte address 0x4 - core index']
  #allocation1 [shape = 'u32[144,128]{1,0:T(1,128)}', space=vmem, size = 0x12000, scoped, tag = 'internal scratch']
  %s0 = inlined_call_operand.vmem [shape: bf16[128,36], index: 0, kind: input, shape index: {}]
  %s1 = inlined_call_operand.vmem [shape: bf16[128,4], index: 1, kind: input, shape index: {}]
  %s2 = inlined_call_operand.vmem [shape: bf16[36,128], index: 2, kind: input, shape index: {}]
  %s3 = inlined_call_operand.vmem [shape: bf16[4,128], index: 3, kind: input, shape index: {}]
  %s4 = inlined_call_operand.vmem [shape: f32[128,128], index: 4, kind: output, shape index: {0}]
  %s5 = inlined_call_operand.vmem [shape: f32[128,128], index: 5, kind: output, shape index: {1}]
  %s6 = inlined_call_operand.vmem [shape: f32[2,2,128], index: 6, kind: output, shape index: {2}]
  %s7 = inlined_call_operand.vmem [shape: f32[2,2,128], index: 7, kind: output, shape index: {3}]
  %8 = xla_tuple %s4, %s5, %s6, %s7
  %s9 = sld [smem:[#allocation0]]
  $region73: #{basic_block_forward.3} parent=0
    _
  %s11 = ssub.s32 1, %s9
  %s12 = scalar_select 0, %s11, %s9
  loop: start=0, step=1, limit=4
  $region2: #{basic_block_forward.3} parent=0 // loop_pre_header
    _
  $region3: #{basic_block_forward.3} parent=0 // loop_header
    %s14 = sphi 0, %s18
    %p15 = scmp.ge.s32.totalorder %s14, 4
    %s24 = sphi 0, %s26
    %s27 = sphi 0, %s24
    %s28 = sphi 0, %s27
    %s44 = sphi 0, %s28
    %s50 = sphi 0, %s52
    %s53 = sphi 0, %s50
    %s54 = sphi 0, %s53
    %s70 = sphi 0, %s54
    %s74 = sphi 0, %s74
    %s76 = sphi 0, %s74
    %s77 = sphi 0, %s76
    %s91 = sphi 0, %s77
    %s95 = sphi 0, %s95
    %s97 = sphi 0, %s95
    %s98 = sphi 0, %s97
    %s112 = sphi 0, %s98
    %s118 = sphi 0, %s120
    %s121 = sphi 0, %s118
    %s122 = sphi 0, %s121
    %s138 = sphi 0, %s122
    %s144 = sphi 0, %s146
    %s147 = sphi 0, %s144
    %s148 = sphi 0, %s147
    %s164 = sphi 0, %s148
    %s170 = sphi 0, %s172
    %s173 = sphi 0, %s170
    %s174 = sphi 0, %s173
    %s190 = sphi 0, %s174
    %s196 = sphi 0, %s198
    %s199 = sphi 0, %s196
    %s200 = sphi 0, %s199
    %s216 = sphi 0, %s200
  $region4: #{basic_block_forward.3} parent=0 // loop_header_branch
    %17 = sbr.rel (%p15) target = $region8
  $region5: #{basic_block_forward.3} parent=0 // loop_body
    %s19 = ssub.s32 %s14, 1
    %s20 = ssub.s32 %s14, 2
    %s21 = sadd.s32 %s14, 1
    %s22 = ssub.s32 %s14, %s21
    %p23 = scmp.eq.s32.totalorder %s22, 0
    %s25 = sadd.s32 %s24, 1
    %s26 = scalar_select %p23, %s24, %s25
    %p29 = pneg %p23
    %p30 = scmp.eq.s32.totalorder %s14, 1
    %p31 = por %p29, %p30
    %p32 = scmp.ne.s32.totalorder %s24, %s27
    %p33 = scmp.eq.s32.totalorder %s14, 0
    %p34 = por %p32, %p33
    %p35 = scmp.ne.s32.totalorder %s24, %s27
    %p36 = scmp.eq.s32.totalorder %s19, 1
    %p37 = por %p35, %p36
    %p38 = scmp.ne.s32.totalorder %s27, %s28
    %p39 = scmp.eq.s32.totalorder %s19, 0
    %p40 = por %p38, %p39
    %p41 = scmp.ne.s32.totalorder %s27, %s28
    %p42 = scmp.eq.s32.totalorder %s20, 1
    %p43 = por %p41, %p42
    %p45 = scmp.ne.s32.totalorder %s28, %s44
    %p46 = scmp.eq.s32.totalorder %s20, 0
    %p47 = por %p45, %p46
    %s48 = ssub.s32 %s14, %s21
    %p49 = scmp.eq.s32.totalorder %s48, 0
    %s51 = sadd.s32 %s50, 1
    %s52 = scalar_select %p49, %s50, %s51
    %p55 = pneg %p49
    %p56 = scmp.eq.s32.totalorder %s14, 1
    %p57 = por %p55, %p56
    %p58 = scmp.ne.s32.totalorder %s50, %s53
    %p59 = scmp.eq.s32.totalorder %s14, 0
    %p60 = por %p58, %p59
    %p61 = scmp.ne.s32.totalorder %s50, %s53
    %p62 = scmp.eq.s32.totalorder %s19, 1
    %p63 = por %p61, %p62
    %p64 = scmp.ne.s32.totalorder %s53, %s54
    %p65 = scmp.eq.s32.totalorder %s19, 0
    %p66 = por %p64, %p65
    %p67 = scmp.ne.s32.totalorder %s53, %s54
    %p68 = scmp.eq.s32.totalorder %s20, 1
    %p69 = por %p67, %p68
    %p71 = scmp.ne.s32.totalorder %s54, %s70
    %p72 = scmp.eq.s32.totalorder %s20, 0
    %p73 = por %p71, %p72
    %s75 = sadd.s32 %s74, 1
    %p78 = scmp.eq.s32.totalorder %s14, 1
    %p79 = scmp.ne.s32.totalorder %s74, %s76
    %p80 = scmp.eq.s32.totalorder %s14, 0
    %p81 = por %p79, %p80
    %p82 = scmp.ne.s32.totalorder %s74, %s76
    %p83 = scmp.eq.s32.totalorder %s19, 1
    %p84 = por %p82, %p83
    %p85 = scmp.ne.s32.totalorder %s76, %s77
    %p86 = scmp.eq.s32.totalorder %s19, 0
    %p87 = por %p85, %p86
    %p88 = scmp.ne.s32.totalorder %s76, %s77
    %p89 = scmp.eq.s32.totalorder %s20, 1
    %p90 = por %p88, %p89
    %p92 = scmp.ne.s32.totalorder %s77, %s91
    %p93 = scmp.eq.s32.totalorder %s20, 0
    %p94 = por %p92, %p93
    %s96 = sadd.s32 %s95, 1
    %p99 = scmp.eq.s32.totalorder %s14, 1
    %p100 = scmp.ne.s32.totalorder %s95, %s97
    %p101 = scmp.eq.s32.totalorder %s14, 0
    %p102 = por %p100, %p101
    %p103 = scmp.ne.s32.totalorder %s95, %s97
    %p104 = scmp.eq.s32.totalorder %s19, 1
    %p105 = por %p103, %p104
    %p106 = scmp.ne.s32.totalorder %s97, %s98
    %p107 = scmp.eq.s32.totalorder %s19, 0
    %p108 = por %p106, %p107
    %p109 = scmp.ne.s32.totalorder %s97, %s98
    %p110 = scmp.eq.s32.totalorder %s20, 1
    %p111 = por %p109, %p110
    %p113 = scmp.ne.s32.totalorder %s98, %s112
    %p114 = scmp.eq.s32.totalorder %s20, 0
    %p115 = por %p113, %p114
    %s116 = ssub.s32 %s14, %s21
    %p117 = scmp.eq.s32.totalorder %s116, 0
    %s119 = sadd.s32 %s118, 1
    %s120 = scalar_select %p117, %s118, %s119
    %p123 = pneg %p117
    %p124 = scmp.eq.s32.totalorder %s14, 1
    %p125 = por %p123, %p124
    %p126 = scmp.ne.s32.totalorder %s118, %s121
    %p127 = scmp.eq.s32.totalorder %s14, 0
    %p128 = por %p126, %p127
    %p129 = scmp.ne.s32.totalorder %s118, %s121
    %p130 = scmp.eq.s32.totalorder %s19, 1
    %p131 = por %p129, %p130
    %p132 = scmp.ne.s32.totalorder %s121, %s122
    %p133 = scmp.eq.s32.totalorder %s19, 0
    %p134 = por %p132, %p133
    %p135 = scmp.ne.s32.totalorder %s121, %s122
    %p136 = scmp.eq.s32.totalorder %s20, 1
    %p137 = por %p135, %p136
    %p139 = scmp.ne.s32.totalorder %s122, %s138
    %p140 = scmp.eq.s32.totalorder %s20, 0
    %p141 = por %p139, %p140
    %s142 = ssub.s32 %s14, %s21
    %p143 = scmp.eq.s32.totalorder %s142, 0
    %s145 = sadd.s32 %s144, 1
    %s146 = scalar_select %p143, %s144, %s145
    %p149 = pneg %p143
    %p150 = scmp.eq.s32.totalorder %s14, 1
    %p151 = por %p149, %p150
    %p152 = scmp.ne.s32.totalorder %s144, %s147
    %p153 = scmp.eq.s32.totalorder %s14, 0
    %p154 = por %p152, %p153
    %p155 = scmp.ne.s32.totalorder %s144, %s147
    %p156 = scmp.eq.s32.totalorder %s19, 1
    %p157 = por %p155, %p156
    %p158 = scmp.ne.s32.totalorder %s147, %s148
    %p159 = scmp.eq.s32.totalorder %s19, 0
    %p160 = por %p158, %p159
    %p161 = scmp.ne.s32.totalorder %s147, %s148
    %p162 = scmp.eq.s32.totalorder %s20, 1
    %p163 = por %p161, %p162
    %p165 = scmp.ne.s32.totalorder %s148, %s164
    %p166 = scmp.eq.s32.totalorder %s20, 0
    %p167 = por %p165, %p166
    %s168 = ssub.s32 %s14, %s21
    %p169 = scmp.eq.s32.totalorder %s168, 0
    %s171 = sadd.s32 %s170, 1
    %s172 = scalar_select %p169, %s170, %s171
    %p175 = pneg %p169
    %p176 = scmp.eq.s32.totalorder %s14, 1
    %p177 = por %p175, %p176
    %p178 = scmp.ne.s32.totalorder %s170, %s173
    %p179 = scmp.eq.s32.totalorder %s14, 0
    %p180 = por %p178, %p179
    %p181 = scmp.ne.s32.totalorder %s170, %s173
    %p182 = scmp.eq.s32.totalorder %s19, 1
    %p183 = por %p181, %p182
    %p184 = scmp.ne.s32.totalorder %s173, %s174
    %p185 = scmp.eq.s32.totalorder %s19, 0
    %p186 = por %p184, %p185
    %p187 = scmp.ne.s32.totalorder %s173, %s174
    %p188 = scmp.eq.s32.totalorder %s20, 1
    %p189 = por %p187, %p188
    %p191 = scmp.ne.s32.totalorder %s174, %s190
    %p192 = scmp.eq.s32.totalorder %s20, 0
    %p193 = por %p191, %p192
    %s194 = ssub.s32 %s14, %s21
    %p195 = scmp.eq.s32.totalorder %s194, 0
    %s197 = sadd.s32 %s196, 1
    %s198 = scalar_select %p195, %s196, %s197
    %p201 = pneg %p195
    %p202 = scmp.eq.s32.totalorder %s14, 1
    %p203 = por %p201, %p202
    %p204 = scmp.ne.s32.totalorder %s196, %s199
    %p205 = scmp.eq.s32.totalorder %s14, 0
    %p206 = por %p204, %p205
    %p207 = scmp.ne.s32.totalorder %s196, %s199
    %p208 = scmp.eq.s32.totalorder %s19, 1
    %p209 = por %p207, %p208
    %p210 = scmp.ne.s32.totalorder %s199, %s200
    %p211 = scmp.eq.s32.totalorder %s19, 0
    %p212 = por %p210, %p211
    %p213 = scmp.ne.s32.totalorder %s199, %s200
    %p214 = scmp.eq.s32.totalorder %s20, 1
    %p215 = por %p213, %p214
    %p217 = scmp.ne.s32.totalorder %s200, %s216
    %p218 = scmp.eq.s32.totalorder %s20, 0
    %p219 = por %p217, %p218
    %p220 = scmp.le.s32.totalorder 1, %s14
    %p221 = scmp.lt.s32.totalorder %s14, 3
    %p222 = pnand %p220, %p221
    %p223 = pneg %p222
    // Predicated region
    $region9: #{basic_block_forward.3} parent=5 // pred_check
      _
    $region10: #{basic_block_forward.3} parent=5 // pred_check_branch
      %225 = sbr.rel (%p222) target = $region12
    $region11: #{basic_block_forward.3} parent=5 // pred_region
      %s226 = ssub.s32 %s14, 1
      // Predicated region
      $region13: #{basic_block_forward.3} parent=11 // pred_check
        %p227 = pneg %p87
      $region14: #{basic_block_forward.3} parent=11 // pred_check_branch
        %229 = sbr.rel (%p227) target = $region16
      $region15: #{basic_block_forward.3} parent=11 // pred_region
        _
      $region16: #{basic_block_forward.3} parent=11 // pred_fallthru
        _
      // Predicated region
      $region17: #{basic_block_forward.3} parent=11 // pred_check
        %p230 = pneg %p108
      $region18: #{basic_block_forward.3} parent=11 // pred_check_branch
        %232 = sbr.rel (%p230) target = $region20
      $region19: #{basic_block_forward.3} parent=11 // pred_region
        _
      $region20: #{basic_block_forward.3} parent=11 // pred_fallthru
        _
    $region12: #{basic_block_forward.3} parent=5 // pred_fallthru
      _
    %p233 = scmp.lt.s32.totalorder %s14, 2
    // Predicated region
    $region21: #{basic_block_forward.3} parent=5 // pred_check
      %p234 = pneg %p233
    $region22: #{basic_block_forward.3} parent=5 // pred_check_branch
      %236 = sbr.rel (%p234) target = $region24
    $region23: #{basic_block_forward.3} parent=5 // pred_region
      // Predicated region
      $region25: #{basic_block_forward.3} parent=23 // pred_check
        %p237 = pneg %p34
      $region26: #{basic_block_forward.3} parent=23 // pred_check_branch
        %239 = sbr.rel (%p237) target = $region28
      $region27: #{basic_block_forward.3} parent=23 // pred_region
        %s240 = smul.u32 8, %s14
        %p241 = scmp.lt.s32.totalorder %s240, 15
        %s242 = scalar_select %p241, %s240, 15
        %s243 = smul.addr %s242, 4
        %s244 = scalar_lea.vmem %s0, %s243
        %s245 = smul.u32 8, %s14
      $region28: #{basic_block_forward.3} parent=23 // pred_fallthru
        _
      // Predicated region
      $region29: #{basic_block_forward.3} parent=23 // pred_check
        %p246 = pneg %p60
      $region30: #{basic_block_forward.3} parent=23 // pred_check_branch
        %248 = sbr.rel (%p246) target = $region32
      $region31: #{basic_block_forward.3} parent=23 // pred_region
        %s249 = smul.u32 8, %s14
        %p250 = scmp.lt.s32.totalorder %s249, 15
        %s251 = scalar_select %p250, %s249, 15
        %s252 = smul.addr %s251, 4
        %s253 = scalar_lea.vmem %s1, %s252
        %s254 = smul.u32 8, %s14
      $region32: #{basic_block_forward.3} parent=23 // pred_fallthru
        _
    $region24: #{basic_block_forward.3} parent=5 // pred_fallthru
      _
    %p255 = scmp.le.s32.totalorder 1, %s14
    %p256 = scmp.lt.s32.totalorder %s14, 3
    %p257 = pnand %p255, %p256
    %p258 = pneg %p257
    // Predicated region
    $region33: #{basic_block_forward.3} parent=5 // pred_check
      _
    $region34: #{basic_block_forward.3} parent=5 // pred_check_branch
      %260 = sbr.rel (%p257) target = $region36
    $region35: #{basic_block_forward.3} parent=5 // pred_region
      %s261 = ssub.s32 %s14, 1
      %s262 = smul.u32 8, %s19
      %p263 = scmp.lt.s32.totalorder %s262, 15
      %s264 = scalar_select %p263, %s262, 15
      %s265 = smul.addr %s264, 4
      %s266 = scalar_lea.vmem %s0, %s265
      %p267 = pneg %p40
      %p268 = pneg %p37
      %s269 = smul.u32 8, %s19
      %p270 = scmp.lt.s32.totalorder %s269, 15
      %s271 = scalar_select %p270, %s269, 15
      %s272 = smul.addr %s271, 4
      %s273 = scalar_lea.vmem %s1, %s272
      %p274 = pneg %p66
      %p275 = pneg %p63
      %p276 = pneg %p87
      %p277 = pneg %p84
      %p278 = pneg %p108
      %p279 = pneg %p105
      %p280 = pneg %p134
      %p281 = pneg %p131
      %s282 = smul.u32 8, %s19
      %p283 = scmp.lt.s32.totalorder %s282, 15
      %s284 = scalar_select %p283, %s282, 15
      %s285 = smul.addr %s284, 8
      %s286 = scalar_lea.vmem %s4, %s285
      %p287 = pneg %p160
      %p288 = pneg %p157
      %s289 = smul.u32 8, %s19
      %p290 = scmp.lt.s32.totalorder %s289, 15
      %s291 = scalar_select %p290, %s289, 15
      %s292 = smul.addr %s291, 8
      %s293 = scalar_lea.vmem %s5, %s292
      %p294 = pneg %p186
      %p295 = pneg %p183
      %p296 = scmp.lt.s32.totalorder %s19, 1
      %s297 = scalar_select %p296, %s19, 1
      %s298 = smul.addr %s297, 2
      %s299 = scalar_lea.vmem %s6, %s298
      %p300 = pneg %p212
      %p301 = pneg %p209
      %p302 = scmp.lt.s32.totalorder %s19, 1
      %s303 = scalar_select %p302, %s19, 1
      %s304 = smul.addr %s303, 2
      %s305 = scalar_lea.vmem %s7, %s304
      %s306 = smul.u32 8, %s19
      %p307 = scmp.lt.s32.totalorder %s306, 15
      %s308 = scalar_select %p307, %s306, 15
      %s309 = smul.addr %s308, 4
      %s310 = scalar_lea.vmem %s0, %s309
      %s311 = smul.u32 8, %s19
      %s312 = smul.u32 8, %s19
      %p313 = scmp.lt.s32.totalorder %s312, 15
      %s314 = scalar_select %p313, %s312, 15
      %s315 = smul.addr %s314, 4
      %s316 = scalar_lea.vmem %s1, %s315
      %s317 = smul.u32 8, %s19
      %s318 = smul.u32 8, %s19
      %p319 = scmp.lt.s32.totalorder %s318, 15
      %s320 = scalar_select %p319, %s318, 15
      %s321 = smul.addr %s320, 8
      %s322 = scalar_lea.vmem %s4, %s321
      %s323 = smul.u32 8, %s19
      %s324 = smul.u32 8, %s19
      %p325 = scmp.lt.s32.totalorder %s324, 15
      %s326 = scalar_select %p325, %s324, 15
      %s327 = smul.addr %s326, 8
      %s328 = scalar_lea.vmem %s5, %s327
      %s329 = smul.u32 8, %s19
      %p330 = scmp.lt.s32.totalorder %s19, 1
      %s331 = scalar_select %p330, %s19, 1
      %s332 = smul.addr %s331, 2
      %s333 = scalar_lea.vmem %s6, %s332
      %p334 = scmp.lt.s32.totalorder %s19, 1
      %s335 = scalar_select %p334, %s19, 1
      %s336 = smul.addr %s335, 2
      %s337 = scalar_lea.vmem %s7, %s336
      %v339 = vld [vmem:[%s310] sm:$0xf]
      %v340 = vld [vmem:[%s310 + $0x4] sm:$0xf]
      %v341 = vld [vmem:[%s310 + $0x8] sm:$0xf]
      %v342 = vld [vmem:[%s310 + $0xc] sm:$0xf]
      %v343 = vld [vmem:[%s310 + $0x10] sm:$0xf]
      %v344 = vld [vmem:[%s310 + $0x14] sm:$0xf]
      %v345 = vld [vmem:[%s310 + $0x18] sm:$0xf]
      %v346 = vld [vmem:[%s310 + $0x1c] sm:$0xf]
      %v347 = vld [vmem:[%s2] sm:$0xf]
      %v348 = vld [vmem:[%s2 + $0x4] sm:$0xf]
      %v349 = vld [vmem:[%s2 + $0x8] sm:$0xf]
      %v350 = vld [vmem:[%s2 + $0xc] sm:$0xf]
      %v351 = vld [vmem:[%s2 + $0x10] sm:$0x3]
      %v360 = vunpack.c.l.b16 %v339
      %v361 = vunpack.c.l.b16 %v340
      %v362 = vunpack.c.l.b16 %v341
      %v363 = vunpack.c.l.b16 %v342
      %v364 = vunpack.c.l.b16 %v343
      %v365 = vunpack.c.l.b16 %v344
      %v366 = vunpack.c.l.b16 %v345
      %v367 = vunpack.c.l.b16 %v346
      %v368 = vpack.c.b16 %v361, %v360
      %v369 = vpack.c.b16 %v363, %v362
      %v370 = vpack.c.b16 %v365, %v364
      %v371 = vpack.c.b16 %v367, %v366
      %v377 = vunpack.c.l.b16 %v347
      %v378 = vunpack.c.l.b16 %v348
      %v379 = vunpack.c.l.b16 %v349
      %v380 = vunpack.c.l.b16 %v350
      %v381 = vunpack.c.l.b16 %v351
      %v382 = vpack.c.b16 %v378, %v377
      %v383 = vpack.c.b16 %v380, %v379
      %v384 = vpack.c.b16 %v381, %v381
      %vm387 = vcmask 293888
      %v389 = vsel %vm387, %v368, 0
      %v392 = vsel %vm387, %v369, 0
      %v395 = vsel %vm387, %v370, 0
      %v398 = vsel %vm387, %v371, 0
      %vm400 = vcmask 1041408
      %v402 = vsel %vm400, %v384, 0
      %404 = vmatprep.subr.bf16.mxu0 0
      %405 = vmatpush1.bf16.msra.mxu0 %v382
      %406 = vmatprep.subr.bf16.mxu0 0
      %407 = vmatpush1.bf16.msra.mxu0 %v383
      %408 = vmatprep.subr.bf16.mxu0 0
      %409 = vmatpush1.bf16.msra.mxu0 %v402
      %410 = vmatprep.subr.bf16.mxu0 0
      %411 = vmatpush1.bf16.msra.mxu0 0
      %412 = vmatprep.subr.bf16.mxu0 0
      %413 = vmatpush1.bf16.msra.mxu0 0
      %414 = vmatprep.subr.bf16.mxu0 0
      %415 = vmatpush1.bf16.msra.mxu0 0
      %416 = vmatprep.subr.bf16.mxu0 0
      %417 = vmatpush1.bf16.msra.mxu0 0
      %418 = vmatprep.subr.bf16.mxu0 0
      %419 = vmatpush1.bf16.msra.mxu0 0
      %420 = vmatprep.subr.bf16.mxu0 0
      %421 = vmatpush1.bf16.msra.mxu0 0
      %422 = vmatprep.subr.bf16.mxu0 0
      %423 = vmatpush1.bf16.msra.mxu0 0
      %424 = vmatprep.subr.bf16.mxu0 0
      %425 = vmatpush1.bf16.msra.mxu0 0
      %426 = vmatprep.subr.bf16.mxu0 0
      %427 = vmatpush1.bf16.msra.mxu0 0
      %428 = vmatprep.subr.bf16.mxu0 0
      %429 = vmatpush1.bf16.msra.mxu0 0
      %430 = vmatprep.subr.bf16.mxu0 0
      %431 = vmatpush1.bf16.msra.mxu0 0
      %432 = vmatprep.subr.bf16.mxu0 0
      %433 = vmatpush1.bf16.msra.mxu0 0
      %434 = vmatprep.subr.bf16.mxu0 0
      %435 = vmatpush1.bf16.msra.mxu0 0
      %436 = vmatprep.mubr.bf16.mxu0 0
      %437 = vmatmul.mubr.bf16.gmra.mrb[0].mxu0 %v389
      %v438 = vpop.f32.mrb[0].mxu0
      %v439 = vadd.f32 0.0, %v438
      %v440 = vpop.f32.mrb[0].mxu0
      %v441 = vpop.f32.mrb[0].mxu0
      %v442 = vadd.f32 0.0, %v441
      %v443 = vpop.f32.mrb[0].mxu0
      %444 = vmatprep.mubr.bf16.mxu0 0
      %445 = vmatmul.mubr.bf16.gmra.mrb[0].mxu0 %v392
      %v446 = vpop.f32.mrb[0].mxu0
      %v447 = vadd.f32 0.0, %v446
      %v448 = vpop.f32.mrb[0].mxu0
      %v449 = vpop.f32.mrb[0].mxu0
      %v450 = vadd.f32 0.0, %v449
      %v451 = vpop.f32.mrb[0].mxu0
      %452 = vmatprep.mubr.bf16.mxu0 0
      %453 = vmatmul.mubr.bf16.gmra.mrb[0].mxu0 %v395
      %v454 = vpop.f32.mrb[0].mxu0
      %v455 = vadd.f32 0.0, %v454
      %v456 = vpop.f32.mrb[0].mxu0
      %v457 = vpop.f32.mrb[0].mxu0
      %v458 = vadd.f32 0.0, %v457
      %v459 = vpop.f32.mrb[0].mxu0
      %460 = vmatprep.mubr.bf16.mxu0 0
      %461 = vmatmul.mubr.bf16.gmra.mrb[0].mxu0 %v398
      %v462 = vpop.f32.mrb[0].mxu0
      %v463 = vadd.f32 0.0, %v462
      %v464 = vpop.f32.mrb[0].mxu0
      %v465 = vpop.f32.mrb[0].mxu0
      %v466 = vadd.f32 0.0, %v465
      %v467 = vpop.f32.mrb[0].mxu0
      %468 = vdwg.mxu0
      %v469 = vld [vmem:[%s316] sm:$0xf]
      %v470 = vld [vmem:[%s316 + $0x4] sm:$0xf]
      %v471 = vld [vmem:[%s316 + $0x8] sm:$0xf]
      %v472 = vld [vmem:[%s316 + $0xc] sm:$0xf]
      %v473 = vld [vmem:[%s316 + $0x10] sm:$0xf]
      %v474 = vld [vmem:[%s316 + $0x14] sm:$0xf]
      %v475 = vld [vmem:[%s316 + $0x18] sm:$0xf]
      %v476 = vld [vmem:[%s316 + $0x1c] sm:$0xf]
      %v477 = vld [vmem:[%s3] sm:$0x3]
      %v486 = vunpack.c.l.b16 %v469
      %v487 = vunpack.c.l.b16 %v470
      %v488 = vunpack.c.l.b16 %v471
      %v489 = vunpack.c.l.b16 %v472
      %v490 = vunpack.c.l.b16 %v473
      %v491 = vunpack.c.l.b16 %v474
      %v492 = vunpack.c.l.b16 %v475
      %v493 = vunpack.c.l.b16 %v476
      %v494 = vpack.c.b16 %v487, %v486
      %v495 = vpack.c.b16 %v489, %v488
      %v496 = vpack.c.b16 %v491, %v490
      %v497 = vpack.c.b16 %v493, %v492
      %vm498 = vcmask 31744
      %v500 = vsel %vm498, %v494, 0
      %v503 = vsel %vm498, %v495, 0
      %v506 = vsel %vm498, %v496, 0
      %v509 = vsel %vm498, %v497, 0
      %v512 = vsel %vm400, %v477, 0
      %514 = vmatprep.subr.bf16.mxu0 0
      %515 = vmatpush1.bf16.msra.mxu0 %v512
      %516 = vmatprep.subr.bf16.mxu0 0
      %517 = vmatpush1.bf16.msra.mxu0 0
      %518 = vmatprep.subr.bf16.mxu0 0
      %519 = vmatpush1.bf16.msra.mxu0 0
      %520 = vmatprep.subr.bf16.mxu0 0
      %521 = vmatpush1.bf16.msra.mxu0 0
      %522 = vmatprep.subr.bf16.mxu0 0
      %523 = vmatpush1.bf16.msra.mxu0 0
      %524 = vmatprep.subr.bf16.mxu0 0
      %525 = vmatpush1.bf16.msra.mxu0 0
      %526 = vmatprep.subr.bf16.mxu0 0
      %527 = vmatpush1.bf16.msra.mxu0 0
      %528 = vmatprep.subr.bf16.mxu0 0
      %529 = vmatpush1.bf16.msra.mxu0 0
      %530 = vmatprep.subr.bf16.mxu0 0
      %531 = vmatpush1.bf16.msra.mxu0 0
      %532 = vmatprep.subr.bf16.mxu0 0
      %533 = vmatpush1.bf16.msra.mxu0 0
      %534 = vmatprep.subr.bf16.mxu0 0
      %535 = vmatpush1.bf16.msra.mxu0 0
      %536 = vmatprep.subr.bf16.mxu0 0
      %537 = vmatpush1.bf16.msra.mxu0 0
      %538 = vmatprep.subr.bf16.mxu0 0
      %539 = vmatpush1.bf16.msra.mxu0 0
      %540 = vmatprep.subr.bf16.mxu0 0
      %541 = vmatpush1.bf16.msra.mxu0 0
      %542 = vmatprep.subr.bf16.mxu0 0
      %543 = vmatpush1.bf16.msra.mxu0 0
      %544 = vmatprep.subr.bf16.mxu0 0
      %545 = vmatpush1.bf16.msra.mxu0 0
      %546 = vmatprep.mubr.bf16.mxu0 0
      %547 = vmatmul.mubr.bf16.gmra.mrb[0].mxu0 %v500
      %v548 = vpop.f32.mrb[0].mxu0
      %v549 = vadd.f32 0.0, %v548
      %v550 = vpop.f32.mrb[0].mxu0
      %v551 = vpop.f32.mrb[0].mxu0
      %v552 = vadd.f32 0.0, %v551
      %v553 = vpop.f32.mrb[0].mxu0
      %554 = vmatprep.mubr.bf16.mxu0 0
      %555 = vmatmul.mubr.bf16.gmra.mrb[0].mxu0 %v503
      %v556 = vpop.f32.mrb[0].mxu0
      %v557 = vadd.f32 0.0, %v556
      %v558 = vpop.f32.mrb[0].mxu0
      %v559 = vpop.f32.mrb[0].mxu0
      %v560 = vadd.f32 0.0, %v559
      %v561 = vpop.f32.mrb[0].mxu0
      %562 = vmatprep.mubr.bf16.mxu0 0
      %563 = vmatmul.mubr.bf16.gmra.mrb[0].mxu0 %v506
      %v564 = vpop.f32.mrb[0].mxu0
      %v565 = vadd.f32 0.0, %v564
      %v566 = vpop.f32.mrb[0].mxu0
      %v567 = vpop.f32.mrb[0].mxu0
      %v568 = vadd.f32 0.0, %v567
      %v569 = vpop.f32.mrb[0].mxu0
      %570 = vmatprep.mubr.bf16.mxu0 0
      %571 = vmatmul.mubr.bf16.gmra.mrb[0].mxu0 %v509
      %v572 = vpop.f32.mrb[0].mxu0
      %v573 = vadd.f32 0.0, %v572
      %v574 = vpop.f32.mrb[0].mxu0
      %v575 = vpop.f32.mrb[0].mxu0
      %v576 = vadd.f32 0.0, %v575
      %v577 = vpop.f32.mrb[0].mxu0
      %578 = vdwg.mxu0
      %579 = vst [vmem:[%s322] sm:$0xff] %v439
      %580 = vst [vmem:[%s322 + $0x8] sm:$0xff] %v442
      %581 = vst [vmem:[%s322 + $0x10] sm:$0xff] %v447
      %582 = vst [vmem:[%s322 + $0x18] sm:$0xff] %v450
      %583 = vst [vmem:[%s322 + $0x20] sm:$0xff] %v455
      %584 = vst [vmem:[%s322 + $0x28] sm:$0xff] %v458
      %585 = vst [vmem:[%s322 + $0x30] sm:$0xff] %v463
      %586 = vst [vmem:[%s322 + $0x38] sm:$0xff] %v466
      %587 = vst [vmem:[%s328] sm:$0xff] %v549
      %588 = vst [vmem:[%s328 + $0x8] sm:$0xff] %v552
      %589 = vst [vmem:[%s328 + $0x10] sm:$0xff] %v557
      %590 = vst [vmem:[%s328 + $0x18] sm:$0xff] %v560
      %591 = vst [vmem:[%s328 + $0x20] sm:$0xff] %v565
      %592 = vst [vmem:[%s328 + $0x28] sm:$0xff] %v568
      %593 = vst [vmem:[%s328 + $0x30] sm:$0xff] %v573
      %594 = vst [vmem:[%s328 + $0x38] sm:$0xff] %v576
      %v595 = vadd.f32 %v439, %v442
      %v596 = vadd.f32 %v595, %v447
      %v597 = vadd.f32 %v596, %v450
      %v598 = vadd.f32 %v597, %v455
      %v599 = vadd.f32 %v598, %v458
      %v600 = vadd.f32 %v599, %v463
      %v601 = vadd.f32 %v600, %v466
      %v602 = vrot.slane %v601, 4
      %v603 = vadd.f32 %v601, %v602
      %v604 = vrot.slane %v603, 2
      %v605 = vadd.f32 %v603, %v604
      %v606 = vrot.slane %v605, 1
      %v607 = vadd.f32 %v605, %v606
      %v608 = vmul.f32 %v439, %v439
      %v609 = vmul.f32 %v442, %v442
      %v610 = vmul.f32 %v447, %v447
      %v611 = vmul.f32 %v450, %v450
      %v612 = vmul.f32 %v455, %v455
      %v613 = vmul.f32 %v458, %v458
      %v614 = vmul.f32 %v463, %v463
      %v615 = vmul.f32 %v466, %v466
      %v616 = vadd.f32 %v608, %v609
      %v617 = vadd.f32 %v616, %v610
      %v618 = vadd.f32 %v617, %v611
      %v619 = vadd.f32 %v618, %v612
      %v620 = vadd.f32 %v619, %v613
      %v621 = vadd.f32 %v620, %v614
      %v622 = vadd.f32 %v621, %v615
      %v623 = vrot.slane %v622, 4
      %v624 = vadd.f32 %v622, %v623
      %v625 = vrot.slane %v624, 2
      %v626 = vadd.f32 %v624, %v625
      %v627 = vrot.slane %v626, 1
      %v628 = vadd.f32 %v626, %v627
      %vm629 = vcmask 1040384
      %v630 = vsel %vm629, %v607, %v628
      %631 = vst [vmem:[%s333] sm:$0x3] %v630
      %v632 = vadd.f32 %v549, %v552
      %v633 = vadd.f32 %v632, %v557
      %v634 = vadd.f32 %v633, %v560
      %v635 = vadd.f32 %v634, %v565
      %v636 = vadd.f32 %v635, %v568
      %v637 = vadd.f32 %v636, %v573
      %v638 = vadd.f32 %v637, %v576
      %v639 = vrot.slane %v638, 4
      %v640 = vadd.f32 %v638, %v639
      %v641 = vrot.slane %v640, 2
      %v642 = vadd.f32 %v640, %v641
      %v643 = vrot.slane %v642, 1
      %v644 = vadd.f32 %v642, %v643
      %v645 = vmul.f32 %v549, %v549
      %v646 = vmul.f32 %v552, %v552
      %v647 = vmul.f32 %v557, %v557
      %v648 = vmul.f32 %v560, %v560
      %v649 = vmul.f32 %v565, %v565
      %v650 = vmul.f32 %v568, %v568
      %v651 = vmul.f32 %v573, %v573
      %v652 = vmul.f32 %v576, %v576
      %v653 = vadd.f32 %v645, %v646
      %v654 = vadd.f32 %v653, %v647
      %v655 = vadd.f32 %v654, %v648
      %v656 = vadd.f32 %v655, %v649
      %v657 = vadd.f32 %v656, %v650
      %v658 = vadd.f32 %v657, %v651
      %v659 = vadd.f32 %v658, %v652
      %v660 = vrot.slane %v659, 4
      %v661 = vadd.f32 %v659, %v660
      %v662 = vrot.slane %v661, 2
      %v663 = vadd.f32 %v661, %v662
      %v664 = vrot.slane %v663, 1
      %v665 = vadd.f32 %v663, %v664
      %v666 = vsel %vm629, %v644, %v665
      %667 = vst [vmem:[%s337] sm:$0x3] %v666
      %s668 = smul.u32 8, %s19
      %p669 = scmp.lt.s32.totalorder %s668, 15
      %s670 = scalar_select %p669, %s668, 15
      %s671 = smul.addr %s670, 8
      %s672 = scalar_lea.vmem %s4, %s671
      %s673 = smul.u32 8, %s19
      %p674 = scmp.lt.s32.totalorder %s673, 15
      %s675 = scalar_select %p674, %s673, 15
      %s676 = smul.addr %s675, 8
      %s677 = scalar_lea.vmem %s5, %s676
      %p678 = scmp.lt.s32.totalorder %s19, 1
      %s679 = scalar_select %p678, %s19, 1
      %s680 = smul.addr %s679, 2
      %s681 = scalar_lea.vmem %s6, %s680
      %p682 = scmp.lt.s32.totalorder %s19, 1
      %s683 = scalar_select %p682, %s19, 1
      %s684 = smul.addr %s683, 2
      %s685 = scalar_lea.vmem %s7, %s684
      // Predicated region
      $region37: #{basic_block_forward.3} parent=35 // pred_check
        %p686 = pneg %p131
      $region38: #{basic_block_forward.3} parent=35 // pred_check_branch
        %688 = sbr.rel (%p686) target = $region40
      $region39: #{basic_block_forward.3} parent=35 // pred_region
        %s689 = smul.u32 8, %s19
      $region40: #{basic_block_forward.3} parent=35 // pred_fallthru
        _
      // Predicated region
      $region41: #{basic_block_forward.3} parent=35 // pred_check
        %p690 = pneg %p157
      $region42: #{basic_block_forward.3} parent=35 // pred_check_branch
        %692 = sbr.rel (%p690) target = $region44
      $region43: #{basic_block_forward.3} parent=35 // pred_region
        %s693 = smul.u32 8, %s19
      $region44: #{basic_block_forward.3} parent=35 // pred_fallthru
        _
      // Predicated region
      $region45: #{basic_block_forward.3} parent=35 // pred_check
        %p694 = pneg %p183
      $region46: #{basic_block_forward.3} parent=35 // pred_check_branch
        %696 = sbr.rel (%p694) target = $region48
      $region47: #{basic_block_forward.3} parent=35 // pred_region
        _
      $region48: #{basic_block_forward.3} parent=35 // pred_fallthru
        _
      // Predicated region
      $region49: #{basic_block_forward.3} parent=35 // pred_check
        %p697 = pneg %p209
      $region50: #{basic_block_forward.3} parent=35 // pred_check_branch
        %699 = sbr.rel (%p697) target = $region52
      $region51: #{basic_block_forward.3} parent=35 // pred_region
        _
      $region52: #{basic_block_forward.3} parent=35 // pred_fallthru
        _
    $region36: #{basic_block_forward.3} parent=5 // pred_fallthru
      _
    %p700 = scmp.le.s32.totalorder 2, %s14
    // Predicated region
    $region53: #{basic_block_forward.3} parent=5 // pred_check
      %p701 = pneg %p700
    $region54: #{basic_block_forward.3} parent=5 // pred_check_branch
      %703 = sbr.rel (%p701) target = $region56
    $region55: #{basic_block_forward.3} parent=5 // pred_region
      %s704 = ssub.s32 %s14, 2
      // Predicated region
      $region57: #{basic_block_forward.3} parent=55 // pred_check
        %p705 = pneg %p137
      $region58: #{basic_block_forward.3} parent=55 // pred_check_branch
        %707 = sbr.rel (%p705) target = $region60
      $region59: #{basic_block_forward.3} parent=55 // pred_region
        %s708 = smul.u32 8, %s20
        %p709 = scmp.lt.s32.totalorder %s708, 15
        %s710 = scalar_select %p709, %s708, 15
        %s711 = smul.addr %s710, 8
        %s712 = scalar_lea.vmem %s4, %s711
      $region60: #{basic_block_forward.3} parent=55 // pred_fallthru
        _
      // Predicated region
      $region61: #{basic_block_forward.3} parent=55 // pred_check
        %p713 = pneg %p163
      $region62: #{basic_block_forward.3} parent=55 // pred_check_branch
        %715 = sbr.rel (%p713) target = $region64
      $region63: #{basic_block_forward.3} parent=55 // pred_region
        %s716 = smul.u32 8, %s20
        %p717 = scmp.lt.s32.totalorder %s716, 15
        %s718 = scalar_select %p717, %s716, 15
        %s719 = smul.addr %s718, 8
        %s720 = scalar_lea.vmem %s5, %s719
      $region64: #{basic_block_forward.3} parent=55 // pred_fallthru
        _
      // Predicated region
      $region65: #{basic_block_forward.3} parent=55 // pred_check
        %p721 = pneg %p189
      $region66: #{basic_block_forward.3} parent=55 // pred_check_branch
        %723 = sbr.rel (%p721) target = $region68
      $region67: #{basic_block_forward.3} parent=55 // pred_region
        %p724 = scmp.lt.s32.totalorder %s20, 1
        %s725 = scalar_select %p724, %s20, 1
        %s726 = smul.addr %s725, 2
        %s727 = scalar_lea.vmem %s6, %s726
      $region68: #{basic_block_forward.3} parent=55 // pred_fallthru
        _
      // Predicated region
      $region69: #{basic_block_forward.3} parent=55 // pred_check
        %p728 = pneg %p215
      $region70: #{basic_block_forward.3} parent=55 // pred_check_branch
        %730 = sbr.rel (%p728) target = $region72
      $region71: #{basic_block_forward.3} parent=55 // pred_region
        %p731 = scmp.lt.s32.totalorder %s20, 1
        %s732 = scalar_select %p731, %s20, 1
        %s733 = smul.addr %s732, 2
        %s734 = scalar_lea.vmem %s7, %s733
      $region72: #{basic_block_forward.3} parent=55 // pred_fallthru
        _
    $region56: #{basic_block_forward.3} parent=5 // pred_fallthru
      _
  $region6: #{basic_block_forward.3} parent=0 // loop_footer
    %s18 = sadd.s32 1, %s14
  $region7: #{basic_block_forward.3} parent=0 // loop_footer_branch
    %13 = sbr.rel target = $region3
  $region8: #{basic_block_forward.3} parent=0 // loop_exit
    _

// kernel: basic_block_forward.4
$region0: #{basic_block_forward.4}
  #allocation0 [shape = 'u32[]', space=smem, size = 0x4, offset = 0x4, fixed_abs, tag = 'smem constant byte address 0x4 - core index']
  #allocation1 [shape = 'u32[144,128]{1,0:T(1,128)}', space=vmem, size = 0x12000, scoped, tag = 'internal scratch']
  #allocation2 [shape = 'f32[10,10,128]{2,1,0:T(8,128)}', space=vmem, size = 0x14000, scoped, tag = 'scratch operand']
  %s0 = inlined_call_operand.vmem [shape: f32[2,10,10,128], index: 0, kind: input, shape index: {}]
  %s1 = inlined_call_operand.vmem [shape: f32[1,128], index: 1, kind: input, shape index: {}]
  %s2 = inlined_call_operand.vmem [shape: f32[1,128], index: 2, kind: input, shape index: {}]
  %s3 = inlined_call_operand.vmem [shape: bf16[9,128,128], index: 3, kind: input, shape index: {}]
  %s4 = inlined_call_operand.vmem [shape: f32[2,64,128], index: 4, kind: output, shape index: {0}]
  %s5 = inlined_call_operand.vmem [shape: f32[2,2,128], index: 5, kind: output, shape index: {1}]
  %6 = xla_tuple %s4, %s5
  %s7 = sld [smem:[#allocation0]]
  $region57: #{basic_block_forward.4} parent=0
    _
  %s9 = ssub.s32 1, %s7
  %s10 = scalar_select 0, %s9, %s7
  loop: start=0, step=1, limit=4
  $region2: #{basic_block_forward.4} parent=0 // loop_pre_header
    _
  $region3: #{basic_block_forward.4} parent=0 // loop_header
    %s12 = sphi 0, %s16
    %p13 = scmp.ge.s32.totalorder %s12, 4
    %s22 = sphi 0, %s24
    %s25 = sphi 0, %s22
    %s26 = sphi 0, %s25
    %s42 = sphi 0, %s26
    %s46 = sphi 0, %s46
    %s48 = sphi 0, %s46
    %s49 = sphi 0, %s48
    %s63 = sphi 0, %s49
    %s67 = sphi 0, %s67
    %s69 = sphi 0, %s67
    %s70 = sphi 0, %s69
    %s84 = sphi 0, %s70
    %s88 = sphi 0, %s88
    %s90 = sphi 0, %s88
    %s91 = sphi 0, %s90
    %s105 = sphi 0, %s91
    %s111 = sphi 0, %s113
    %s114 = sphi 0, %s111
    %s115 = sphi 0, %s114
    %s131 = sphi 0, %s115
    %s137 = sphi 0, %s139
    %s140 = sphi 0, %s137
    %s141 = sphi 0, %s140
    %s157 = sphi 0, %s141
  $region4: #{basic_block_forward.4} parent=0 // loop_header_branch
    %15 = sbr.rel (%p13) target = $region8
  $region5: #{basic_block_forward.4} parent=0 // loop_body
    %s17 = ssub.s32 %s12, 1
    %s18 = ssub.s32 %s12, 2
    %s19 = sadd.s32 %s12, 1
    %s20 = ssub.s32 %s12, %s19
    %p21 = scmp.eq.s32.totalorder %s20, 0
    %s23 = sadd.s32 %s22, 1
    %s24 = scalar_select %p21, %s22, %s23
    %p27 = pneg %p21
    %p28 = scmp.eq.s32.totalorder %s12, 1
    %p29 = por %p27, %p28
    %p30 = scmp.ne.s32.totalorder %s22, %s25
    %p31 = scmp.eq.s32.totalorder %s12, 0
    %p32 = por %p30, %p31
    %p33 = scmp.ne.s32.totalorder %s22, %s25
    %p34 = scmp.eq.s32.totalorder %s17, 1
    %p35 = por %p33, %p34
    %p36 = scmp.ne.s32.totalorder %s25, %s26
    %p37 = scmp.eq.s32.totalorder %s17, 0
    %p38 = por %p36, %p37
    %p39 = scmp.ne.s32.totalorder %s25, %s26
    %p40 = scmp.eq.s32.totalorder %s18, 1
    %p41 = por %p39, %p40
    %p43 = scmp.ne.s32.totalorder %s26, %s42
    %p44 = scmp.eq.s32.totalorder %s18, 0
    %p45 = por %p43, %p44
    %s47 = sadd.s32 %s46, 1
    %p50 = scmp.eq.s32.totalorder %s12, 1
    %p51 = scmp.ne.s32.totalorder %s46, %s48
    %p52 = scmp.eq.s32.totalorder %s12, 0
    %p53 = por %p51, %p52
    %p54 = scmp.ne.s32.totalorder %s46, %s48
    %p55 = scmp.eq.s32.totalorder %s17, 1
    %p56 = por %p54, %p55
    %p57 = scmp.ne.s32.totalorder %s48, %s49
    %p58 = scmp.eq.s32.totalorder %s17, 0
    %p59 = por %p57, %p58
    %p60 = scmp.ne.s32.totalorder %s48, %s49
    %p61 = scmp.eq.s32.totalorder %s18, 1
    %p62 = por %p60, %p61
    %p64 = scmp.ne.s32.totalorder %s49, %s63
    %p65 = scmp.eq.s32.totalorder %s18, 0
    %p66 = por %p64, %p65
    %s68 = sadd.s32 %s67, 1
    %p71 = scmp.eq.s32.totalorder %s12, 1
    %p72 = scmp.ne.s32.totalorder %s67, %s69
    %p73 = scmp.eq.s32.totalorder %s12, 0
    %p74 = por %p72, %p73
    %p75 = scmp.ne.s32.totalorder %s67, %s69
    %p76 = scmp.eq.s32.totalorder %s17, 1
    %p77 = por %p75, %p76
    %p78 = scmp.ne.s32.totalorder %s69, %s70
    %p79 = scmp.eq.s32.totalorder %s17, 0
    %p80 = por %p78, %p79
    %p81 = scmp.ne.s32.totalorder %s69, %s70
    %p82 = scmp.eq.s32.totalorder %s18, 1
    %p83 = por %p81, %p82
    %p85 = scmp.ne.s32.totalorder %s70, %s84
    %p86 = scmp.eq.s32.totalorder %s18, 0
    %p87 = por %p85, %p86
    %s89 = sadd.s32 %s88, 1
    %p92 = scmp.eq.s32.totalorder %s12, 1
    %p93 = scmp.ne.s32.totalorder %s88, %s90
    %p94 = scmp.eq.s32.totalorder %s12, 0
    %p95 = por %p93, %p94
    %p96 = scmp.ne.s32.totalorder %s88, %s90
    %p97 = scmp.eq.s32.totalorder %s17, 1
    %p98 = por %p96, %p97
    %p99 = scmp.ne.s32.totalorder %s90, %s91
    %p100 = scmp.eq.s32.totalorder %s17, 0
    %p101 = por %p99, %p100
    %p102 = scmp.ne.s32.totalorder %s90, %s91
    %p103 = scmp.eq.s32.totalorder %s18, 1
    %p104 = por %p102, %p103
    %p106 = scmp.ne.s32.totalorder %s91, %s105
    %p107 = scmp.eq.s32.totalorder %s18, 0
    %p108 = por %p106, %p107
    %s109 = ssub.s32 %s12, %s19
    %p110 = scmp.eq.s32.totalorder %s109, 0
    %s112 = sadd.s32 %s111, 1
    %s113 = scalar_select %p110, %s111, %s112
    %p116 = pneg %p110
    %p117 = scmp.eq.s32.totalorder %s12, 1
    %p118 = por %p116, %p117
    %p119 = scmp.ne.s32.totalorder %s111, %s114
    %p120 = scmp.eq.s32.totalorder %s12, 0
    %p121 = por %p119, %p120
    %p122 = scmp.ne.s32.totalorder %s111, %s114
    %p123 = scmp.eq.s32.totalorder %s17, 1
    %p124 = por %p122, %p123
    %p125 = scmp.ne.s32.totalorder %s114, %s115
    %p126 = scmp.eq.s32.totalorder %s17, 0
    %p127 = por %p125, %p126
    %p128 = scmp.ne.s32.totalorder %s114, %s115
    %p129 = scmp.eq.s32.totalorder %s18, 1
    %p130 = por %p128, %p129
    %p132 = scmp.ne.s32.totalorder %s115, %s131
    %p133 = scmp.eq.s32.totalorder %s18, 0
    %p134 = por %p132, %p133
    %s135 = ssub.s32 %s12, %s19
    %p136 = scmp.eq.s32.totalorder %s135, 0
    %s138 = sadd.s32 %s137, 1
    %s139 = scalar_select %p136, %s137, %s138
    %p142 = pneg %p136
    %p143 = scmp.eq.s32.totalorder %s12, 1
    %p144 = por %p142, %p143
    %p145 = scmp.ne.s32.totalorder %s137, %s140
    %p146 = scmp.eq.s32.totalorder %s12, 0
    %p147 = por %p145, %p146
    %p148 = scmp.ne.s32.totalorder %s137, %s140
    %p149 = scmp.eq.s32.totalorder %s17, 1
    %p150 = por %p148, %p149
    %p151 = scmp.ne.s32.totalorder %s140, %s141
    %p152 = scmp.eq.s32.totalorder %s17, 0
    %p153 = por %p151, %p152
    %p154 = scmp.ne.s32.totalorder %s140, %s141
    %p155 = scmp.eq.s32.totalorder %s18, 1
    %p156 = por %p154, %p155
    %p158 = scmp.ne.s32.totalorder %s141, %s157
    %p159 = scmp.eq.s32.totalorder %s18, 0
    %p160 = por %p158, %p159
    %p161 = scmp.le.s32.totalorder 1, %s12
    %p162 = scmp.lt.s32.totalorder %s12, 3
    %p163 = pnand %p161, %p162
    %p164 = pneg %p163
    // Predicated region
    $region9: #{basic_block_forward.4} parent=5 // pred_check
      _
    $region10: #{basic_block_forward.4} parent=5 // pred_check_branch
      %166 = sbr.rel (%p163) target = $region12
    $region11: #{basic_block_forward.4} parent=5 // pred_region
      %s167 = ssub.s32 %s12, 1
      // Predicated region
      $region13: #{basic_block_forward.4} parent=11 // pred_check
        %p168 = pneg %p59
      $region14: #{basic_block_forward.4} parent=11 // pred_check_branch
        %170 = sbr.rel (%p168) target = $region16
      $region15: #{basic_block_forward.4} parent=11 // pred_region
        _
      $region16: #{basic_block_forward.4} parent=11 // pred_fallthru
        _
      // Predicated region
      $region17: #{basic_block_forward.4} parent=11 // pred_check
        %p171 = pneg %p80
      $region18: #{basic_block_forward.4} parent=11 // pred_check_branch
        %173 = sbr.rel (%p171) target = $region20
      $region19: #{basic_block_forward.4} parent=11 // pred_region
        _
      $region20: #{basic_block_forward.4} parent=11 // pred_fallthru
        _
      // Predicated region
      $region21: #{basic_block_forward.4} parent=11 // pred_check
        %p174 = pneg %p101
      $region22: #{basic_block_forward.4} parent=11 // pred_check_branch
        %176 = sbr.rel (%p174) target = $region24
      $region23: #{basic_block_forward.4} parent=11 // pred_region
        _
      $region24: #{basic_block_forward.4} parent=11 // pred_fallthru
        _
    $region12: #{basic_block_forward.4} parent=5 // pred_fallthru
      _
    %p177 = scmp.lt.s32.totalorder %s12, 2
    // Predicated region
    $region25: #{basic_block_forward.4} parent=5 // pred_check
      %p178 = pneg %p177
    $region26: #{basic_block_forward.4} parent=5 // pred_check_branch
      %180 = sbr.rel (%p178) target = $region28
    $region27: #{basic_block_forward.4} parent=5 // pred_region
      // Predicated region
      $region29: #{basic_block_forward.4} parent=27 // pred_check
        %p181 = pneg %p32
      $region30: #{basic_block_forward.4} parent=27 // pred_check_branch
        %183 = sbr.rel (%p181) target = $region32
      $region31: #{basic_block_forward.4} parent=27 // pred_region
        %p184 = scmp.lt.s32.totalorder %s12, 1
        %s185 = scalar_select %p184, %s12, 1
        %s186 = smul.addr %s185, 20
        %s187 = smul.addr %s186, 8
        %s188 = scalar_lea.vmem %s0, %s187
      $region32: #{basic_block_forward.4} parent=27 // pred_fallthru
        _
    $region28: #{basic_block_forward.4} parent=5 // pred_fallthru
      _
    %p189 = scmp.le.s32.totalorder 1, %s12
    %p190 = scmp.lt.s32.totalorder %s12, 3
    %p191 = pnand %p189, %p190
    %p192 = pneg %p191
    // Predicated region
    $region33: #{basic_block_forward.4} parent=5 // pred_check
      _
    $region34: #{basic_block_forward.4} parent=5 // pred_check_branch
      %194 = sbr.rel (%p191) target = $region36
    $region35: #{basic_block_forward.4} parent=5 // pred_region
      %s195 = ssub.s32 %s12, 1
      %p196 = scmp.lt.s32.totalorder %s17, 1
      %s197 = scalar_select %p196, %s17, 1
      %s198 = smul.addr %s197, 20
      %s199 = smul.addr %s198, 8
      %s200 = scalar_lea.vmem %s0, %s199
      %p201 = pneg %p38
      %p202 = pneg %p35
      %p203 = pneg %p59
      %p204 = pneg %p56
      %p205 = pneg %p80
      %p206 = pneg %p77
      %p207 = pneg %p101
      %p208 = pneg %p98
      %p209 = pneg %p127
      %p210 = pneg %p124
      %p211 = scmp.lt.s32.totalorder %s17, 1
      %s212 = scalar_select %p211, %s17, 1
      %s213 = smul.addr %s212, 8
      %s214 = smul.addr %s213, 8
      %s215 = scalar_lea.vmem %s4, %s214
      %p216 = pneg %p153
      %p217 = pneg %p150
      %p218 = scmp.lt.s32.totalorder %s17, 1
      %s219 = scalar_select %p218, %s17, 1
      %s220 = smul.addr %s219, 2
      %s221 = scalar_lea.vmem %s5, %s220
      %p222 = scmp.lt.s32.totalorder %s17, 1
      %s223 = scalar_select %p222, %s17, 1
      %s224 = smul.addr %s223, 20
      %s225 = smul.addr %s224, 8
      %s226 = scalar_lea.vmem %s0, %s225
      %p227 = scmp.lt.s32.totalorder %s17, 1
      %s228 = scalar_select %p227, %s17, 1
      %s229 = smul.addr %s228, 8
      %s230 = smul.addr %s229, 8
      %s231 = scalar_lea.vmem %s4, %s230
      %p232 = scmp.lt.s32.totalorder %s17, 1
      %s233 = scalar_select %p232, %s17, 1
      %s234 = smul.addr %s233, 2
      %s235 = scalar_lea.vmem %s5, %s234
      %v237 = vld [vmem:[%s226] sm:$0xff]
      %v238 = vld [vmem:[%s226 + $0x8] sm:$0x3]
      %v239 = vld [vmem:[%s226 + $0x10] sm:$0xff]
      %v240 = vld [vmem:[%s226 + $0x18] sm:$0x3]
      %v241 = vld [vmem:[%s226 + $0x20] sm:$0xff]
      %v242 = vld [vmem:[%s226 + $0x28] sm:$0x3]
      %v243 = vld [vmem:[%s226 + $0x30] sm:$0xff]
      %v244 = vld [vmem:[%s226 + $0x38] sm:$0x3]
      %v245 = vld [vmem:[%s226 + $0x40] sm:$0xff]
      %v246 = vld [vmem:[%s226 + $0x48] sm:$0x3]
      %v247 = vld [vmem:[%s226 + $0x50] sm:$0xff]
      %v248 = vld [vmem:[%s226 + $0x58] sm:$0x3]
      %v249 = vld [vmem:[%s226 + $0x60] sm:$0xff]
      %v250 = vld [vmem:[%s226 + $0x68] sm:$0x3]
      %v251 = vld [vmem:[%s226 + $0x70] sm:$0xff]
      %v252 = vld [vmem:[%s226 + $0x78] sm:$0x3]
      %v253 = vld [vmem:[%s226 + $0x80] sm:$0xff]
      %v254 = vld [vmem:[%s226 + $0x88] sm:$0x3]
      %v255 = vld [vmem:[%s226 + $0x90] sm:$0xff]
      %v256 = vld [vmem:[%s226 + $0x98] sm:$0x3]
      %v257 = vld [vmem:[%s1] sm:$0x1]
      %v259 = vlaneseq
      %v260 = vshrl.u32 %v259, 7
      %v261 = vsub.s32 0, %v260
      %v262 = vrot.slane %v257, %v261
      %v264 = vmul.f32 %v237, %v262
      %v265 = vmul.f32 %v238, %v262
      %v266 = vmul.f32 %v239, %v262
      %v267 = vmul.f32 %v240, %v262
      %v268 = vmul.f32 %v241, %v262
      %v269 = vmul.f32 %v242, %v262
      %v270 = vmul.f32 %v243, %v262
      %v271 = vmul.f32 %v244, %v262
      %v272 = vmul.f32 %v245, %v262
      %v273 = vmul.f32 %v246, %v262
      %v274 = vmul.f32 %v247, %v262
      %v275 = vmul.f32 %v248, %v262
      %v276 = vmul.f32 %v249, %v262
      %v277 = vmul.f32 %v250, %v262
      %v278 = vmul.f32 %v251, %v262
      %v279 = vmul.f32 %v252, %v262
      %v280 = vmul.f32 %v253, %v262
      %v281 = vmul.f32 %v254, %v262
      %v282 = vmul.f32 %v255, %v262
      %v283 = vmul.f32 %v256, %v262
      %v284 = vld [vmem:[%s2] sm:$0x1]
      %v286 = vlaneseq
      %v287 = vshrl.u32 %v286, 7
      %v288 = vsub.s32 0, %v287
      %v289 = vrot.slane %v284, %v288
      %v291 = vadd.f32 %v264, %v289
      %v292 = vadd.f32 %v265, %v289
      %v293 = vadd.f32 %v266, %v289
      %v294 = vadd.f32 %v267, %v289
      %v295 = vadd.f32 %v268, %v289
      %v296 = vadd.f32 %v269, %v289
      %v297 = vadd.f32 %v270, %v289
      %v298 = vadd.f32 %v271, %v289
      %v299 = vadd.f32 %v272, %v289
      %v300 = vadd.f32 %v273, %v289
      %v301 = vadd.f32 %v274, %v289
      %v302 = vadd.f32 %v275, %v289
      %v303 = vadd.f32 %v276, %v289
      %v304 = vadd.f32 %v277, %v289
      %v305 = vadd.f32 %v278, %v289
      %v306 = vadd.f32 %v279, %v289
      %v307 = vadd.f32 %v280, %v289
      %v308 = vadd.f32 %v281, %v289
      %v309 = vadd.f32 %v282, %v289
      %v310 = vadd.f32 %v283, %v289
      %v311 = vmax.f32 %v291, 0.0
      %v312 = vmax.f32 %v292, 0.0
      %v313 = vmax.f32 %v293, 0.0
      %v314 = vmax.f32 %v294, 0.0
      %v315 = vmax.f32 %v295, 0.0
      %v316 = vmax.f32 %v296, 0.0
      %v317 = vmax.f32 %v297, 0.0
      %v318 = vmax.f32 %v298, 0.0
      %v319 = vmax.f32 %v299, 0.0
      %v320 = vmax.f32 %v300, 0.0
      %v321 = vmax.f32 %v301, 0.0
      %v322 = vmax.f32 %v302, 0.0
      %v323 = vmax.f32 %v303, 0.0
      %v324 = vmax.f32 %v304, 0.0
      %v325 = vmax.f32 %v305, 0.0
      %v326 = vmax.f32 %v306, 0.0
      %v327 = vmax.f32 %v307, 0.0
      %v328 = vmax.f32 %v308, 0.0
      %v329 = vmax.f32 %v309, 0.0
      %v330 = vmax.f32 %v310, 0.0
      %v331 = vlaneseq
      %v332 = vshrl.u32 %v331, 7
      %v333 = vadd.s32 %v332, 8
      %vm334 = vcmp.ge.s32.totalorder %v332, 1
      %vm335 = vcmp.ge.s32.totalorder %v333, 1
      %vm336 = vmand 0, %vm334
      %vm337 = vmand 0, %vm335
      %vm338 = vmand 1, %vm334
      %vm339 = vmand 1, %vm335
      %vm340 = vcmp.lt.s32.totalorder %v332, 9
      %vm341 = vcmp.lt.s32.totalorder %v333, 9
      %vm342 = vmand %vm336, %vm340
      %vm343 = vmand %vm337, %vm341
      %vm344 = vmand %vm338, %vm340
      %vm345 = vmand %vm339, %vm341
      %v346 = vsel %vm342, 1, 0
      %v347 = vsel %vm343, 1, 0
      %v348 = vsel %vm344, 1, 0
      %v349 = vsel %vm345, 1, 0
      %vm350 = vcmp.eq.s32.totalorder %v346, 1
      %vm351 = vcmp.eq.s32.totalorder %v347, 1
      %vm352 = vcmp.eq.s32.totalorder %v348, 1
      %vm353 = vcmp.eq.s32.totalorder %v349, 1
      %v354 = vsel %vm350, %v311, 0.0
      %v355 = vsel %vm351, %v312, 0.0
      %v356 = vsel %vm352, %v313, 0.0
      %v357 = vsel %vm353, %v314, 0.0
      %v358 = vsel %vm352, %v315, 0.0
      %v359 = vsel %vm353, %v316, 0.0
      %v360 = vsel %vm352, %v317, 0.0
      %v361 = vsel %vm353, %v318, 0.0
      %v362 = vsel %vm352, %v319, 0.0
      %v363 = vsel %vm353, %v320, 0.0
      %v364 = vsel %vm352, %v321, 0.0
      %v365 = vsel %vm353, %v322, 0.0
      %v366 = vsel %vm352, %v323, 0.0
      %v367 = vsel %vm353, %v324, 0.0
      %v368 = vsel %vm352, %v325, 0.0
      %v369 = vsel %vm353, %v326, 0.0
      %v370 = vsel %vm352, %v327, 0.0
      %v371 = vsel %vm353, %v328, 0.0
      %v372 = vsel %vm350, %v329, 0.0
      %v373 = vsel %vm351, %v330, 0.0
      %374 = vst [vmem:[#allocation2] sm:$0xff] %v354
      %375 = vst [vmem:[#allocation2 + $0x8] sm:$0x3] %v355
      %376 = vst [vmem:[#allocation2 + $0x10] sm:$0xff] %v356
      %377 = vst [vmem:[#allocation2 + $0x18] sm:$0x3] %v357
      %378 = vst [vmem:[#allocation2 + $0x20] sm:$0xff] %v358
      %379 = vst [vmem:[#allocation2 + $0x28] sm:$0x3] %v359
      %380 = vst [vmem:[#allocation2 + $0x30] sm:$0xff] %v360
      %381 = vst [vmem:[#allocation2 + $0x38] sm:$0x3] %v361
      %382 = vst [vmem:[#allocation2 + $0x40] sm:$0xff] %v362
      %383 = vst [vmem:[#allocation2 + $0x48] sm:$0x3] %v363
      %384 = vst [vmem:[#allocation2 + $0x50] sm:$0xff] %v364
      %385 = vst [vmem:[#allocation2 + $0x58] sm:$0x3] %v365
      %386 = vst [vmem:[#allocation2 + $0x60] sm:$0xff] %v366
      %387 = vst [vmem:[#allocation2 + $0x68] sm:$0x3] %v367
      %388 = vst [vmem:[#allocation2 + $0x70] sm:$0xff] %v368
      %389 = vst [vmem:[#allocation2 + $0x78] sm:$0x3] %v369
      %390 = vst [vmem:[#allocation2 + $0x80] sm:$0xff] %v370
      %391 = vst [vmem:[#allocation2 + $0x88] sm:$0x3] %v371
      %392 = vst [vmem:[#allocation2 + $0x90] sm:$0xff] %v372
      %393 = vst [vmem:[#allocation2 + $0x98] sm:$0x3] %v373
      %v394 = vld [vmem:[#allocation2] sm:$0xff]
      %v395 = vld [vmem:[#allocation2 + $0x10] sm:$0xff]
      %v396 = vld [vmem:[#allocation2 + $0x20] sm:$0xff]
      %v397 = vld [vmem:[#allocation2 + $0x30] sm:$0xff]
      %v398 = vld [vmem:[#allocation2 + $0x40] sm:$0xff]
      %v399 = vld [vmem:[#allocation2 + $0x50] sm:$0xff]
      %v400 = vld [vmem:[#allocation2 + $0x60] sm:$0xff]
      %v401 = vld [vmem:[#allocation2 + $0x70] sm:$0xff]
      %v402 = vpack.c.bf16 %v395, %v394
      %v403 = vpack.c.bf16 %v397, %v396
      %v404 = vpack.c.bf16 %v399, %v398
      %v405 = vpack.c.bf16 %v401, %v400
      %v406 = vld [vmem:[%s3] sm:$0xf]
      %v407 = vld [vmem:[%s3 + $0x4] sm:$0xf]
      %v408 = vld [vmem:[%s3 + $0x8] sm:$0xf]
      %v409 = vld [vmem:[%s3 + $0xc] sm:$0xf]
      %v410 = vld [vmem:[%s3 + $0x10] sm:$0xf]
      %v411 = vld [vmem:[%s3 + $0x14] sm:$0xf]
      %v412 = vld [vmem:[%s3 + $0x18] sm:$0xf]
      %v413 = vld [vmem:[%s3 + $0x1c] sm:$0xf]
      %v414 = vld [vmem:[%s3 + $0x20] sm:$0xf]
      %v415 = vld [vmem:[%s3 + $0x24] sm:$0xf]
      %v416 = vld [vmem:[%s3 + $0x28] sm:$0xf]
      %v417 = vld [vmem:[%s3 + $0x2c] sm:$0xf]
      %v418 = vld [vmem:[%s3 + $0x30] sm:$0xf]
      %v419 = vld [vmem:[%s3 + $0x34] sm:$0xf]
      %v420 = vld [vmem:[%s3 + $0x38] sm:$0xf]
      %v421 = vld [vmem:[%s3 + $0x3c] sm:$0xf]
      %v422 = vld [vmem:[#allocation2 + $0x1] sm:$0xff]
      %v423 = vld [vmem:[#allocation2 + $0x11] sm:$0xff]
      %v424 = vld [vmem:[#allocation2 + $0x21] sm:$0xff]
      %v425 = vld [vmem:[#allocation2 + $0x31] sm:$0xff]
      %v426 = vld [vmem:[#allocation2 + $0x41] sm:$0xff]
      %v427 = vld [vmem:[#allocation2 + $0x51] sm:$0xff]
      %v428 = vld [vmem:[#allocation2 + $0x61] sm:$0xff]
      %v429 = vld [vmem:[#allocation2 + $0x71] sm:$0xff]
      %v430 = vpack.c.bf16 %v423, %v422
      %v431 = vpack.c.bf16 %v425, %v424
      %v432 = vpack.c.bf16 %v427, %v426
      %v433 = vpack.c.bf16 %v429, %v428
      %s434 = scalar_lea.vmem %s3, 64
      %v435 = vld [vmem:[%s434] sm:$0xf]
      %v436 = vld [vmem:[%s434 + $0x4] sm:$0xf]
      %v437 = vld [vmem:[%s434 + $0x8] sm:$0xf]
      %v438 = vld [vmem:[%s434 + $0xc] sm:$0xf]
      %v439 = vld [vmem:[%s434 + $0x10] sm:$0xf]
      %v440 = vld [vmem:[%s434 + $0x14] sm:$0xf]
      %v441 = vld [vmem:[%s434 + $0x18] sm:$0xf]
      %v442 = vld [vmem:[%s434 + $0x1c] sm:$0xf]
      %v443 = vld [vmem:[%s434 + $0x20] sm:$0xf]
      %v444 = vld [vmem:[%s434 + $0x24] sm:$0xf]
      %v445 = vld [vmem:[%s434 + $0x28] sm:$0xf]
      %v446 = vld [vmem:[%s434 + $0x2c] sm:$0xf]
      %v447 = vld [vmem:[%s434 + $0x30] sm:$0xf]
      %v448 = vld [vmem:[%s434 + $0x34] sm:$0xf]
      %v449 = vld [vmem:[%s434 + $0x38] sm:$0xf]
      %v450 = vld [vmem:[%s434 + $0x3c] sm:$0xf]
      %v467 = vunpack.c.l.b16 %v435
      %v468 = vunpack.c.l.b16 %v436
      %v469 = vunpack.c.l.b16 %v437
      %v470 = vunpack.c.l.b16 %v438
      %v471 = vunpack.c.l.b16 %v439
      %v472 = vunpack.c.l.b16 %v440
      %v473 = vunpack.c.l.b16 %v441
      %v474 = vunpack.c.l.b16 %v442
      %v475 = vunpack.c.l.b16 %v443
      %v476 = vunpack.c.l.b16 %v444
      %v477 = vunpack.c.l.b16 %v445
      %v478 = vunpack.c.l.b16 %v446
      %v479 = vunpack.c.l.b16 %v447
      %v480 = vunpack.c.l.b16 %v448
      %v481 = vunpack.c.l.b16 %v449
      %v482 = vunpack.c.l.b16 %v450
      %v483 = vpack.c.b16 %v468, %v467
      %v484 = vpack.c.b16 %v470, %v469
      %v485 = vpack.c.b16 %v472, %v471
      %v486 = vpack.c.b16 %v474, %v473
      %v487 = vpack.c.b16 %v476, %v475
      %v488 = vpack.c.b16 %v478, %v477
      %v489 = vpack.c.b16 %v480, %v479
      %v490 = vpack.c.b16 %v482, %v481
      %499 = vmatprep.subr.bf16.mxu0 0
      %500 = vmatpush1.bf16.msra.mxu0 %v483
      %501 = vmatprep.subr.bf16.mxu0 0
      %502 = vmatpush1.bf16.msra.mxu0 %v484
      %503 = vmatprep.subr.bf16.mxu0 0
      %504 = vmatpush1.bf16.msra.mxu0 %v485
      %505 = vmatprep.subr.bf16.mxu0 0
      %506 = vmatpush1.bf16.msra.mxu0 %v486
      %507 = vmatprep.subr.bf16.mxu0 0
      %508 = vmatpush1.bf16.msra.mxu0 %v487
      %509 = vmatprep.subr.bf16.mxu0 0
      %510 = vmatpush1.bf16.msra.mxu0 %v488
      %511 = vmatprep.subr.bf16.mxu0 0
      %512 = vmatpush1.bf16.msra.mxu0 %v489
      %513 = vmatprep.subr.bf16.mxu0 0
      %514 = vmatpush1.bf16.msra.mxu0 %v490
      %515 = vmatprep.subr.bf16.mxu0 0
      %516 = vmatpush1.bf16.msra.mxu0 0
      %517 = vmatprep.subr.bf16.mxu0 0
      %518 = vmatpush1.bf16.msra.mxu0 0
      %519 = vmatprep.subr.bf16.mxu0 0
      %520 = vmatpush1.bf16.msra.mxu0 0
      %521 = vmatprep.subr.bf16.mxu0 0
      %522 = vmatpush1.bf16.msra.mxu0 0
      %523 = vmatprep.subr.bf16.mxu0 0
      %524 = vmatpush1.bf16.msra.mxu0 0
      %525 = vmatprep.subr.bf16.mxu0 0
      %526 = vmatpush1.bf16.msra.mxu0 0
      %527 = vmatprep.subr.bf16.mxu0 0
      %528 = vmatpush1.bf16.msra.mxu0 0
      %529 = vmatprep.subr.bf16.mxu0 0
      %530 = vmatpush1.bf16.msra.mxu0 0
      %531 = vmatprep.mubr.bf16.mxu0 0
      %532 = vmatmul.mubr.bf16.gmra.mrb[0].mxu0 %v430
      %v533 = vpop.f32.mrb[0].mxu0
      %v534 = vadd.f32 0.0, %v533
      %v535 = vpop.f32.mrb[0].mxu0
      %v536 = vpop.f32.mrb[0].mxu0
      %v537 = vadd.f32 0.0, %v536
      %v538 = vpop.f32.mrb[0].mxu0
      %539 = vmatprep.mubr.bf16.mxu0 0
      %540 = vmatmul.mubr.bf16.gmra.mrb[0].mxu0 %v431
      %v541 = vpop.f32.mrb[0].mxu0
      %v542 = vadd.f32 0.0, %v541
      %v543 = vpop.f32.mrb[0].mxu0
      %v544 = vpop.f32.mrb[0].mxu0
      %v545 = vadd.f32 0.0, %v544
      %v546 = vpop.f32.mrb[0].mxu0
      %547 = vmatprep.mubr.bf16.mxu0 0
      %548 = vmatmul.mubr.bf16.gmra.mrb[0].mxu0 %v432
      %v549 = vpop.f32.mrb[0].mxu0
      %v550 = vadd.f32 0.0, %v549
      %v551 = vpop.f32.mrb[0].mxu0
      %v552 = vpop.f32.mrb[0].mxu0
      %v553 = vadd.f32 0.0, %v552
      %v554 = vpop.f32.mrb[0].mxu0
      %555 = vmatprep.mubr.bf16.mxu0 0
      %556 = vmatmul.mubr.bf16.gmra.mrb[0].mxu0 %v433
      %v557 = vpop.f32.mrb[0].mxu0
      %v558 = vadd.f32 0.0, %v557
      %v559 = vpop.f32.mrb[0].mxu0
      %v560 = vpop.f32.mrb[0].mxu0
      %v561 = vadd.f32 0.0, %v560
      %v562 = vpop.f32.mrb[0].mxu0
      %563 = vdwg.mxu0
      %v580 = vunpack.c.l.b16 %v406
      %v581 = vunpack.c.l.b16 %v407
      %v582 = vunpack.c.l.b16 %v408
      %v583 = vunpack.c.l.b16 %v409
      %v584 = vunpack.c.l.b16 %v410
      %v585 = vunpack.c.l.b16 %v411
      %v586 = vunpack.c.l.b16 %v412
      %v587 = vunpack.c.l.b16 %v413
      %v588 = vunpack.c.l.b16 %v414
      %v589 = vunpack.c.l.b16 %v415
      %v590 = vunpack.c.l.b16 %v416
      %v591 = vunpack.c.l.b16 %v417
      %v592 = vunpack.c.l.b16 %v418
      %v593 = vunpack.c.l.b16 %v419
      %v594 = vunpack.c.l.b16 %v420
      %v595 = vunpack.c.l.b16 %v421
      %v596 = vpack.c.b16 %v581, %v580
      %v597 = vpack.c.b16 %v583, %v582
      %v598 = vpack.c.b16 %v585, %v584
      %v599 = vpack.c.b16 %v587, %v586
      %v600 = vpack.c.b16 %v589, %v588
      %v601 = vpack.c.b16 %v591, %v590
      %v602 = vpack.c.b16 %v593, %v592
      %v603 = vpack.c.b16 %v595, %v594
      %612 = vmatprep.subr.bf16.mxu0 0
      %613 = vmatpush1.bf16.msra.mxu0 %v596
      %614 = vmatprep.subr.bf16.mxu0 0
      %615 = vmatpush1.bf16.msra.mxu0 %v597
      %616 = vmatprep.subr.bf16.mxu0 0
      %617 = vmatpush1.bf16.msra.mxu0 %v598
      %618 = vmatprep.subr.bf16.mxu0 0
      %619 = vmatpush1.bf16.msra.mxu0 %v599
      %620 = vmatprep.subr.bf16.mxu0 0
      %621 = vmatpush1.bf16.msra.mxu0 %v600
      %622 = vmatprep.subr.bf16.mxu0 0
      %623 = vmatpush1.bf16.msra.mxu0 %v601
      %624 = vmatprep.subr.bf16.mxu0 0
      %625 = vmatpush1.bf16.msra.mxu0 %v602
      %626 = vmatprep.subr.bf16.mxu0 0
      %627 = vmatpush1.bf16.msra.mxu0 %v603
      %628 = vmatprep.subr.bf16.mxu0 0
      %629 = vmatpush1.bf16.msra.mxu0 0
      %630 = vmatprep.subr.bf16.mxu0 0
      %631 = vmatpush1.bf16.msra.mxu0 0
      %632 = vmatprep.subr.bf16.mxu0 0
      %633 = vmatpush1.bf16.msra.mxu0 0
      %634 = vmatprep.subr.bf16.mxu0 0
      %635 = vmatpush1.bf16.msra.mxu0 0
      %636 = vmatprep.subr.bf16.mxu0 0
      %637 = vmatpush1.bf16.msra.mxu0 0
      %638 = vmatprep.subr.bf16.mxu0 0
      %639 = vmatpush1.bf16.msra.mxu0 0
      %640 = vmatprep.subr.bf16.mxu0 0
      %641 = vmatpush1.bf16.msra.mxu0 0
      %642 = vmatprep.subr.bf16.mxu0 0
      %643 = vmatpush1.bf16.msra.mxu0 0
      %644 = vmatprep.mubr.bf16.mxu0 0
      %645 = vmatmul.mubr.bf16.gmra.mrb[0].mxu0 %v402
      %v646 = vpop.f32.mrb[0].mxu0
      %v647 = vadd.f32 %v534, %v646
      %v648 = vpop.f32.mrb[0].mxu0
      %v649 = vpop.f32.mrb[0].mxu0
      %v650 = vadd.f32 %v537, %v649
      %v651 = vpop.f32.mrb[0].mxu0
      %652 = vmatprep.mubr.bf16.mxu0 0
      %653 = vmatmul.mubr.bf16.gmra.mrb[0].mxu0 %v403
      %v654 = vpop.f32.mrb[0].mxu0
      %v655 = vadd.f32 %v542, %v654
      %v656 = vpop.f32.mrb[0].mxu0
      %v657 = vpop.f32.mrb[0].mxu0
      %v658 = vadd.f32 %v545, %v657
      %v659 = vpop.f32.mrb[0].mxu0
      %660 = vmatprep.mubr.bf16.mxu0 0
      %661 = vmatmul.mubr.bf16.gmra.mrb[0].mxu0 %v404
      %v662 = vpop.f32.mrb[0].mxu0
      %v663 = vadd.f32 %v550, %v662
      %v664 = vpop.f32.mrb[0].mxu0
      %v665 = vpop.f32.mrb[0].mxu0
      %v666 = vadd.f32 %v553, %v665
      %v667 = vpop.f32.mrb[0].mxu0
      %668 = vmatprep.mubr.bf16.mxu0 0
      %669 = vmatmul.mubr.bf16.gmra.mrb[0].mxu0 %v405
      %v670 = vpop.f32.mrb[0].mxu0
      %v671 = vadd.f32 %v558, %v670
      %v672 = vpop.f32.mrb[0].mxu0
      %v673 = vpop.f32.mrb[0].mxu0
      %v674 = vadd.f32 %v561, %v673
      %v675 = vpop.f32.mrb[0].mxu0
      %676 = vdwg.mxu0
      %v677 = vld [vmem:[#allocation2 + $0x2] sm:$0xff]
      %v678 = vld [vmem:[#allocation2 + $0x12] sm:$0xff]
      %v679 = vld [vmem:[#allocation2 + $0x22] sm:$0xff]
      %v680 = vld [vmem:[#allocation2 + $0x32] sm:$0xff]
      %v681 = vld [vmem:[#allocation2 + $0x42] sm:$0xff]
      %v682 = vld [vmem:[#allocation2 + $0x52] sm:$0xff]
      %v683 = vld [vmem:[#allocation2 + $0x62] sm:$0xff]
      %v684 = vld [vmem:[#allocation2 + $0x72] sm:$0xff]
      %v685 = vpack.c.bf16 %v678, %v677
      %v686 = vpack.c.bf16 %v680, %v679
      %v687 = vpack.c.bf16 %v682, %v681
      %v688 = vpack.c.bf16 %v684, %v683
      %s689 = scalar_lea.vmem %s3, 128
      %v690 = vld [vmem:[%s689] sm:$0xf]
      %v691 = vld [vmem:[%s689 + $0x4] sm:$0xf]
      %v692 = vld [vmem:[%s689 + $0x8] sm:$0xf]
      %v693 = vld [vmem:[%s689 + $0xc] sm:$0xf]
      %v694 = vld [vmem:[%s689 + $0x10] sm:$0xf]
      %v695 = vld [vmem:[%s689 + $0x14] sm:$0xf]
      %v696 = vld [vmem:[%s689 + $0x18] sm:$0xf]
      %v697 = vld [vmem:[%s689 + $0x1c] sm:$0xf]
      %v698 = vld [vmem:[%s689 + $0x20] sm:$0xf]
      %v699 = vld [vmem:[%s689 + $0x24] sm:$0xf]
      %v700 = vld [vmem:[%s689 + $0x28] sm:$0xf]
      %v701 = vld [vmem:[%s689 + $0x2c] sm:$0xf]
      %v702 = vld [vmem:[%s689 + $0x30] sm:$0xf]
      %v703 = vld [vmem:[%s689 + $0x34] sm:$0xf]
      %v704 = vld [vmem:[%s689 + $0x38] sm:$0xf]
      %v705 = vld [vmem:[%s689 + $0x3c] sm:$0xf]
      %v722 = vunpack.c.l.b16 %v690
      %v723 = vunpack.c.l.b16 %v691
      %v724 = vunpack.c.l.b16 %v692
      %v725 = vunpack.c.l.b16 %v693
      %v726 = vunpack.c.l.b16 %v694
      %v727 = vunpack.c.l.b16 %v695
      %v728 = vunpack.c.l.b16 %v696
      %v729 = vunpack.c.l.b16 %v697
      %v730 = vunpack.c.l.b16 %v698
      %v731 = vunpack.c.l.b16 %v699
      %v732 = vunpack.c.l.b16 %v700
      %v733 = vunpack.c.l.b16 %v701
      %v734 = vunpack.c.l.b16 %v702
      %v735 = vunpack.c.l.b16 %v703
      %v736 = vunpack.c.l.b16 %v704
      %v737 = vunpack.c.l.b16 %v705
      %v738 = vpack.c.b16 %v723, %v722
      %v739 = vpack.c.b16 %v725, %v724
      %v740 = vpack.c.b16 %v727, %v726
      %v741 = vpack.c.b16 %v729, %v728
      %v742 = vpack.c.b16 %v731, %v730
      %v743 = vpack.c.b16 %v733, %v732
      %v744 = vpack.c.b16 %v735, %v734
      %v745 = vpack.c.b16 %v737, %v736
      %754 = vmatprep.subr.bf16.mxu0 0
      %755 = vmatpush1.bf16.msra.mxu0 %v738
      %756 = vmatprep.subr.bf16.mxu0 0
      %757 = vmatpush1.bf16.msra.mxu0 %v739
      %758 = vmatprep.subr.bf16.mxu0 0
      %759 = vmatpush1.bf16.msra.mxu0 %v740
      %760 = vmatprep.subr.bf16.mxu0 0
      %761 = vmatpush1.bf16.msra.mxu0 %v741
      %762 = vmatprep.subr.bf16.mxu0 0
      %763 = vmatpush1.bf16.msra.mxu0 %v742
      %764 = vmatprep.subr.bf16.mxu0 0
      %765 = vmatpush1.bf16.msra.mxu0 %v743
      %766 = vmatprep.subr.bf16.mxu0 0
      %767 = vmatpush1.bf16.msra.mxu0 %v744
      %768 = vmatprep.subr.bf16.mxu0 0
      %769 = vmatpush1.bf16.msra.mxu0 %v745
      %770 = vmatprep.subr.bf16.mxu0 0
      %771 = vmatpush1.bf16.msra.mxu0 0
      %772 = vmatprep.subr.bf16.mxu0 0
      %773 = vmatpush1.bf16.msra.mxu0 0
      %774 = vmatprep.subr.bf16.mxu0 0
      %775 = vmatpush1.bf16.msra.mxu0 0
      %776 = vmatprep.subr.bf16.mxu0 0
      %777 = vmatpush1.bf16.msra.mxu0 0
      %778 = vmatprep.subr.bf16.mxu0 0
      %779 = vmatpush1.bf16.msra.mxu0 0
      %780 = vmatprep.subr.bf16.mxu0 0
      %781 = vmatpush1.bf16.msra.mxu0 0
      %782 = vmatprep.subr.bf16.mxu0 0
      %783 = vmatpush1.bf16.msra.mxu0 0
      %784 = vmatprep.subr.bf16.mxu0 0
      %785 = vmatpush1.bf16.msra.mxu0 0
      %786 = vmatprep.mubr.bf16.mxu0 0
      %787 = vmatmul.mubr.bf16.gmra.mrb[0].mxu0 %v685
      %v788 = vpop.f32.mrb[0].mxu0
      %v789 = vadd.f32 0.0, %v788
      %v790 = vpop.f32.mrb[0].mxu0
      %v791 = vpop.f32.mrb[0].mxu0
      %v792 = vadd.f32 0.0, %v791
      %v793 = vpop.f32.mrb[0].mxu0
      %794 = vmatprep.mubr.bf16.mxu0 0
      %795 = vmatmul.mubr.bf16.gmra.mrb[0].mxu0 %v686
      %v796 = vpop.f32.mrb[0].mxu0
      %v797 = vadd.f32 0.0, %v796
      %v798 = vpop.f32.mrb[0].mxu0
      %v799 = vpop.f32.mrb[0].mxu0
      %v800 = vadd.f32 0.0, %v799
      %v801 = vpop.f32.mrb[0].mxu0
      %802 = vmatprep.mubr.bf16.mxu0 0
      %803 = vmatmul.mubr.bf16.gmra.mrb[0].mxu0 %v687
      %v804 = vpop.f32.mrb[0].mxu0
      %v805 = vadd.f32 0.0, %v804
      %v806 = vpop.f32.mrb[0].mxu0
      %v807 = vpop.f32.mrb[0].mxu0
      %v808 = vadd.f32 0.0, %v807
      %v809 = vpop.f32.mrb[0].mxu0
      %810 = vmatprep.mubr.bf16.mxu0 0
      %811 = vmatmul.mubr.bf16.gmra.mrb[0].mxu0 %v688
      %v812 = vpop.f32.mrb[0].mxu0
      %v813 = vadd.f32 0.0, %v812
      %v814 = vpop.f32.mrb[0].mxu0
      %v815 = vpop.f32.mrb[0].mxu0
      %v816 = vadd.f32 0.0, %v815
      %v817 = vpop.f32.mrb[0].mxu0
      %818 = vdwg.mxu0
      %v819 = vadd.f32 %v647, %v789
      %v820 = vadd.f32 %v650, %v792
      %v821 = vadd.f32 %v655, %v797
      %v822 = vadd.f32 %v658, %v800
      %v823 = vadd.f32 %v663, %v805
      %v824 = vadd.f32 %v666, %v808
      %v825 = vadd.f32 %v671, %v813
      %v826 = vadd.f32 %v674, %v816
      %s827 = scalar_lea.vmem [#allocation2], 16
      %v828 = vld [vmem:[%s827] sm:$0xff]
      %v829 = vld [vmem:[%s827 + $0x10] sm:$0xff]
      %v830 = vld [vmem:[%s827 + $0x20] sm:$0xff]
      %v831 = vld [vmem:[%s827 + $0x30] sm:$0xff]
      %v832 = vld [vmem:[%s827 + $0x40] sm:$0xff]
      %v833 = vld [vmem:[%s827 + $0x50] sm:$0xff]
      %v834 = vld [vmem:[%s827 + $0x60] sm:$0xff]
      %v835 = vld [vmem:[%s827 + $0x70] sm:$0xff]
      %v836 = vpack.c.bf16 %v829, %v828
      %v837 = vpack.c.bf16 %v831, %v830
      %v838 = vpack.c.bf16 %v833, %v832
      %v839 = vpack.c.bf16 %v835, %v834
      %s840 = scalar_lea.vmem %s3, 192
      %v841 = vld [vmem:[%s840] sm:$0xf]
      %v842 = vld [vmem:[%s840 + $0x4] sm:$0xf]
      %v843 = vld [vmem:[%s840 + $0x8] sm:$0xf]
      %v844 = vld [vmem:[%s840 + $0xc] sm:$0xf]
      %v845 = vld [vmem:[%s840 + $0x10] sm:$0xf]
      %v846 = vld [vmem:[%s840 + $0x14] sm:$0xf]
      %v847 = vld [vmem:[%s840 + $0x18] sm:$0xf]
      %v848 = vld [vmem:[%s840 + $0x1c] sm:$0xf]
      %v849 = vld [vmem:[%s840 + $0x20] sm:$0xf]
      %v850 = vld [vmem:[%s840 + $0x24] sm:$0xf]
      %v851 = vld [vmem:[%s840 + $0x28] sm:$0xf]
      %v852 = vld [vmem:[%s840 + $0x2c] sm:$0xf]
      %v853 = vld [vmem:[%s840 + $0x30] sm:$0xf]
      %v854 = vld [vmem:[%s840 + $0x34] sm:$0xf]
      %v855 = vld [vmem:[%s840 + $0x38] sm:$0xf]
      %v856 = vld [vmem:[%s840 + $0x3c] sm:$0xf]
      %v873 = vunpack.c.l.b16 %v841
      %v874 = vunpack.c.l.b16 %v842
      %v875 = vunpack.c.l.b16 %v843
      %v876 = vunpack.c.l.b16 %v844
      %v877 = vunpack.c.l.b16 %v845
      %v878 = vunpack.c.l.b16 %v846
      %v879 = vunpack.c.l.b16 %v847
      %v880 = vunpack.c.l.b16 %v848
      %v881 = vunpack.c.l.b16 %v849
      %v882 = vunpack.c.l.b16 %v850
      %v883 = vunpack.c.l.b16 %v851
      %v884 = vunpack.c.l.b16 %v852
      %v885 = vunpack.c.l.b16 %v853
      %v886 = vunpack.c.l.b16 %v854
      %v887 = vunpack.c.l.b16 %v855
      %v888 = vunpack.c.l.b16 %v856
      %v889 = vpack.c.b16 %v874, %v873
      %v890 = vpack.c.b16 %v876, %v875
      %v891 = vpack.c.b16 %v878, %v877
      %v892 = vpack.c.b16 %v880, %v879
      %v893 = vpack.c.b16 %v882, %v881
      %v894 = vpack.c.b16 %v884, %v883
      %v895 = vpack.c.b16 %v886, %v885
      %v896 = vpack.c.b16 %v888, %v887
      %905 = vmatprep.subr.bf16.mxu0 0
      %906 = vmatpush1.bf16.msra.mxu0 %v889
      %907 = vmatprep.subr.bf16.mxu0 0
      %908 = vmatpush1.bf16.msra.mxu0 %v890
      %909 = vmatprep.subr.bf16.mxu0 0
      %910 = vmatpush1.bf16.msra.mxu0 %v891
      %911 = vmatprep.subr.bf16.mxu0 0
      %912 = vmatpush1.bf16.msra.mxu0 %v892
      %913 = vmatprep.subr.bf16.mxu0 0
      %914 = vmatpush1.bf16.msra.mxu0 %v893
      %915 = vmatprep.subr.bf16.mxu0 0
      %916 = vmatpush1.bf16.msra.mxu0 %v894
      %917 = vmatprep.subr.bf16.mxu0 0
      %918 = vmatpush1.bf16.msra.mxu0 %v895
      %919 = vmatprep.subr.bf16.mxu0 0
      %920 = vmatpush1.bf16.msra.mxu0 %v896
      %921 = vmatprep.subr.bf16.mxu0 0
      %922 = vmatpush1.bf16.msra.mxu0 0
      %923 = vmatprep.subr.bf16.mxu0 0
      %924 = vmatpush1.bf16.msra.mxu0 0
      %925 = vmatprep.subr.bf16.mxu0 0
      %926 = vmatpush1.bf16.msra.mxu0 0
      %927 = vmatprep.subr.bf16.mxu0 0
      %928 = vmatpush1.bf16.msra.mxu0 0
      %929 = vmatprep.subr.bf16.mxu0 0
      %930 = vmatpush1.bf16.msra.mxu0 0
      %931 = vmatprep.subr.bf16.mxu0 0
      %932 = vmatpush1.bf16.msra.mxu0 0
      %933 = vmatprep.subr.bf16.mxu0 0
      %934 = vmatpush1.bf16.msra.mxu0 0
      %935 = vmatprep.subr.bf16.mxu0 0
      %936 = vmatpush1.bf16.msra.mxu0 0
      %937 = vmatprep.mubr.bf16.mxu0 0
      %938 = vmatmul.mubr.bf16.gmra.mrb[0].mxu0 %v836
      %v939 = vpop.f32.mrb[0].mxu0
      %v940 = vadd.f32 0.0, %v939
      %v941 = vpop.f32.mrb[0].mxu0
      %v942 = vpop.f32.mrb[0].mxu0
      %v943 = vadd.f32 0.0, %v942
      %v944 = vpop.f32.mrb[0].mxu0
      %945 = vmatprep.mubr.bf16.mxu0 0
      %946 = vmatmul.mubr.bf16.gmra.mrb[0].mxu0 %v837
      %v947 = vpop.f32.mrb[0].mxu0
      %v948 = vadd.f32 0.0, %v947
      %v949 = vpop.f32.mrb[0].mxu0
      %v950 = vpop.f32.mrb[0].mxu0
      %v951 = vadd.f32 0.0, %v950
      %v952 = vpop.f32.mrb[0].mxu0
      %953 = vmatprep.mubr.bf16.mxu0 0
      %954 = vmatmul.mubr.bf16.gmra.mrb[0].mxu0 %v838
      %v955 = vpop.f32.mrb[0].mxu0
      %v956 = vadd.f32 0.0, %v955
      %v957 = vpop.f32.mrb[0].mxu0
      %v958 = vpop.f32.mrb[0].mxu0
      %v959 = vadd.f32 0.0, %v958
      %v960 = vpop.f32.mrb[0].mxu0
      %961 = vmatprep.mubr.bf16.mxu0 0
      %962 = vmatmul.mubr.bf16.gmra.mrb[0].mxu0 %v839
      %v963 = vpop.f32.mrb[0].mxu0
      %v964 = vadd.f32 0.0, %v963
      %v965 = vpop.f32.mrb[0].mxu0
      %v966 = vpop.f32.mrb[0].mxu0
      %v967 = vadd.f32 0.0, %v966
      %v968 = vpop.f32.mrb[0].mxu0
      %969 = vdwg.mxu0
      %v970 = vadd.f32 %v819, %v940
      %v971 = vadd.f32 %v820, %v943
      %v972 = vadd.f32 %v821, %v948
      %v973 = vadd.f32 %v822, %v951
      %v974 = vadd.f32 %v823, %v956
      %v975 = vadd.f32 %v824, %v959
      %v976 = vadd.f32 %v825, %v964
      %v977 = vadd.f32 %v826, %v967
      %v978 = vld [vmem:[%s827 + $0x1] sm:$0xff]
      %v979 = vld [vmem:[%s827 + $0x11] sm:$0xff]
      %v980 = vld [vmem:[%s827 + $0x21] sm:$0xff]
      %v981 = vld [vmem:[%s827 + $0x31] sm:$0xff]
      %v982 = vld [vmem:[%s827 + $0x41] sm:$0xff]
      %v983 = vld [vmem:[%s827 + $0x51] sm:$0xff]
      %v984 = vld [vmem:[%s827 + $0x61] sm:$0xff]
      %v985 = vld [vmem:[%s827 + $0x71] sm:$0xff]
      %v986 = vpack.c.bf16 %v979, %v978
      %v987 = vpack.c.bf16 %v981, %v980
      %v988 = vpack.c.bf16 %v983, %v982
      %v989 = vpack.c.bf16 %v985, %v984
      %s990 = scalar_lea.vmem %s3, 256
      %v991 = vld [vmem:[%s990] sm:$0xf]
      %v992 = vld [vmem:[%s990 + $0x4] sm:$0xf]
      %v993 = vld [vmem:[%s990 + $0x8] sm:$0xf]
      %v994 = vld [vmem:[%s990 + $0xc] sm:$0xf]
      %v995 = vld [vmem:[%s990 + $0x10] sm:$0xf]
      %v996 = vld [vmem:[%s990 + $0x14] sm:$0xf]
      %v997 = vld [vmem:[%s990 + $0x18] sm:$0xf]
      %v998 = vld [vmem:[%s990 + $0x1c] sm:$0xf]
      %v999 = vld [vmem:[%s990 + $0x20] sm:$0xf]
      %v1000 = vld [vmem:[%s990 + $0x24] sm:$0xf]
      %v1001 = vld [vmem:[%s990 + $0x28] sm:$0xf]
      %v1002 = vld [vmem:[%s990 + $0x2c] sm:$0xf]
      %v1003 = vld [vmem:[%s990 + $0x30] sm:$0xf]
      %v1004 = vld [vmem:[%s990 + $0x34] sm:$0xf]
      %v1005 = vld [vmem:[%s990 + $0x38] sm:$0xf]
      %v1006 = vld [vmem:[%s990 + $0x3c] sm:$0xf]
      %v1023 = vunpack.c.l.b16 %v991
      %v1024 = vunpack.c.l.b16 %v992
      %v1025 = vunpack.c.l.b16 %v993
      %v1026 = vunpack.c.l.b16 %v994
      %v1027 = vunpack.c.l.b16 %v995
      %v1028 = vunpack.c.l.b16 %v996
      %v1029 = vunpack.c.l.b16 %v997
      %v1030 = vunpack.c.l.b16 %v998
      %v1031 = vunpack.c.l.b16 %v999
      %v1032 = vunpack.c.l.b16 %v1000
      %v1033 = vunpack.c.l.b16 %v1001
      %v1034 = vunpack.c.l.b16 %v1002
      %v1035 = vunpack.c.l.b16 %v1003
      %v1036 = vunpack.c.l.b16 %v1004
      %v1037 = vunpack.c.l.b16 %v1005
      %v1038 = vunpack.c.l.b16 %v1006
      %v1039 = vpack.c.b16 %v1024, %v1023
      %v1040 = vpack.c.b16 %v1026, %v1025
      %v1041 = vpack.c.b16 %v1028, %v1027
      %v1042 = vpack.c.b16 %v1030, %v1029
      %v1043 = vpack.c.b16 %v1032, %v1031
      %v1044 = vpack.c.b16 %v1034, %v1033
      %v1045 = vpack.c.b16 %v1036, %v1035
      %v1046 = vpack.c.b16 %v1038, %v1037
      %1055 = vmatprep.subr.bf16.mxu0 0
      %1056 = vmatpush1.bf16.msra.mxu0 %v1039
      %1057 = vmatprep.subr.bf16.mxu0 0
      %1058 = vmatpush1.bf16.msra.mxu0 %v1040
      %1059 = vmatprep.subr.bf16.mxu0 0
      %1060 = vmatpush1.bf16.msra.mxu0 %v1041
      %1061 = vmatprep.subr.bf16.mxu0 0
      %1062 = vmatpush1.bf16.msra.mxu0 %v1042
      %1063 = vmatprep.subr.bf16.mxu0 0
      %1064 = vmatpush1.bf16.msra.mxu0 %v1043
      %1065 = vmatprep.subr.bf16.mxu0 0
      %1066 = vmatpush1.bf16.msra.mxu0 %v1044
      %1067 = vmatprep.subr.bf16.mxu0 0
      %1068 = vmatpush1.bf16.msra.mxu0 %v1045
      %1069 = vmatprep.subr.bf16.mxu0 0
      %1070 = vmatpush1.bf16.msra.mxu0 %v1046
      %1071 = vmatprep.subr.bf16.mxu0 0
      %1072 = vmatpush1.bf16.msra.mxu0 0
      %1073 = vmatprep.subr.bf16.mxu0 0
      %1074 = vmatpush1.bf16.msra.mxu0 0
      %1075 = vmatprep.subr.bf16.mxu0 0
      %1076 = vmatpush1.bf16.msra.mxu0 0
      %1077 = vmatprep.subr.bf16.mxu0 0
      %1078 = vmatpush1.bf16.msra.mxu0 0
      %1079 = vmatprep.subr.bf16.mxu0 0
      %1080 = vmatpush1.bf16.msra.mxu0 0
      %1081 = vmatprep.subr.bf16.mxu0 0
      %1082 = vmatpush1.bf16.msra.mxu0 0
      %1083 = vmatprep.subr.bf16.mxu0 0
      %1084 = vmatpush1.bf16.msra.mxu0 0
      %1085 = vmatprep.subr.bf16.mxu0 0
      %1086 = vmatpush1.bf16.msra.mxu0 0
      %1087 = vmatprep.mubr.bf16.mxu0 0
      %1088 = vmatmul.mubr.bf16.gmra.mrb[0].mxu0 %v986
      %v1089 = vpop.f32.mrb[0].mxu0
      %v1090 = vadd.f32 0.0, %v1089
      %v1091 = vpop.f32.mrb[0].mxu0
      %v1092 = vpop.f32.mrb[0].mxu0
      %v1093 = vadd.f32 0.0, %v1092
      %v1094 = vpop.f32.mrb[0].mxu0
      %1095 = vmatprep.mubr.bf16.mxu0 0
      %1096 = vmatmul.mubr.bf16.gmra.mrb[0].mxu0 %v987
      %v1097 = vpop.f32.mrb[0].mxu0
      %v1098 = vadd.f32 0.0, %v1097
      %v1099 = vpop.f32.mrb[0].mxu0
      %v1100 = vpop.f32.mrb[0].mxu0
      %v1101 = vadd.f32 0.0, %v1100
      %v1102 = vpop.f32.mrb[0].mxu0
      %1103 = vmatprep.mubr.bf16.mxu0 0
      %1104 = vmatmul.mubr.bf16.gmra.mrb[0].mxu0 %v988
      %v1105 = vpop.f32.mrb[0].mxu0
      %v1106 = vadd.f32 0.0, %v1105
      %v1107 = vpop.f32.mrb[0].mxu0
      %v1108 = vpop.f32.mrb[0].mxu0
      %v1109 = vadd.f32 0.0, %v1108
      %v1110 = vpop.f32.mrb[0].mxu0
      %1111 = vmatprep.mubr.bf16.mxu0 0
      %1112 = vmatmul.mubr.bf16.gmra.mrb[0].mxu0 %v989
      %v1113 = vpop.f32.mrb[0].mxu0
      %v1114 = vadd.f32 0.0, %v1113
      %v1115 = vpop.f32.mrb[0].mxu0
      %v1116 = vpop.f32.mrb[0].mxu0
      %v1117 = vadd.f32 0.0, %v1116
      %v1118 = vpop.f32.mrb[0].mxu0
      %1119 = vdwg.mxu0
      %v1120 = vadd.f32 %v970, %v1090
      %v1121 = vadd.f32 %v971, %v1093
      %v1122 = vadd.f32 %v972, %v1098
      %v1123 = vadd.f32 %v973, %v1101
      %v1124 = vadd.f32 %v974, %v1106
      %v1125 = vadd.f32 %v975, %v1109
      %v1126 = vadd.f32 %v976, %v1114
      %v1127 = vadd.f32 %v977, %v1117
      %v1128 = vld [vmem:[%s827 + $0x2] sm:$0xff]
      %v1129 = vld [vmem:[%s827 + $0x12] sm:$0xff]
      %v1130 = vld [vmem:[%s827 + $0x22] sm:$0xff]
      %v1131 = vld [vmem:[%s827 + $0x32] sm:$0xff]
      %v1132 = vld [vmem:[%s827 + $0x42] sm:$0xff]
      %v1133 = vld [vmem:[%s827 + $0x52] sm:$0xff]
      %v1134 = vld [vmem:[%s827 + $0x62] sm:$0xff]
      %v1135 = vld [vmem:[%s827 + $0x72] sm:$0xff]
      %v1136 = vpack.c.bf16 %v1129, %v1128
      %v1137 = vpack.c.bf16 %v1131, %v1130
      %v1138 = vpack.c.bf16 %v1133, %v1132
      %v1139 = vpack.c.bf16 %v1135, %v1134
      %s1140 = scalar_lea.vmem %s3, 320
      %v1141 = vld [vmem:[%s1140] sm:$0xf]
      %v1142 = vld [vmem:[%s1140 + $0x4] sm:$0xf]
      %v1143 = vld [vmem:[%s1140 + $0x8] sm:$0xf]
      %v1144 = vld [vmem:[%s1140 + $0xc] sm:$0xf]
      %v1145 = vld [vmem:[%s1140 + $0x10] sm:$0xf]
      %v1146 = vld [vmem:[%s1140 + $0x14] sm:$0xf]
      %v1147 = vld [vmem:[%s1140 + $0x18] sm:$0xf]
      %v1148 = vld [vmem:[%s1140 + $0x1c] sm:$0xf]
      %v1149 = vld [vmem:[%s1140 + $0x20] sm:$0xf]
      %v1150 = vld [vmem:[%s1140 + $0x24] sm:$0xf]
      %v1151 = vld [vmem:[%s1140 + $0x28] sm:$0xf]
      %v1152 = vld [vmem:[%s1140 + $0x2c] sm:$0xf]
      %v1153 = vld [vmem:[%s1140 + $0x30] sm:$0xf]
      %v1154 = vld [vmem:[%s1140 + $0x34] sm:$0xf]
      %v1155 = vld [vmem:[%s1140 + $0x38] sm:$0xf]
      %v1156 = vld [vmem:[%s1140 + $0x3c] sm:$0xf]
      %v1173 = vunpack.c.l.b16 %v1141
      %v1174 = vunpack.c.l.b16 %v1142
      %v1175 = vunpack.c.l.b16 %v1143
      %v1176 = vunpack.c.l.b16 %v1144
      %v1177 = vunpack.c.l.b16 %v1145
      %v1178 = vunpack.c.l.b16 %v1146
      %v1179 = vunpack.c.l.b16 %v1147
      %v1180 = vunpack.c.l.b16 %v1148
      %v1181 = vunpack.c.l.b16 %v1149
      %v1182 = vunpack.c.l.b16 %v1150
      %v1183 = vunpack.c.l.b16 %v1151
      %v1184 = vunpack.c.l.b16 %v1152
      %v1185 = vunpack.c.l.b16 %v1153
      %v1186 = vunpack.c.l.b16 %v1154
      %v1187 = vunpack.c.l.b16 %v1155
      %v1188 = vunpack.c.l.b16 %v1156
      %v1189 = vpack.c.b16 %v1174, %v1173
      %v1190 = vpack.c.b16 %v1176, %v1175
      %v1191 = vpack.c.b16 %v1178, %v1177
      %v1192 = vpack.c.b16 %v1180, %v1179
      %v1193 = vpack.c.b16 %v1182, %v1181
      %v1194 = vpack.c.b16 %v1184, %v1183
      %v1195 = vpack.c.b16 %v1186, %v1185
      %v1196 = vpack.c.b16 %v1188, %v1187
      %1205 = vmatprep.subr.bf16.mxu0 0
      %1206 = vmatpush1.bf16.msra.mxu0 %v1189
      %1207 = vmatprep.subr.bf16.mxu0 0
      %1208 = vmatpush1.bf16.msra.mxu0 %v1190
      %1209 = vmatprep.subr.bf16.mxu0 0
      %1210 = vmatpush1.bf16.msra.mxu0 %v1191
      %1211 = vmatprep.subr.bf16.mxu0 0
      %1212 = vmatpush1.bf16.msra.mxu0 %v1192
      %1213 = vmatprep.subr.bf16.mxu0 0
      %1214 = vmatpush1.bf16.msra.mxu0 %v1193
      %1215 = vmatprep.subr.bf16.mxu0 0
      %1216 = vmatpush1.bf16.msra.mxu0 %v1194
      %1217 = vmatprep.subr.bf16.mxu0 0
      %1218 = vmatpush1.bf16.msra.mxu0 %v1195
      %1219 = vmatprep.subr.bf16.mxu0 0
      %1220 = vmatpush1.bf16.msra.mxu0 %v1196
      %1221 = vmatprep.subr.bf16.mxu0 0
      %1222 = vmatpush1.bf16.msra.mxu0 0
      %1223 = vmatprep.subr.bf16.mxu0 0
      %1224 = vmatpush1.bf16.msra.mxu0 0
      %1225 = vmatprep.subr.bf16.mxu0 0
      %1226 = vmatpush1.bf16.msra.mxu0 0
      %1227 = vmatprep.subr.bf16.mxu0 0
      %1228 = vmatpush1.bf16.msra.mxu0 0
      %1229 = vmatprep.subr.bf16.mxu0 0
      %1230 = vmatpush1.bf16.msra.mxu0 0
      %1231 = vmatprep.subr.bf16.mxu0 0
      %1232 = vmatpush1.bf16.msra.mxu0 0
      %1233 = vmatprep.subr.bf16.mxu0 0
      %1234 = vmatpush1.bf16.msra.mxu0 0
      %1235 = vmatprep.subr.bf16.mxu0 0
      %1236 = vmatpush1.bf16.msra.mxu0 0
      %1237 = vmatprep.mubr.bf16.mxu0 0
      %1238 = vmatmul.mubr.bf16.gmra.mrb[0].mxu0 %v1136
      %v1239 = vpop.f32.mrb[0].mxu0
      %v1240 = vadd.f32 0.0, %v1239
      %v1241 = vpop.f32.mrb[0].mxu0
      %v1242 = vpop.f32.mrb[0].mxu0
      %v1243 = vadd.f32 0.0, %v1242
      %v1244 = vpop.f32.mrb[0].mxu0
      %1245 = vmatprep.mubr.bf16.mxu0 0
      %1246 = vmatmul.mubr.bf16.gmra.mrb[0].mxu0 %v1137
      %v1247 = vpop.f32.mrb[0].mxu0
      %v1248 = vadd.f32 0.0, %v1247
      %v1249 = vpop.f32.mrb[0].mxu0
      %v1250 = vpop.f32.mrb[0].mxu0
      %v1251 = vadd.f32 0.0, %v1250
      %v1252 = vpop.f32.mrb[0].mxu0
      %1253 = vmatprep.mubr.bf16.mxu0 0
      %1254 = vmatmul.mubr.bf16.gmra.mrb[0].mxu0 %v1138
      %v1255 = vpop.f32.mrb[0].mxu0
      %v1256 = vadd.f32 0.0, %v1255
      %v1257 = vpop.f32.mrb[0].mxu0
      %v1258 = vpop.f32.mrb[0].mxu0
      %v1259 = vadd.f32 0.0, %v1258
      %v1260 = vpop.f32.mrb[0].mxu0
      %1261 = vmatprep.mubr.bf16.mxu0 0
      %1262 = vmatmul.mubr.bf16.gmra.mrb[0].mxu0 %v1139
      %v1263 = vpop.f32.mrb[0].mxu0
      %v1264 = vadd.f32 0.0, %v1263
      %v1265 = vpop.f32.mrb[0].mxu0
      %v1266 = vpop.f32.mrb[0].mxu0
      %v1267 = vadd.f32 0.0, %v1266
      %v1268 = vpop.f32.mrb[0].mxu0
      %1269 = vdwg.mxu0
      %v1270 = vadd.f32 %v1120, %v1240
      %v1271 = vadd.f32 %v1121, %v1243
      %v1272 = vadd.f32 %v1122, %v1248
      %v1273 = vadd.f32 %v1123, %v1251
      %v1274 = vadd.f32 %v1124, %v1256
      %v1275 = vadd.f32 %v1125, %v1259
      %v1276 = vadd.f32 %v1126, %v1264
      %v1277 = vadd.f32 %v1127, %v1267
      %s1278 = scalar_lea.vmem [#allocation2], 32
      %v1279 = vld [vmem:[%s1278] sm:$0xff]
      %v1280 = vld [vmem:[%s1278 + $0x10] sm:$0xff]
      %v1281 = vld [vmem:[%s1278 + $0x20] sm:$0xff]
      %v1282 = vld [vmem:[%s1278 + $0x30] sm:$0xff]
      %v1283 = vld [vmem:[%s1278 + $0x40] sm:$0xff]
      %v1284 = vld [vmem:[%s1278 + $0x50] sm:$0xff]
      %v1285 = vld [vmem:[%s1278 + $0x60] sm:$0xff]
      %v1286 = vld [vmem:[%s1278 + $0x70] sm:$0xff]
      %v1287 = vpack.c.bf16 %v1280, %v1279
      %v1288 = vpack.c.bf16 %v1282, %v1281
      %v1289 = vpack.c.bf16 %v1284, %v1283
      %v1290 = vpack.c.bf16 %v1286, %v1285
      %s1291 = scalar_lea.vmem %s3, 384
      %v1292 = vld [vmem:[%s1291] sm:$0xf]
      %v1293 = vld [vmem:[%s1291 + $0x4] sm:$0xf]
      %v1294 = vld [vmem:[%s1291 + $0x8] sm:$0xf]
      %v1295 = vld [vmem:[%s1291 + $0xc] sm:$0xf]
      %v1296 = vld [vmem:[%s1291 + $0x10] sm:$0xf]
      %v1297 = vld [vmem:[%s1291 + $0x14] sm:$0xf]
      %v1298 = vld [vmem:[%s1291 + $0x18] sm:$0xf]
      %v1299 = vld [vmem:[%s1291 + $0x1c] sm:$0xf]
      %v1300 = vld [vmem:[%s1291 + $0x20] sm:$0xf]
      %v1301 = vld [vmem:[%s1291 + $0x24] sm:$0xf]
      %v1302 = vld [vmem:[%s1291 + $0x28] sm:$0xf]
      %v1303 = vld [vmem:[%s1291 + $0x2c] sm:$0xf]
      %v1304 = vld [vmem:[%s1291 + $0x30] sm:$0xf]
      %v1305 = vld [vmem:[%s1291 + $0x34] sm:$0xf]
      %v1306 = vld [vmem:[%s1291 + $0x38] sm:$0xf]
      %v1307 = vld [vmem:[%s1291 + $0x3c] sm:$0xf]
      %v1324 = vunpack.c.l.b16 %v1292
      %v1325 = vunpack.c.l.b16 %v1293
      %v1326 = vunpack.c.l.b16 %v1294
      %v1327 = vunpack.c.l.b16 %v1295
      %v1328 = vunpack.c.l.b16 %v1296
      %v1329 = vunpack.c.l.b16 %v1297
      %v1330 = vunpack.c.l.b16 %v1298
      %v1331 = vunpack.c.l.b16 %v1299
      %v1332 = vunpack.c.l.b16 %v1300
      %v1333 = vunpack.c.l.b16 %v1301
      %v1334 = vunpack.c.l.b16 %v1302
      %v1335 = vunpack.c.l.b16 %v1303
      %v1336 = vunpack.c.l.b16 %v1304
      %v1337 = vunpack.c.l.b16 %v1305
      %v1338 = vunpack.c.l.b16 %v1306
      %v1339 = vunpack.c.l.b16 %v1307
      %v1340 = vpack.c.b16 %v1325, %v1324
      %v1341 = vpack.c.b16 %v1327, %v1326
      %v1342 = vpack.c.b16 %v1329, %v1328
      %v1343 = vpack.c.b16 %v1331, %v1330
      %v1344 = vpack.c.b16 %v1333, %v1332
      %v1345 = vpack.c.b16 %v1335, %v1334
      %v1346 = vpack.c.b16 %v1337, %v1336
      %v1347 = vpack.c.b16 %v1339, %v1338
      %1356 = vmatprep.subr.bf16.mxu0 0
      %1357 = vmatpush1.bf16.msra.mxu0 %v1340
      %1358 = vmatprep.subr.bf16.mxu0 0
      %1359 = vmatpush1.bf16.msra.mxu0 %v1341
      %1360 = vmatprep.subr.bf16.mxu0 0
      %1361 = vmatpush1.bf16.msra.mxu0 %v1342
      %1362 = vmatprep.subr.bf16.mxu0 0
      %1363 = vmatpush1.bf16.msra.mxu0 %v1343
      %1364 = vmatprep.subr.bf16.mxu0 0
      %1365 = vmatpush1.bf16.msra.mxu0 %v1344
      %1366 = vmatprep.subr.bf16.mxu0 0
      %1367 = vmatpush1.bf16.msra.mxu0 %v1345
      %1368 = vmatprep.subr.bf16.mxu0 0
      %1369 = vmatpush1.bf16.msra.mxu0 %v1346
      %1370 = vmatprep.subr.bf16.mxu0 0
      %1371 = vmatpush1.bf16.msra.mxu0 %v1347
      %1372 = vmatprep.subr.bf16.mxu0 0
      %1373 = vmatpush1.bf16.msra.mxu0 0
      %1374 = vmatprep.subr.bf16.mxu0 0
      %1375 = vmatpush1.bf16.msra.mxu0 0
      %1376 = vmatprep.subr.bf16.mxu0 0
      %1377 = vmatpush1.bf16.msra.mxu0 0
      %1378 = vmatprep.subr.bf16.mxu0 0
      %1379 = vmatpush1.bf16.msra.mxu0 0
      %1380 = vmatprep.subr.bf16.mxu0 0
      %1381 = vmatpush1.bf16.msra.mxu0 0
      %1382 = vmatprep.subr.bf16.mxu0 0
      %1383 = vmatpush1.bf16.msra.mxu0 0
      %1384 = vmatprep.subr.bf16.mxu0 0
      %1385 = vmatpush1.bf16.msra.mxu0 0
      %1386 = vmatprep.subr.bf16.mxu0 0
      %1387 = vmatpush1.bf16.msra.mxu0 0
      %1388 = vmatprep.mubr.bf16.mxu0 0
      %1389 = vmatmul.mubr.bf16.gmra.mrb[0].mxu0 %v1287
      %v1390 = vpop.f32.mrb[0].mxu0
      %v1391 = vadd.f32 0.0, %v1390
      %v1392 = vpop.f32.mrb[0].mxu0
      %v1393 = vpop.f32.mrb[0].mxu0
      %v1394 = vadd.f32 0.0, %v1393
      %v1395 = vpop.f32.mrb[0].mxu0
      %1396 = vmatprep.mubr.bf16.mxu0 0
      %1397 = vmatmul.mubr.bf16.gmra.mrb[0].mxu0 %v1288
      %v1398 = vpop.f32.mrb[0].mxu0
      %v1399 = vadd.f32 0.0, %v1398
      %v1400 = vpop.f32.mrb[0].mxu0
      %v1401 = vpop.f32.mrb[0].mxu0
      %v1402 = vadd.f32 0.0, %v1401
      %v1403 = vpop.f32.mrb[0].mxu0
      %1404 = vmatprep.mubr.bf16.mxu0 0
      %1405 = vmatmul.mubr.bf16.gmra.mrb[0].mxu0 %v1289
      %v1406 = vpop.f32.mrb[0].mxu0
      %v1407 = vadd.f32 0.0, %v1406
      %v1408 = vpop.f32.mrb[0].mxu0
      %v1409 = vpop.f32.mrb[0].mxu0
      %v1410 = vadd.f32 0.0, %v1409
      %v1411 = vpop.f32.mrb[0].mxu0
      %1412 = vmatprep.mubr.bf16.mxu0 0
      %1413 = vmatmul.mubr.bf16.gmra.mrb[0].mxu0 %v1290
      %v1414 = vpop.f32.mrb[0].mxu0
      %v1415 = vadd.f32 0.0, %v1414
      %v1416 = vpop.f32.mrb[0].mxu0
      %v1417 = vpop.f32.mrb[0].mxu0
      %v1418 = vadd.f32 0.0, %v1417
      %v1419 = vpop.f32.mrb[0].mxu0
      %1420 = vdwg.mxu0
      %v1421 = vadd.f32 %v1270, %v1391
      %v1422 = vadd.f32 %v1271, %v1394
      %v1423 = vadd.f32 %v1272, %v1399
      %v1424 = vadd.f32 %v1273, %v1402
      %v1425 = vadd.f32 %v1274, %v1407
      %v1426 = vadd.f32 %v1275, %v1410
      %v1427 = vadd.f32 %v1276, %v1415
      %v1428 = vadd.f32 %v1277, %v1418
      %v1429 = vld [vmem:[%s1278 + $0x1] sm:$0xff]
      %v1430 = vld [vmem:[%s1278 + $0x11] sm:$0xff]
      %v1431 = vld [vmem:[%s1278 + $0x21] sm:$0xff]
      %v1432 = vld [vmem:[%s1278 + $0x31] sm:$0xff]
      %v1433 = vld [vmem:[%s1278 + $0x41] sm:$0xff]
      %v1434 = vld [vmem:[%s1278 + $0x51] sm:$0xff]
      %v1435 = vld [vmem:[%s1278 + $0x61] sm:$0xff]
      %v1436 = vld [vmem:[%s1278 + $0x71] sm:$0xff]
      %v1437 = vpack.c.bf16 %v1430, %v1429
      %v1438 = vpack.c.bf16 %v1432, %v1431
      %v1439 = vpack.c.bf16 %v1434, %v1433
      %v1440 = vpack.c.bf16 %v1436, %v1435
      %s1441 = scalar_lea.vmem %s3, 448
      %v1442 = vld [vmem:[%s1441] sm:$0xf]
      %v1443 = vld [vmem:[%s1441 + $0x4] sm:$0xf]
      %v1444 = vld [vmem:[%s1441 + $0x8] sm:$0xf]
      %v1445 = vld [vmem:[%s1441 + $0xc] sm:$0xf]
      %v1446 = vld [vmem:[%s1441 + $0x10] sm:$0xf]
      %v1447 = vld [vmem:[%s1441 + $0x14] sm:$0xf]
      %v1448 = vld [vmem:[%s1441 + $0x18] sm:$0xf]
      %v1449 = vld [vmem:[%s1441 + $0x1c] sm:$0xf]
      %v1450 = vld [vmem:[%s1441 + $0x20] sm:$0xf]
      %v1451 = vld [vmem:[%s1441 + $0x24] sm:$0xf]
      %v1452 = vld [vmem:[%s1441 + $0x28] sm:$0xf]
      %v1453 = vld [vmem:[%s1441 + $0x2c] sm:$0xf]
      %v1454 = vld [vmem:[%s1441 + $0x30] sm:$0xf]
      %v1455 = vld [vmem:[%s1441 + $0x34] sm:$0xf]
      %v1456 = vld [vmem:[%s1441 + $0x38] sm:$0xf]
      %v1457 = vld [vmem:[%s1441 + $0x3c] sm:$0xf]
      %v1474 = vunpack.c.l.b16 %v1442
      %v1475 = vunpack.c.l.b16 %v1443
      %v1476 = vunpack.c.l.b16 %v1444
      %v1477 = vunpack.c.l.b16 %v1445
      %v1478 = vunpack.c.l.b16 %v1446
      %v1479 = vunpack.c.l.b16 %v1447
      %v1480 = vunpack.c.l.b16 %v1448
      %v1481 = vunpack.c.l.b16 %v1449
      %v1482 = vunpack.c.l.b16 %v1450
      %v1483 = vunpack.c.l.b16 %v1451
      %v1484 = vunpack.c.l.b16 %v1452
      %v1485 = vunpack.c.l.b16 %v1453
      %v1486 = vunpack.c.l.b16 %v1454
      %v1487 = vunpack.c.l.b16 %v1455
      %v1488 = vunpack.c.l.b16 %v1456
      %v1489 = vunpack.c.l.b16 %v1457
      %v1490 = vpack.c.b16 %v1475, %v1474
      %v1491 = vpack.c.b16 %v1477, %v1476
      %v1492 = vpack.c.b16 %v1479, %v1478
      %v1493 = vpack.c.b16 %v1481, %v1480
      %v1494 = vpack.c.b16 %v1483, %v1482
      %v1495 = vpack.c.b16 %v1485, %v1484
      %v1496 = vpack.c.b16 %v1487, %v1486
      %v1497 = vpack.c.b16 %v1489, %v1488
      %1506 = vmatprep.subr.bf16.mxu0 0
      %1507 = vmatpush1.bf16.msra.mxu0 %v1490
      %1508 = vmatprep.subr.bf16.mxu0 0
      %1509 = vmatpush1.bf16.msra.mxu0 %v1491
      %1510 = vmatprep.subr.bf16.mxu0 0
      %1511 = vmatpush1.bf16.msra.mxu0 %v1492
      %1512 = vmatprep.subr.bf16.mxu0 0
      %1513 = vmatpush1.bf16.msra.mxu0 %v1493
      %1514 = vmatprep.subr.bf16.mxu0 0
      %1515 = vmatpush1.bf16.msra.mxu0 %v1494
      %1516 = vmatprep.subr.bf16.mxu0 0
      %1517 = vmatpush1.bf16.msra.mxu0 %v1495
      %1518 = vmatprep.subr.bf16.mxu0 0
      %1519 = vmatpush1.bf16.msra.mxu0 %v1496
      %1520 = vmatprep.subr.bf16.mxu0 0
      %1521 = vmatpush1.bf16.msra.mxu0 %v1497
      %1522 = vmatprep.subr.bf16.mxu0 0
      %1523 = vmatpush1.bf16.msra.mxu0 0
      %1524 = vmatprep.subr.bf16.mxu0 0
      %1525 = vmatpush1.bf16.msra.mxu0 0
      %1526 = vmatprep.subr.bf16.mxu0 0
      %1527 = vmatpush1.bf16.msra.mxu0 0
      %1528 = vmatprep.subr.bf16.mxu0 0
      %1529 = vmatpush1.bf16.msra.mxu0 0
      %1530 = vmatprep.subr.bf16.mxu0 0
      %1531 = vmatpush1.bf16.msra.mxu0 0
      %1532 = vmatprep.subr.bf16.mxu0 0
      %1533 = vmatpush1.bf16.msra.mxu0 0
      %1534 = vmatprep.subr.bf16.mxu0 0
      %1535 = vmatpush1.bf16.msra.mxu0 0
      %1536 = vmatprep.subr.bf16.mxu0 0
      %1537 = vmatpush1.bf16.msra.mxu0 0
      %1538 = vmatprep.mubr.bf16.mxu0 0
      %1539 = vmatmul.mubr.bf16.gmra.mrb[0].mxu0 %v1437
      %v1540 = vpop.f32.mrb[0].mxu0
      %v1541 = vadd.f32 0.0, %v1540
      %v1542 = vpop.f32.mrb[0].mxu0
      %v1543 = vpop.f32.mrb[0].mxu0
      %v1544 = vadd.f32 0.0, %v1543
      %v1545 = vpop.f32.mrb[0].mxu0
      %1546 = vmatprep.mubr.bf16.mxu0 0
      %1547 = vmatmul.mubr.bf16.gmra.mrb[0].mxu0 %v1438
      %v1548 = vpop.f32.mrb[0].mxu0
      %v1549 = vadd.f32 0.0, %v1548
      %v1550 = vpop.f32.mrb[0].mxu0
      %v1551 = vpop.f32.mrb[0].mxu0
      %v1552 = vadd.f32 0.0, %v1551
      %v1553 = vpop.f32.mrb[0].mxu0
      %1554 = vmatprep.mubr.bf16.mxu0 0
      %1555 = vmatmul.mubr.bf16.gmra.mrb[0].mxu0 %v1439
      %v1556 = vpop.f32.mrb[0].mxu0
      %v1557 = vadd.f32 0.0, %v1556
      %v1558 = vpop.f32.mrb[0].mxu0
      %v1559 = vpop.f32.mrb[0].mxu0
      %v1560 = vadd.f32 0.0, %v1559
      %v1561 = vpop.f32.mrb[0].mxu0
      %1562 = vmatprep.mubr.bf16.mxu0 0
      %1563 = vmatmul.mubr.bf16.gmra.mrb[0].mxu0 %v1440
      %v1564 = vpop.f32.mrb[0].mxu0
      %v1565 = vadd.f32 0.0, %v1564
      %v1566 = vpop.f32.mrb[0].mxu0
      %v1567 = vpop.f32.mrb[0].mxu0
      %v1568 = vadd.f32 0.0, %v1567
      %v1569 = vpop.f32.mrb[0].mxu0
      %1570 = vdwg.mxu0
      %v1571 = vadd.f32 %v1421, %v1541
      %v1572 = vadd.f32 %v1422, %v1544
      %v1573 = vadd.f32 %v1423, %v1549
      %v1574 = vadd.f32 %v1424, %v1552
      %v1575 = vadd.f32 %v1425, %v1557
      %v1576 = vadd.f32 %v1426, %v1560
      %v1577 = vadd.f32 %v1427, %v1565
      %v1578 = vadd.f32 %v1428, %v1568
      %v1579 = vld [vmem:[%s1278 + $0x2] sm:$0xff]
      %v1580 = vld [vmem:[%s1278 + $0x12] sm:$0xff]
      %v1581 = vld [vmem:[%s1278 + $0x22] sm:$0xff]
      %v1582 = vld [vmem:[%s1278 + $0x32] sm:$0xff]
      %v1583 = vld [vmem:[%s1278 + $0x42] sm:$0xff]
      %v1584 = vld [vmem:[%s1278 + $0x52] sm:$0xff]
      %v1585 = vld [vmem:[%s1278 + $0x62] sm:$0xff]
      %v1586 = vld [vmem:[%s1278 + $0x72] sm:$0xff]
      %v1587 = vpack.c.bf16 %v1580, %v1579
      %v1588 = vpack.c.bf16 %v1582, %v1581
      %v1589 = vpack.c.bf16 %v1584, %v1583
      %v1590 = vpack.c.bf16 %v1586, %v1585
      %s1591 = scalar_lea.vmem %s3, 512
      %v1592 = vld [vmem:[%s1591] sm:$0xf]
      %v1593 = vld [vmem:[%s1591 + $0x4] sm:$0xf]
      %v1594 = vld [vmem:[%s1591 + $0x8] sm:$0xf]
      %v1595 = vld [vmem:[%s1591 + $0xc] sm:$0xf]
      %v1596 = vld [vmem:[%s1591 + $0x10] sm:$0xf]
      %v1597 = vld [vmem:[%s1591 + $0x14] sm:$0xf]
      %v1598 = vld [vmem:[%s1591 + $0x18] sm:$0xf]
      %v1599 = vld [vmem:[%s1591 + $0x1c] sm:$0xf]
      %v1600 = vld [vmem:[%s1591 + $0x20] sm:$0xf]
      %v1601 = vld [vmem:[%s1591 + $0x24] sm:$0xf]
      %v1602 = vld [vmem:[%s1591 + $0x28] sm:$0xf]
      %v1603 = vld [vmem:[%s1591 + $0x2c] sm:$0xf]
      %v1604 = vld [vmem:[%s1591 + $0x30] sm:$0xf]
      %v1605 = vld [vmem:[%s1591 + $0x34] sm:$0xf]
      %v1606 = vld [vmem:[%s1591 + $0x38] sm:$0xf]
      %v1607 = vld [vmem:[%s1591 + $0x3c] sm:$0xf]
      %v1624 = vunpack.c.l.b16 %v1592
      %v1625 = vunpack.c.l.b16 %v1593
      %v1626 = vunpack.c.l.b16 %v1594
      %v1627 = vunpack.c.l.b16 %v1595
      %v1628 = vunpack.c.l.b16 %v1596
      %v1629 = vunpack.c.l.b16 %v1597
      %v1630 = vunpack.c.l.b16 %v1598
      %v1631 = vunpack.c.l.b16 %v1599
      %v1632 = vunpack.c.l.b16 %v1600
      %v1633 = vunpack.c.l.b16 %v1601
      %v1634 = vunpack.c.l.b16 %v1602
      %v1635 = vunpack.c.l.b16 %v1603
      %v1636 = vunpack.c.l.b16 %v1604
      %v1637 = vunpack.c.l.b16 %v1605
      %v1638 = vunpack.c.l.b16 %v1606
      %v1639 = vunpack.c.l.b16 %v1607
      %v1640 = vpack.c.b16 %v1625, %v1624
      %v1641 = vpack.c.b16 %v1627, %v1626
      %v1642 = vpack.c.b16 %v1629, %v1628
      %v1643 = vpack.c.b16 %v1631, %v1630
      %v1644 = vpack.c.b16 %v1633, %v1632
      %v1645 = vpack.c.b16 %v1635, %v1634
      %v1646 = vpack.c.b16 %v1637, %v1636
      %v1647 = vpack.c.b16 %v1639, %v1638
      %1656 = vmatprep.subr.bf16.mxu0 0
      %1657 = vmatpush1.bf16.msra.mxu0 %v1640
      %1658 = vmatprep.subr.bf16.mxu0 0
      %1659 = vmatpush1.bf16.msra.mxu0 %v1641
      %1660 = vmatprep.subr.bf16.mxu0 0
      %1661 = vmatpush1.bf16.msra.mxu0 %v1642
      %1662 = vmatprep.subr.bf16.mxu0 0
      %1663 = vmatpush1.bf16.msra.mxu0 %v1643
      %1664 = vmatprep.subr.bf16.mxu0 0
      %1665 = vmatpush1.bf16.msra.mxu0 %v1644
      %1666 = vmatprep.subr.bf16.mxu0 0
      %1667 = vmatpush1.bf16.msra.mxu0 %v1645
      %1668 = vmatprep.subr.bf16.mxu0 0
      %1669 = vmatpush1.bf16.msra.mxu0 %v1646
      %1670 = vmatprep.subr.bf16.mxu0 0
      %1671 = vmatpush1.bf16.msra.mxu0 %v1647
      %1672 = vmatprep.subr.bf16.mxu0 0
      %1673 = vmatpush1.bf16.msra.mxu0 0
      %1674 = vmatprep.subr.bf16.mxu0 0
      %1675 = vmatpush1.bf16.msra.mxu0 0
      %1676 = vmatprep.subr.bf16.mxu0 0
      %1677 = vmatpush1.bf16.msra.mxu0 0
      %1678 = vmatprep.subr.bf16.mxu0 0
      %1679 = vmatpush1.bf16.msra.mxu0 0
      %1680 = vmatprep.subr.bf16.mxu0 0
      %1681 = vmatpush1.bf16.msra.mxu0 0
      %1682 = vmatprep.subr.bf16.mxu0 0
      %1683 = vmatpush1.bf16.msra.mxu0 0
      %1684 = vmatprep.subr.bf16.mxu0 0
      %1685 = vmatpush1.bf16.msra.mxu0 0
      %1686 = vmatprep.subr.bf16.mxu0 0
      %1687 = vmatpush1.bf16.msra.mxu0 0
      %1688 = vmatprep.mubr.bf16.mxu0 0
      %1689 = vmatmul.mubr.bf16.gmra.mrb[0].mxu0 %v1587
      %v1690 = vpop.f32.mrb[0].mxu0
      %v1691 = vadd.f32 0.0, %v1690
      %v1692 = vpop.f32.mrb[0].mxu0
      %v1693 = vpop.f32.mrb[0].mxu0
      %v1694 = vadd.f32 0.0, %v1693
      %v1695 = vpop.f32.mrb[0].mxu0
      %1696 = vmatprep.mubr.bf16.mxu0 0
      %1697 = vmatmul.mubr.bf16.gmra.mrb[0].mxu0 %v1588
      %v1698 = vpop.f32.mrb[0].mxu0
      %v1699 = vadd.f32 0.0, %v1698
      %v1700 = vpop.f32.mrb[0].mxu0
      %v1701 = vpop.f32.mrb[0].mxu0
      %v1702 = vadd.f32 0.0, %v1701
      %v1703 = vpop.f32.mrb[0].mxu0
      %1704 = vmatprep.mubr.bf16.mxu0 0
      %1705 = vmatmul.mubr.bf16.gmra.mrb[0].mxu0 %v1589
      %v1706 = vpop.f32.mrb[0].mxu0
      %v1707 = vadd.f32 0.0, %v1706
      %v1708 = vpop.f32.mrb[0].mxu0
      %v1709 = vpop.f32.mrb[0].mxu0
      %v1710 = vadd.f32 0.0, %v1709
      %v1711 = vpop.f32.mrb[0].mxu0
      %1712 = vmatprep.mubr.bf16.mxu0 0
      %1713 = vmatmul.mubr.bf16.gmra.mrb[0].mxu0 %v1590
      %v1714 = vpop.f32.mrb[0].mxu0
      %v1715 = vadd.f32 0.0, %v1714
      %v1716 = vpop.f32.mrb[0].mxu0
      %v1717 = vpop.f32.mrb[0].mxu0
      %v1718 = vadd.f32 0.0, %v1717
      %v1719 = vpop.f32.mrb[0].mxu0
      %1720 = vdwg.mxu0
      %v1721 = vadd.f32 %v1571, %v1691
      %v1722 = vadd.f32 %v1572, %v1694
      %v1723 = vadd.f32 %v1573, %v1699
      %v1724 = vadd.f32 %v1574, %v1702
      %v1725 = vadd.f32 %v1575, %v1707
      %v1726 = vadd.f32 %v1576, %v1710
      %v1727 = vadd.f32 %v1577, %v1715
      %v1728 = vadd.f32 %v1578, %v1718
      %1729 = vst [vmem:[%s231] sm:$0xff] %v1721
      %1730 = vst [vmem:[%s231 + $0x8] sm:$0xff] %v1722
      %1731 = vst [vmem:[%s231 + $0x10] sm:$0xff] %v1723
      %1732 = vst [vmem:[%s231 + $0x18] sm:$0xff] %v1724
      %1733 = vst [vmem:[%s231 + $0x20] sm:$0xff] %v1725
      %1734 = vst [vmem:[%s231 + $0x28] sm:$0xff] %v1726
      %1735 = vst [vmem:[%s231 + $0x30] sm:$0xff] %v1727
      %1736 = vst [vmem:[%s231 + $0x38] sm:$0xff] %v1728
      %v1737 = vadd.f32 %v1721, %v1722
      %v1738 = vadd.f32 %v1737, %v1723
      %v1739 = vadd.f32 %v1738, %v1724
      %v1740 = vadd.f32 %v1739, %v1725
      %v1741 = vadd.f32 %v1740, %v1726
      %v1742 = vadd.f32 %v1741, %v1727
      %v1743 = vadd.f32 %v1742, %v1728
      %v1744 = vrot.slane %v1743, 4
      %v1745 = vadd.f32 %v1743, %v1744
      %v1746 = vrot.slane %v1745, 2
      %v1747 = vadd.f32 %v1745, %v1746
      %v1748 = vrot.slane %v1747, 1
      %v1749 = vadd.f32 %v1747, %v1748
      %v1750 = vmul.f32 %v1721, %v1721
      %v1751 = vmul.f32 %v1722, %v1722
      %v1752 = vmul.f32 %v1723, %v1723
      %v1753 = vmul.f32 %v1724, %v1724
      %v1754 = vmul.f32 %v1725, %v1725
      %v1755 = vmul.f32 %v1726, %v1726
      %v1756 = vmul.f32 %v1727, %v1727
      %v1757 = vmul.f32 %v1728, %v1728
      %v1758 = vadd.f32 %v1750, %v1751
      %v1759 = vadd.f32 %v1758, %v1752
      %v1760 = vadd.f32 %v1759, %v1753
      %v1761 = vadd.f32 %v1760, %v1754
      %v1762 = vadd.f32 %v1761, %v1755
      %v1763 = vadd.f32 %v1762, %v1756
      %v1764 = vadd.f32 %v1763, %v1757
      %v1765 = vrot.slane %v1764, 4
      %v1766 = vadd.f32 %v1764, %v1765
      %v1767 = vrot.slane %v1766, 2
      %v1768 = vadd.f32 %v1766, %v1767
      %v1769 = vrot.slane %v1768, 1
      %v1770 = vadd.f32 %v1768, %v1769
      %vm1771 = vcmask 1040384
      %v1772 = vsel %vm1771, %v1749, %v1770
      %1773 = vst [vmem:[%s235] sm:$0x3] %v1772
      %p1774 = scmp.lt.s32.totalorder %s17, 1
      %s1775 = scalar_select %p1774, %s17, 1
      %s1776 = smul.addr %s1775, 8
      %s1777 = smul.addr %s1776, 8
      %s1778 = scalar_lea.vmem %s4, %s1777
      %p1779 = scmp.lt.s32.totalorder %s17, 1
      %s1780 = scalar_select %p1779, %s17, 1
      %s1781 = smul.addr %s1780, 2
      %s1782 = scalar_lea.vmem %s5, %s1781
      // Predicated region
      $region37: #{basic_block_forward.4} parent=35 // pred_check
        %p1783 = pneg %p124
      $region38: #{basic_block_forward.4} parent=35 // pred_check_branch
        %1785 = sbr.rel (%p1783) target = $region40
      $region39: #{basic_block_forward.4} parent=35 // pred_region
        _
      $region40: #{basic_block_forward.4} parent=35 // pred_fallthru
        _
      // Predicated region
      $region41: #{basic_block_forward.4} parent=35 // pred_check
        %p1786 = pneg %p150
      $region42: #{basic_block_forward.4} parent=35 // pred_check_branch
        %1788 = sbr.rel (%p1786) target = $region44
      $region43: #{basic_block_forward.4} parent=35 // pred_region
        _
      $region44: #{basic_block_forward.4} parent=35 // pred_fallthru
        _
    $region36: #{basic_block_forward.4} parent=5 // pred_fallthru
      _
    %p1789 = scmp.le.s32.totalorder 2, %s12
    // Predicated region
    $region45: #{basic_block_forward.4} parent=5 // pred_check
      %p1790 = pneg %p1789
    $region46: #{basic_block_forward.4} parent=5 // pred_check_branch
      %1792 = sbr.rel (%p1790) target = $region48
    $region47: #{basic_block_forward.4} parent=5 // pred_region
      %s1793 = ssub.s32 %s12, 2
      // Predicated region
      $region49: #{basic_block_forward.4} parent=47 // pred_check
        %p1794 = pneg %p130
      $region50: #{basic_block_forward.4} parent=47 // pred_check_branch
        %1796 = sbr.rel (%p1794) target = $region52
      $region51: #{basic_block_forward.4} parent=47 // pred_region
        %p1797 = scmp.lt.s32.totalorder %s18, 1
        %s1798 = scalar_select %p1797, %s18, 1
        %s1799 = smul.addr %s1798, 8
        %s1800 = smul.addr %s1799, 8
        %s1801 = scalar_lea.vmem %s4, %s1800
      $region52: #{basic_block_forward.4} parent=47 // pred_fallthru
        _
      // Predicated region
      $region53: #{basic_block_forward.4} parent=47 // pred_check
        %p1802 = pneg %p156
      $region54: #{basic_block_forward.4} parent=47 // pred_check_branch
        %1804 = sbr.rel (%p1802) target = $region56
      $region55: #{basic_block_forward.4} parent=47 // pred_region
        %p1805 = scmp.lt.s32.totalorder %s18, 1
        %s1806 = scalar_select %p1805, %s18, 1
        %s1807 = smul.addr %s1806, 2
        %s1808 = scalar_lea.vmem %s5, %s1807
      $region56: #{basic_block_forward.4} parent=47 // pred_fallthru
        _
    $region48: #{basic_block_forward.4} parent=5 // pred_fallthru
      _
  $region6: #{basic_block_forward.4} parent=0 // loop_footer
    %s16 = sadd.s32 1, %s12
  $region7: #{basic_block_forward.4} parent=0 // loop_footer_branch
    %11 = sbr.rel target = $region3
  $region8: #{basic_block_forward.4} parent=0 // loop_exit
    _

</llo_original>
